<compile_context>
chip_gen: v5e
topology: v5e:2x2
jax: 0.10.0
libtpu: 0.0.40
codegen_flags: <defaults>
</compile_context>

<pallas_src>
import functools

import jax
import jax.numpy as jnp
from jax.experimental import pallas as pl
from jax.experimental.pallas import tpu as pltpu


_HALO_ROWS = 8      # zero rows appended per flattened image (taps need only 2)
_TAPS = tuple((dr, dc) for dr in range(3) for dc in range(3))


# ----------------------------------------------------------------------------
# XLA-side data-movement glue (one ~1x pass; replaces the old 6.25x im2col)
# ----------------------------------------------------------------------------
def _space_to_depth_flat(x_nhwc, pad=2):
    """Zero-pad, stride-2 space-to-depth, flatten spatial dims row-major.

    xp[n, 2p+a, 2q+b, c] ends up at x_flat[n, p*SW + q, a*2C + b*C + c].
    Returns (x_flat[N, SH*SW + HALO, 4C], SH, SW).
    """
    N, H, W, C = x_nhwc.shape
    xp = jnp.pad(x_nhwc, ((0, 0), (pad, pad), (pad, pad), (0, 0)))
    PH, PW = H + 2 * pad, W + 2 * pad
    SH, SW = PH // 2, PW // 2
    s2d = (xp.reshape(N, SH, 2, SW, 2, C)
             .transpose(0, 1, 3, 2, 4, 5)
             .reshape(N, SH * SW, 4 * C))
    s2d = jnp.pad(s2d, ((0, 0), (0, _HALO_ROWS), (0, 0)))
    return s2d, SH, SW


# ----------------------------------------------------------------------------
# Pallas kernels
# ----------------------------------------------------------------------------
def _accumulate_taps(x_ref, w_ref, acc_ref, *, L, SW):
    """acc[m, :] = sum_{dr,dc} x[m + dr*SW + dc, :] @ W[dr*3 + dc]  (f32 acc)."""
    acc_ref[...] = jnp.zeros_like(acc_ref)
    for t, (dr, dc) in enumerate(_TAPS):
        off = dr * SW + dc
        acc_ref[...] += jnp.dot(x_ref[0, off:off + L, :], w_ref[t],
                                preferred_element_type=jnp.float32)


def _conv_lrelu_kernel(x_ref, w_ref, b_ref, o_ref, acc_ref, *, L, SW, slope):
    _accumulate_taps(x_ref, w_ref, acc_ref, L=L, SW=SW)
    y = acc_ref[...] + b_ref[...]
    y = jnp.maximum(y, slope * y)                    # leaky_relu, slope in (0,1)
    o_ref[0] = y.astype(o_ref.dtype)


def _conv_lrelu_linear_kernel(x_ref, w_ref, b_ref, wl_ref, o_ref, acc_ref,
                              *, L, SW, slope):
    _accumulate_taps(x_ref, w_ref, acc_ref, L=L, SW=SW)
    y = acc_ref[...] + b_ref[...]
    y = jnp.maximum(y, slope * y)
    # Fused Linear(out_features=1); junk width-columns are zero in wl_ref.
    s = jnp.sum(y * wl_ref[...])
    o_ref[...] = jnp.full((1, 1, 128), s, dtype=jnp.float32)   # lane-dense store


# ----------------------------------------------------------------------------
# pallas_call wrappers
# ----------------------------------------------------------------------------
def _conv_pallas(x_flat, w_eff, bias, *, OH, SW, slope, out_dtype):
    N, R, C4 = x_flat.shape
    Cout = w_eff.shape[-1]
    L = OH * SW
    kernel = functools.partial(_conv_lrelu_kernel, L=L, SW=SW, slope=slope)
    return pl.pallas_call(
        kernel,
        out_shape=jax.ShapeDtypeStruct((N, L, Cout), out_dtype),
        grid_spec=pltpu.PrefetchScalarGridSpec(
            num_scalar_prefetch=0,
            grid=(N,),
            in_specs=[
                pl.BlockSpec((1, R, C4), lambda n: (n, 0, 0)),
                pl.BlockSpec((9, C4, Cout), lambda n: (0, 0, 0)),  # resident weights
                pl.BlockSpec((1, Cout), lambda n: (0, 0)),
            ],
            out_specs=pl.BlockSpec((1, L, Cout), lambda n: (n, 0, 0)),
            scratch_shapes=[pltpu.VMEM((L, Cout), jnp.float32)],
        ),
        compiler_params=pltpu.CompilerParams(
            dimension_semantics=("parallel",),
            vmem_limit_bytes=32 * 1024 * 1024,
        ),
    )(x_flat, w_eff, bias)


def _conv_linear_head_pallas(x_flat, w_eff, bias, wl_full, *, OH, SW, slope):
    N, R, C4 = x_flat.shape
    Cout = w_eff.shape[-1]
    L = OH * SW
    kernel = functools.partial(_conv_lrelu_linear_kernel, L=L, SW=SW, slope=slope)
    out = pl.pallas_call(
        kernel,
        out_shape=jax.ShapeDtypeStruct((N, 1, 128), jnp.float32),
        grid_spec=pltpu.PrefetchScalarGridSpec(
            num_scalar_prefetch=0,
            grid=(N,),
            in_specs=[
                pl.BlockSpec((1, R, C4), lambda n: (n, 0, 0)),
                pl.BlockSpec((9, C4, Cout), lambda n: (0, 0, 0)),
                pl.BlockSpec((1, Cout), lambda n: (0, 0)),
                pl.BlockSpec((L, Cout), lambda n: (0, 0)),
            ],
            out_specs=pl.BlockSpec((1, 1, 128), lambda n: (n, 0, 0)),
            scratch_shapes=[pltpu.VMEM((L, Cout), jnp.float32)],
        ),
        compiler_params=pltpu.CompilerParams(
            dimension_semantics=("parallel",),
            vmem_limit_bytes=32 * 1024 * 1024,
        ),
    )(x_flat, w_eff, bias, wl_full)
    return out[:, 0, :1]                                   # (N, 1)


# ----------------------------------------------------------------------------
# Layers
# ----------------------------------------------------------------------------
def _conv_layer(h_nhwc, w_eff, bias, *, slope=0.2):
    N, H, W, _ = h_nhwc.shape
    OH, OW = H // 2, W // 2
    x_flat, _, SW = _space_to_depth_flat(h_nhwc, pad=2)
    Cout = w_eff.shape[-1]
    y = _conv_pallas(x_flat, w_eff, bias, OH=OH, SW=SW, slope=slope,
                     out_dtype=jnp.bfloat16)
    # Drop the (SW-OW) junk width columns of the flattened-row formulation.
    return y.reshape(N, OH, SW, Cout)[:, :, :OW, :]


def _conv_head_layer(h_nhwc, w_eff, bias, wl_full, bl, *, slope=0.2):
    N, H, W, _ = h_nhwc.shape
    OH = H // 2
    x_flat, _, SW = _space_to_depth_flat(h_nhwc, pad=2)
    out = _conv_linear_head_pallas(x_flat, w_eff, bias, wl_full,
                                   OH=OH, SW=SW, slope=slope)
    return out + bl                                        # (N, 1)


# ----------------------------------------------------------------------------
# One-time parameter preparation (no per-forward padding / weight copies)
# ----------------------------------------------------------------------------
def prepare_params(params, image_shape):
    C, H, W = image_shape
    OH3, OW3 = H // 8, W // 8
    SW3 = OW3 + 2
    C3 = params["w3"].shape[0]

    def conv_weight(w):  # OIHW (Cout, Cin, 5, 5) -> (9, 4*Cin, Cout) bf16 taps
        Cout, Cin, _, _ = w.shape
        w6 = jnp.pad(w, ((0, 0), (0, 0), (0, 1), (0, 1)))      # embed 5x5 in 6x6
        w6 = w6.reshape(Cout, Cin, 3, 2, 3, 2)                 # (o, c, dr, a, dc, b)
        w6 = jnp.transpose(w6, (2, 4, 3, 5, 1, 0))             # (dr, dc, a, b, c, o)
        return w6.reshape(9, 4 * Cin, Cout).astype(jnp.bfloat16)

    def bias_row(b):
        return b.reshape(1, -1).astype(jnp.float32)

    # Linear weight: NCHW-flatten order -> kernel's (oh, padded-ow, c) flat
    # layout; junk width columns zeroed so they contribute nothing.
    wl = params["wl"].reshape(C3, OH3, OW3)
    wl = jnp.transpose(wl, (1, 2, 0))                          # (OH3, OW3, C3)
    wl = jnp.pad(wl, ((0, 0), (0, SW3 - OW3), (0, 0)))
    wl_full = wl.reshape(OH3 * SW3, C3).astype(jnp.float32)

    return {
        "w1": conv_weight(params["w1"]), "b1": bias_row(params["b1"]),
        "w2": conv_weight(params["w2"]), "b2": bias_row(params["b2"]),
        "w3": conv_weight(params["w3"]), "b3": bias_row(params["b3"]),
        "wl": wl_full, "bl": params["bl"].astype(jnp.float32),
    }


# ----------------------------------------------------------------------------
# Discriminator forward (Pallas path)
# ----------------------------------------------------------------------------
def discriminator_forward(x_nchw, kp):
    x = jnp.transpose(x_nchw, (0, 2, 3, 1)).astype(jnp.bfloat16)   # NHWC once
    h1 = _conv_layer(x, kp["w1"], kp["b1"])
    h2 = _conv_layer(h1, kp["w2"], kp["b2"])
    return _conv_head_layer(h2, kp["w3"], kp["b3"], kp["wl"], kp["bl"])


# ----------------------------------------------------------------------------
# Reference (lax.conv; same bf16-operand / f32-accumulate numerics)
# ----------------------------------------------------------------------------
def discriminator_reference(x_nchw, params):
    def conv(x, w, b):
        xp = jnp.pad(x, ((0, 0), (0, 0), (2, 2), (2, 2)))
        y = jax.lax.conv_general_dilated(
            xp.astype(jnp.bfloat16), w.astype(jnp.bfloat16), (2, 2), "VALID",
            dimension_numbers=("NCHW", "OIHW", "NCHW"),
            preferred_element_type=jnp.float32)
        return y + b[None, :, None, None]

    lrelu = lambda v: jnp.maximum(v, 0.2 * v)
    h1 = lrelu(conv(x_nchw, params["w1"], params["b1"])).astype(jnp.bfloat16)
    h2 = lrelu(conv(h1, params["w2"], params["b2"])).astype(jnp.bfloat16)
    h3 = lrelu(conv(h2, params["w3"], params["b3"]))                # f32
    flat = h3.reshape(h3.shape[0], -1)                              # NCHW flatten
    return jnp.sum(flat * params["wl"], axis=-1, keepdims=True) + params["bl"]


# ----------------------------------------------------------------------------
if __name__ == "__main__":
    # Small shapes consistent with the module: H, W divisible by 2**3.
    N, C, H, W = 2, 3, 16, 16
    dim = 8                     # dim_factor
    H_out, W_out = H // 8, W // 8
    in_feat = 4 * dim * H_out * W_out

    key = jax.random.PRNGKey(0)
    ks = jax.random.split(key, 9)
    s = 0.05
    params = {
        "w1": s * jax.random.normal(ks[0], (dim, C, 5, 5), jnp.float32),
        "b1": s * jax.random.normal(ks[1], (dim,), jnp.float32),
        "w2": s * jax.random.normal(ks[2], (2 * dim, dim, 5, 5), jnp.float32),
        "b2": s * jax.random.normal(ks[3], (2 * dim,), jnp.float32),
        "w3": s * jax.random.normal(ks[4], (4 * dim, 2 * dim, 5, 5), jnp.float32),
        "b3": s * jax.random.normal(ks[5], (4 * dim,), jnp.float32),
        "wl": s * jax.random.normal(ks[6], (1, in_feat), jnp.float32),
        "bl": s * jax.random.normal(ks[7], (1,), jnp.float32),
    }
    x = jax.random.normal(ks[8], (N, C, H, W), jnp.float32)

    kparams = prepare_params(params, (C, H, W))
    fwd = jax.jit(discriminator_forward)
    out = jax.block_until_ready(fwd(x, kparams))
    ref = jax.block_until_ready(discriminator_reference(x, params))

    assert out.shape == (N, 1), out.shape
    assert jnp.allclose(out, ref, atol=1e-2, rtol=1e-2), (out, ref)
    print("KERNEL_OK")
</pallas_src>

<mosaic_0001>
module attributes {stable_mosaic.version = 11 : i64} {
  func.func @_conv_lrelu_kernel(%arg0: i32, %arg1: memref<1x108x12xbf16, #tpu.memory_space<vmem>>, %arg2: memref<9x12x8xbf16, #tpu.memory_space<vmem>>, %arg3: memref<1x8xf32, #tpu.memory_space<vmem>>, %arg4: memref<1x80x8xbf16, #tpu.memory_space<vmem>>, %arg5: memref<80x8xf32, #tpu.memory_space<vmem>>) attributes {dimension_semantics = [#tpu.dimension_semantics<parallel>], iteration_bounds = array<i64: 2>, scalar_prefetch = 0 : i64, scratch_operands = 1 : i64, tpu.core_type = #tpu.core_type<tc>, window_params = [{transform_indices = @transform_0, window_bounds = array<i64: 1, 108, 12>}, {pipeline_mode = #tpu.pipeline_mode<synchronous>, transform_indices = @transform_1, window_bounds = array<i64: 9, 12, 8>}, {pipeline_mode = #tpu.pipeline_mode<synchronous>, transform_indices = @transform_2, window_bounds = array<i64: 1, 8>}, {transform_indices = @transform_3, window_bounds = array<i64: 1, 80, 8>}]} {
    %cst = arith.constant 0.000000e+00 : f32
    %0 = vector.broadcast %cst : f32 to vector<80x8xf32>
    %c0 = arith.constant 0 : index
    %c0_0 = arith.constant 0 : index
    %1 = vector.load %arg5[%c0, %c0_0] : memref<80x8xf32, #tpu.memory_space<vmem>>, vector<80x8xf32>
    tpu.vector_store %arg5[%c0, %c0_0], %0 {strides = array<i32>} : memref<80x8xf32, #tpu.memory_space<vmem>>, vector<80x8xf32>,
    %c0_1 = arith.constant 0 : index
    %c0_2 = arith.constant 0 : index
    %2 = vector.load %arg5[%c0_1, %c0_2] : memref<80x8xf32, #tpu.memory_space<vmem>>, vector<80x8xf32>
    %c0_3 = arith.constant 0 : index
    %c0_4 = arith.constant 0 : index
    %c0_5 = arith.constant 0 : index
    %3 = vector.load %arg1[%c0_3, %c0_4, %c0_5] : memref<1x108x12xbf16, #tpu.memory_space<vmem>>, vector<1x80x12xbf16>
    %4 = vector.shape_cast %3 : vector<1x80x12xbf16> to vector<80x12xbf16>
    %c0_6 = arith.constant 0 : index
    %c0_7 = arith.constant 0 : index
    %c0_8 = arith.constant 0 : index
    %5 = vector.load %arg2[%c0_6, %c0_7, %c0_8] : memref<9x12x8xbf16, #tpu.memory_space<vmem>>, vector<1x12x8xbf16>
    %6 = vector.shape_cast %5 : vector<1x12x8xbf16> to vector<12x8xbf16>
    %cst_9 = arith.constant dense<0.000000e+00> : vector<80x8xf32>
    %7 = tpu.matmul %4, %6, %cst_9 {dimension_numbers = #tpu.dot_dimension_numbers<[1], [0], [0], [1], [0, 0, 1, 1], [], []>} : vector<80x12xbf16>, vector<12x8xbf16>, vector<80x8xf32> -> vector<80x8xf32>
    %8 = arith.addf %2, %7 : vector<80x8xf32>
    %c0_10 = arith.constant 0 : index
    %c0_11 = arith.constant 0 : index
    %9 = vector.load %arg5[%c0_10, %c0_11] : memref<80x8xf32, #tpu.memory_space<vmem>>, vector<80x8xf32>
    tpu.vector_store %arg5[%c0_10, %c0_11], %8 {strides = array<i32>} : memref<80x8xf32, #tpu.memory_space<vmem>>, vector<80x8xf32>,
    %c0_12 = arith.constant 0 : index
    %c0_13 = arith.constant 0 : index
    %10 = vector.load %arg5[%c0_12, %c0_13] : memref<80x8xf32, #tpu.memory_space<vmem>>, vector<80x8xf32>
    %c0_14 = arith.constant 0 : index
    %c1 = arith.constant 1 : index
    %c0_15 = arith.constant 0 : index
    %11 = vector.load %arg1[%c0_14, %c1, %c0_15] : memref<1x108x12xbf16, #tpu.memory_space<vmem>>, vector<1x80x12xbf16>
    %12 = vector.shape_cast %11 : vector<1x80x12xbf16> to vector<80x12xbf16>
    %c1_16 = arith.constant 1 : index
    %c0_17 = arith.constant 0 : index
    %c0_18 = arith.constant 0 : index
    %13 = vector.load %arg2[%c1_16, %c0_17, %c0_18] : memref<9x12x8xbf16, #tpu.memory_space<vmem>>, vector<1x12x8xbf16>
    %14 = vector.shape_cast %13 : vector<1x12x8xbf16> to vector<12x8xbf16>
    %cst_19 = arith.constant dense<0.000000e+00> : vector<80x8xf32>
    %15 = tpu.matmul %12, %14, %cst_19 {dimension_numbers = #tpu.dot_dimension_numbers<[1], [0], [0], [1], [0, 0, 1, 1], [], []>} : vector<80x12xbf16>, vector<12x8xbf16>, vector<80x8xf32> -> vector<80x8xf32>
    %16 = arith.addf %10, %15 : vector<80x8xf32>
    %c0_20 = arith.constant 0 : index
    %c0_21 = arith.constant 0 : index
    %17 = vector.load %arg5[%c0_20, %c0_21] : memref<80x8xf32, #tpu.memory_space<vmem>>, vector<80x8xf32>
    tpu.vector_store %arg5[%c0_20, %c0_21], %16 {strides = array<i32>} : memref<80x8xf32, #tpu.memory_space<vmem>>, vector<80x8xf32>,
    %c0_22 = arith.constant 0 : index
    %c0_23 = arith.constant 0 : index
    %18 = vector.load %arg5[%c0_22, %c0_23] : memref<80x8xf32, #tpu.memory_space<vmem>>, vector<80x8xf32>
    %c0_24 = arith.constant 0 : index
    %c2 = arith.constant 2 : index
    %c0_25 = arith.constant 0 : index
    %19 = vector.load %arg1[%c0_24, %c2, %c0_25] : memref<1x108x12xbf16, #tpu.memory_space<vmem>>, vector<1x80x12xbf16>
    %20 = vector.shape_cast %19 : vector<1x80x12xbf16> to vector<80x12xbf16>
    %c2_26 = arith.constant 2 : index
    %c0_27 = arith.constant 0 : index
    %c0_28 = arith.constant 0 : index
    %21 = vector.load %arg2[%c2_26, %c0_27, %c0_28] : memref<9x12x8xbf16, #tpu.memory_space<vmem>>, vector<1x12x8xbf16>
    %22 = vector.shape_cast %21 : vector<1x12x8xbf16> to vector<12x8xbf16>
    %cst_29 = arith.constant dense<0.000000e+00> : vector<80x8xf32>
    %23 = tpu.matmul %20, %22, %cst_29 {dimension_numbers = #tpu.dot_dimension_numbers<[1], [0], [0], [1], [0, 0, 1, 1], [], []>} : vector<80x12xbf16>, vector<12x8xbf16>, vector<80x8xf32> -> vector<80x8xf32>
    %24 = arith.addf %18, %23 : vector<80x8xf32>
    %c0_30 = arith.constant 0 : index
    %c0_31 = arith.constant 0 : index
    %25 = vector.load %arg5[%c0_30, %c0_31] : memref<80x8xf32, #tpu.memory_space<vmem>>, vector<80x8xf32>
    tpu.vector_store %arg5[%c0_30, %c0_31], %24 {strides = array<i32>} : memref<80x8xf32, #tpu.memory_space<vmem>>, vector<80x8xf32>,
    %c0_32 = arith.constant 0 : index
    %c0_33 = arith.constant 0 : index
    %26 = vector.load %arg5[%c0_32, %c0_33] : memref<80x8xf32, #tpu.memory_space<vmem>>, vector<80x8xf32>
    %c0_34 = arith.constant 0 : index
    %c10 = arith.constant 10 : index
    %c0_35 = arith.constant 0 : index
    %27 = vector.load %arg1[%c0_34, %c10, %c0_35] : memref<1x108x12xbf16, #tpu.memory_space<vmem>>, vector<1x80x12xbf16>
    %28 = vector.shape_cast %27 : vector<1x80x12xbf16> to vector<80x12xbf16>
    %c3 = arith.constant 3 : index
    %c0_36 = arith.constant 0 : index
    %c0_37 = arith.constant 0 : index
    %29 = vector.load %arg2[%c3, %c0_36, %c0_37] : memref<9x12x8xbf16, #tpu.memory_space<vmem>>, vector<1x12x8xbf16>
    %30 = vector.shape_cast %29 : vector<1x12x8xbf16> to vector<12x8xbf16>
    %cst_38 = arith.constant dense<0.000000e+00> : vector<80x8xf32>
    %31 = tpu.matmul %28, %30, %cst_38 {dimension_numbers = #tpu.dot_dimension_numbers<[1], [0], [0], [1], [0, 0, 1, 1], [], []>} : vector<80x12xbf16>, vector<12x8xbf16>, vector<80x8xf32> -> vector<80x8xf32>
    %32 = arith.addf %26, %31 : vector<80x8xf32>
    %c0_39 = arith.constant 0 : index
    %c0_40 = arith.constant 0 : index
    %33 = vector.load %arg5[%c0_39, %c0_40] : memref<80x8xf32, #tpu.memory_space<vmem>>, vector<80x8xf32>
    tpu.vector_store %arg5[%c0_39, %c0_40], %32 {strides = array<i32>} : memref<80x8xf32, #tpu.memory_space<vmem>>, vector<80x8xf32>,
    %c0_41 = arith.constant 0 : index
    %c0_42 = arith.constant 0 : index
    %34 = vector.load %arg5[%c0_41, %c0_42] : memref<80x8xf32, #tpu.memory_space<vmem>>, vector<80x8xf32>
    %c0_43 = arith.constant 0 : index
    %c11 = arith.constant 11 : index
    %c0_44 = arith.constant 0 : index
    %35 = vector.load %arg1[%c0_43, %c11, %c0_44] : memref<1x108x12xbf16, #tpu.memory_space<vmem>>, vector<1x80x12xbf16>
    %36 = vector.shape_cast %35 : vector<1x80x12xbf16> to vector<80x12xbf16>
    %c4 = arith.constant 4 : index
    %c0_45 = arith.constant 0 : index
    %c0_46 = arith.constant 0 : index
    %37 = vector.load %arg2[%c4, %c0_45, %c0_46] : memref<9x12x8xbf16, #tpu.memory_space<vmem>>, vector<1x12x8xbf16>
    %38 = vector.shape_cast %37 : vector<1x12x8xbf16> to vector<12x8xbf16>
    %cst_47 = arith.constant dense<0.000000e+00> : vector<80x8xf32>
    %39 = tpu.matmul %36, %38, %cst_47 {dimension_numbers = #tpu.dot_dimension_numbers<[1], [0], [0], [1], [0, 0, 1, 1], [], []>} : vector<80x12xbf16>, vector<12x8xbf16>, vector<80x8xf32> -> vector<80x8xf32>
    %40 = arith.addf %34, %39 : vector<80x8xf32>
    %c0_48 = arith.constant 0 : index
    %c0_49 = arith.constant 0 : index
    %41 = vector.load %arg5[%c0_48, %c0_49] : memref<80x8xf32, #tpu.memory_space<vmem>>, vector<80x8xf32>
    tpu.vector_store %arg5[%c0_48, %c0_49], %40 {strides = array<i32>} : memref<80x8xf32, #tpu.memory_space<vmem>>, vector<80x8xf32>,
    %c0_50 = arith.constant 0 : index
    %c0_51 = arith.constant 0 : index
    %42 = vector.load %arg5[%c0_50, %c0_51] : memref<80x8xf32, #tpu.memory_space<vmem>>, vector<80x8xf32>
    %c0_52 = arith.constant 0 : index
    %c12 = arith.constant 12 : index
    %c0_53 = arith.constant 0 : index
    %43 = vector.load %arg1[%c0_52, %c12, %c0_53] : memref<1x108x12xbf16, #tpu.memory_space<vmem>>, vector<1x80x12xbf16>
    %44 = vector.shape_cast %43 : vector<1x80x12xbf16> to vector<80x12xbf16>
    %c5 = arith.constant 5 : index
    %c0_54 = arith.constant 0 : index
    %c0_55 = arith.constant 0 : index
    %45 = vector.load %arg2[%c5, %c0_54, %c0_55] : memref<9x12x8xbf16, #tpu.memory_space<vmem>>, vector<1x12x8xbf16>
    %46 = vector.shape_cast %45 : vector<1x12x8xbf16> to vector<12x8xbf16>
    %cst_56 = arith.constant dense<0.000000e+00> : vector<80x8xf32>
    %47 = tpu.matmul %44, %46, %cst_56 {dimension_numbers = #tpu.dot_dimension_numbers<[1], [0], [0], [1], [0, 0, 1, 1], [], []>} : vector<80x12xbf16>, vector<12x8xbf16>, vector<80x8xf32> -> vector<80x8xf32>
    %48 = arith.addf %42, %47 : vector<80x8xf32>
    %c0_57 = arith.constant 0 : index
    %c0_58 = arith.constant 0 : index
    %49 = vector.load %arg5[%c0_57, %c0_58] : memref<80x8xf32, #tpu.memory_space<vmem>>, vector<80x8xf32>
    tpu.vector_store %arg5[%c0_57, %c0_58], %48 {strides = array<i32>} : memref<80x8xf32, #tpu.memory_space<vmem>>, vector<80x8xf32>,
    %c0_59 = arith.constant 0 : index
    %c0_60 = arith.constant 0 : index
    %50 = vector.load %arg5[%c0_59, %c0_60] : memref<80x8xf32, #tpu.memory_space<vmem>>, vector<80x8xf32>
    %c0_61 = arith.constant 0 : index
    %c20 = arith.constant 20 : index
    %c0_62 = arith.constant 0 : index
    %51 = vector.load %arg1[%c0_61, %c20, %c0_62] : memref<1x108x12xbf16, #tpu.memory_space<vmem>>, vector<1x80x12xbf16>
    %52 = vector.shape_cast %51 : vector<1x80x12xbf16> to vector<80x12xbf16>
    %c6 = arith.constant 6 : index
    %c0_63 = arith.constant 0 : index
    %c0_64 = arith.constant 0 : index
    %53 = vector.load %arg2[%c6, %c0_63, %c0_64] : memref<9x12x8xbf16, #tpu.memory_space<vmem>>, vector<1x12x8xbf16>
    %54 = vector.shape_cast %53 : vector<1x12x8xbf16> to vector<12x8xbf16>
    %cst_65 = arith.constant dense<0.000000e+00> : vector<80x8xf32>
    %55 = tpu.matmul %52, %54, %cst_65 {dimension_numbers = #tpu.dot_dimension_numbers<[1], [0], [0], [1], [0, 0, 1, 1], [], []>} : vector<80x12xbf16>, vector<12x8xbf16>, vector<80x8xf32> -> vector<80x8xf32>
    %56 = arith.addf %50, %55 : vector<80x8xf32>
    %c0_66 = arith.constant 0 : index
    %c0_67 = arith.constant 0 : index
    %57 = vector.load %arg5[%c0_66, %c0_67] : memref<80x8xf32, #tpu.memory_space<vmem>>, vector<80x8xf32>
    tpu.vector_store %arg5[%c0_66, %c0_67], %56 {strides = array<i32>} : memref<80x8xf32, #tpu.memory_space<vmem>>, vector<80x8xf32>,
    %c0_68 = arith.constant 0 : index
    %c0_69 = arith.constant 0 : index
    %58 = vector.load %arg5[%c0_68, %c0_69] : memref<80x8xf32, #tpu.memory_space<vmem>>, vector<80x8xf32>
    %c0_70 = arith.constant 0 : index
    %c21 = arith.constant 21 : index
    %c0_71 = arith.constant 0 : index
    %59 = vector.load %arg1[%c0_70, %c21, %c0_71] : memref<1x108x12xbf16, #tpu.memory_space<vmem>>, vector<1x80x12xbf16>
    %60 = vector.shape_cast %59 : vector<1x80x12xbf16> to vector<80x12xbf16>
    %c7 = arith.constant 7 : index
    %c0_72 = arith.constant 0 : index
    %c0_73 = arith.constant 0 : index
    %61 = vector.load %arg2[%c7, %c0_72, %c0_73] : memref<9x12x8xbf16, #tpu.memory_space<vmem>>, vector<1x12x8xbf16>
    %62 = vector.shape_cast %61 : vector<1x12x8xbf16> to vector<12x8xbf16>
    %cst_74 = arith.constant dense<0.000000e+00> : vector<80x8xf32>
    %63 = tpu.matmul %60, %62, %cst_74 {dimension_numbers = #tpu.dot_dimension_numbers<[1], [0], [0], [1], [0, 0, 1, 1], [], []>} : vector<80x12xbf16>, vector<12x8xbf16>, vector<80x8xf32> -> vector<80x8xf32>
    %64 = arith.addf %58, %63 : vector<80x8xf32>
    %c0_75 = arith.constant 0 : index
    %c0_76 = arith.constant 0 : index
    %65 = vector.load %arg5[%c0_75, %c0_76] : memref<80x8xf32, #tpu.memory_space<vmem>>, vector<80x8xf32>
    tpu.vector_store %arg5[%c0_75, %c0_76], %64 {strides = array<i32>} : memref<80x8xf32, #tpu.memory_space<vmem>>, vector<80x8xf32>,
    %c0_77 = arith.constant 0 : index
    %c0_78 = arith.constant 0 : index
    %66 = vector.load %arg5[%c0_77, %c0_78] : memref<80x8xf32, #tpu.memory_space<vmem>>, vector<80x8xf32>
    %c0_79 = arith.constant 0 : index
    %c22 = arith.constant 22 : index
    %c0_80 = arith.constant 0 : index
    %67 = vector.load %arg1[%c0_79, %c22, %c0_80] : memref<1x108x12xbf16, #tpu.memory_space<vmem>>, vector<1x80x12xbf16>
    %68 = vector.shape_cast %67 : vector<1x80x12xbf16> to vector<80x12xbf16>
    %c8 = arith.constant 8 : index
    %c0_81 = arith.constant 0 : index
    %c0_82 = arith.constant 0 : index
    %69 = vector.load %arg2[%c8, %c0_81, %c0_82] : memref<9x12x8xbf16, #tpu.memory_space<vmem>>, vector<1x12x8xbf16>
    %70 = vector.shape_cast %69 : vector<1x12x8xbf16> to vector<12x8xbf16>
    %cst_83 = arith.constant dense<0.000000e+00> : vector<80x8xf32>
    %71 = tpu.matmul %68, %70, %cst_83 {dimension_numbers = #tpu.dot_dimension_numbers<[1], [0], [0], [1], [0, 0, 1, 1], [], []>} : vector<80x12xbf16>, vector<12x8xbf16>, vector<80x8xf32> -> vector<80x8xf32>
    %72 = arith.addf %66, %71 : vector<80x8xf32>
    %c0_84 = arith.constant 0 : index
    %c0_85 = arith.constant 0 : index
    %73 = vector.load %arg5[%c0_84, %c0_85] : memref<80x8xf32, #tpu.memory_space<vmem>>, vector<80x8xf32>
    tpu.vector_store %arg5[%c0_84, %c0_85], %72 {strides = array<i32>} : memref<80x8xf32, #tpu.memory_space<vmem>>, vector<80x8xf32>,
    %c0_86 = arith.constant 0 : index
    %c0_87 = arith.constant 0 : index
    %74 = vector.load %arg5[%c0_86, %c0_87] : memref<80x8xf32, #tpu.memory_space<vmem>>, vector<80x8xf32>
    %c0_88 = arith.constant 0 : index
    %c0_89 = arith.constant 0 : index
    %75 = vector.load %arg3[%c0_88, %c0_89] : memref<1x8xf32, #tpu.memory_space<vmem>>, vector<1x8xf32>
    %76 = vector.broadcast %75 : vector<1x8xf32> to vector<80x8xf32>
    %77 = arith.addf %74, %76 : vector<80x8xf32>
    %cst_90 = arith.constant 2.000000e-01 : f32
    %78 = vector.broadcast %cst_90 : f32 to vector<80x8xf32>
    %79 = arith.mulf %78, %77 : vector<80x8xf32>
    %80 = arith.maximumf %77, %79 : vector<80x8xf32>
    %81 = arith.truncf %80 : vector<80x8xf32> to vector<80x8xbf16>
    %c0_91 = arith.constant 0 : index
    %c0_92 = arith.constant 0 : index
    %c0_93 = arith.constant 0 : index
    %82 = vector.load %arg4[%c0_91, %c0_92, %c0_93] : memref<1x80x8xbf16, #tpu.memory_space<vmem>>, vector<1x80x8xbf16>
    %83 = vector.shape_cast %82 : vector<1x80x8xbf16> to vector<80x8xbf16>
    %84 = vector.shape_cast %81 : vector<80x8xbf16> to vector<1x80x8xbf16>
    tpu.vector_store %arg4[%c0_91, %c0_92, %c0_93], %84 {strides = array<i32>} : memref<1x80x8xbf16, #tpu.memory_space<vmem>>, vector<1x80x8xbf16>,
    return
  }
  func.func @transform_0(%arg0: i32) -> (i32, i32, i32) {
    %c0_i32 = arith.constant 0 : i32
    %c0_i32_0 = arith.constant 0 : i32
    %c0_i32_1 = arith.constant 0 : i32
    return %arg0, %c0_i32, %c0_i32_0 : i32, i32, i32
  }
  func.func @transform_1(%arg0: i32) -> (i32, i32, i32) {
    %c0_i32 = arith.constant 0 : i32
    %c0_i32_0 = arith.constant 0 : i32
    %c0_i32_1 = arith.constant 0 : i32
    %c0_i32_2 = arith.constant 0 : i32
    return %c0_i32, %c0_i32_0, %c0_i32_1 : i32, i32, i32
  }
  func.func @transform_2(%arg0: i32) -> (i32, i32) {
    %c0_i32 = arith.constant 0 : i32
    %c0_i32_0 = arith.constant 0 : i32
    %c0_i32_1 = arith.constant 0 : i32
    return %c0_i32, %c0_i32_0 : i32, i32
  }
  func.func @transform_3(%arg0: i32) -> (i32, i32, i32) {
    %c0_i32 = arith.constant 0 : i32
    %c0_i32_0 = arith.constant 0 : i32
    %c0_i32_1 = arith.constant 0 : i32
    return %arg0, %c0_i32, %c0_i32_0 : i32, i32, i32
  }
}

module attributes {stable_mosaic.version = 11 : i64} {
  func.func @_conv_lrelu_kernel(%arg0: i32, %arg1: memref<1x44x32xbf16, #tpu.memory_space<vmem>>, %arg2: memref<9x32x16xbf16, #tpu.memory_space<vmem>>, %arg3: memref<1x16xf32, #tpu.memory_space<vmem>>, %arg4: memref<1x24x16xbf16, #tpu.memory_space<vmem>>, %arg5: memref<24x16xf32, #tpu.memory_space<vmem>>) attributes {dimension_semantics = [#tpu.dimension_semantics<parallel>], iteration_bounds = array<i64: 2>, scalar_prefetch = 0 : i64, scratch_operands = 1 : i64, tpu.core_type = #tpu.core_type<tc>, window_params = [{transform_indices = @transform_0, window_bounds = array<i64: 1, 44, 32>}, {pipeline_mode = #tpu.pipeline_mode<synchronous>, transform_indices = @transform_1, window_bounds = array<i64: 9, 32, 16>}, {pipeline_mode = #tpu.pipeline_mode<synchronous>, transform_indices = @transform_2, window_bounds = array<i64: 1, 16>}, {transform_indices = @transform_3, window_bounds = array<i64: 1, 24, 16>}]} {
    %cst = arith.constant 0.000000e+00 : f32
    %0 = vector.broadcast %cst : f32 to vector<24x16xf32>
    %c0 = arith.constant 0 : index
    %c0_0 = arith.constant 0 : index
    %1 = vector.load %arg5[%c0, %c0_0] : memref<24x16xf32, #tpu.memory_space<vmem>>, vector<24x16xf32>
    tpu.vector_store %arg5[%c0, %c0_0], %0 {strides = array<i32>} : memref<24x16xf32, #tpu.memory_space<vmem>>, vector<24x16xf32>,
    %c0_1 = arith.constant 0 : index
    %c0_2 = arith.constant 0 : index
    %2 = vector.load %arg5[%c0_1, %c0_2] : memref<24x16xf32, #tpu.memory_space<vmem>>, vector<24x16xf32>
    %c0_3 = arith.constant 0 : index
    %c0_4 = arith.constant 0 : index
    %c0_5 = arith.constant 0 : index
    %3 = vector.load %arg1[%c0_3, %c0_4, %c0_5] : memref<1x44x32xbf16, #tpu.memory_space<vmem>>, vector<1x24x32xbf16>
    %4 = vector.shape_cast %3 : vector<1x24x32xbf16> to vector<24x32xbf16>
    %c0_6 = arith.constant 0 : index
    %c0_7 = arith.constant 0 : index
    %c0_8 = arith.constant 0 : index
    %5 = vector.load %arg2[%c0_6, %c0_7, %c0_8] : memref<9x32x16xbf16, #tpu.memory_space<vmem>>, vector<1x32x16xbf16>
    %6 = vector.shape_cast %5 : vector<1x32x16xbf16> to vector<32x16xbf16>
    %cst_9 = arith.constant dense<0.000000e+00> : vector<24x16xf32>
    %7 = tpu.matmul %4, %6, %cst_9 {dimension_numbers = #tpu.dot_dimension_numbers<[1], [0], [0], [1], [0, 0, 1, 1], [], []>} : vector<24x32xbf16>, vector<32x16xbf16>, vector<24x16xf32> -> vector<24x16xf32>
    %8 = arith.addf %2, %7 : vector<24x16xf32>
    %c0_10 = arith.constant 0 : index
    %c0_11 = arith.constant 0 : index
    %9 = vector.load %arg5[%c0_10, %c0_11] : memref<24x16xf32, #tpu.memory_space<vmem>>, vector<24x16xf32>
    tpu.vector_store %arg5[%c0_10, %c0_11], %8 {strides = array<i32>} : memref<24x16xf32, #tpu.memory_space<vmem>>, vector<24x16xf32>,
    %c0_12 = arith.constant 0 : index
    %c0_13 = arith.constant 0 : index
    %10 = vector.load %arg5[%c0_12, %c0_13] : memref<24x16xf32, #tpu.memory_space<vmem>>, vector<24x16xf32>
    %c0_14 = arith.constant 0 : index
    %c1 = arith.constant 1 : index
    %c0_15 = arith.constant 0 : index
    %11 = vector.load %arg1[%c0_14, %c1, %c0_15] : memref<1x44x32xbf16, #tpu.memory_space<vmem>>, vector<1x24x32xbf16>
    %12 = vector.shape_cast %11 : vector<1x24x32xbf16> to vector<24x32xbf16>
    %c1_16 = arith.constant 1 : index
    %c0_17 = arith.constant 0 : index
    %c0_18 = arith.constant 0 : index
    %13 = vector.load %arg2[%c1_16, %c0_17, %c0_18] : memref<9x32x16xbf16, #tpu.memory_space<vmem>>, vector<1x32x16xbf16>
    %14 = vector.shape_cast %13 : vector<1x32x16xbf16> to vector<32x16xbf16>
    %cst_19 = arith.constant dense<0.000000e+00> : vector<24x16xf32>
    %15 = tpu.matmul %12, %14, %cst_19 {dimension_numbers = #tpu.dot_dimension_numbers<[1], [0], [0], [1], [0, 0, 1, 1], [], []>} : vector<24x32xbf16>, vector<32x16xbf16>, vector<24x16xf32> -> vector<24x16xf32>
    %16 = arith.addf %10, %15 : vector<24x16xf32>
    %c0_20 = arith.constant 0 : index
    %c0_21 = arith.constant 0 : index
    %17 = vector.load %arg5[%c0_20, %c0_21] : memref<24x16xf32, #tpu.memory_space<vmem>>, vector<24x16xf32>
    tpu.vector_store %arg5[%c0_20, %c0_21], %16 {strides = array<i32>} : memref<24x16xf32, #tpu.memory_space<vmem>>, vector<24x16xf32>,
    %c0_22 = arith.constant 0 : index
    %c0_23 = arith.constant 0 : index
    %18 = vector.load %arg5[%c0_22, %c0_23] : memref<24x16xf32, #tpu.memory_space<vmem>>, vector<24x16xf32>
    %c0_24 = arith.constant 0 : index
    %c2 = arith.constant 2 : index
    %c0_25 = arith.constant 0 : index
    %19 = vector.load %arg1[%c0_24, %c2, %c0_25] : memref<1x44x32xbf16, #tpu.memory_space<vmem>>, vector<1x24x32xbf16>
    %20 = vector.shape_cast %19 : vector<1x24x32xbf16> to vector<24x32xbf16>
    %c2_26 = arith.constant 2 : index
    %c0_27 = arith.constant 0 : index
    %c0_28 = arith.constant 0 : index
    %21 = vector.load %arg2[%c2_26, %c0_27, %c0_28] : memref<9x32x16xbf16, #tpu.memory_space<vmem>>, vector<1x32x16xbf16>
    %22 = vector.shape_cast %21 : vector<1x32x16xbf16> to vector<32x16xbf16>
    %cst_29 = arith.constant dense<0.000000e+00> : vector<24x16xf32>
    %23 = tpu.matmul %20, %22, %cst_29 {dimension_numbers = #tpu.dot_dimension_numbers<[1], [0], [0], [1], [0, 0, 1, 1], [], []>} : vector<24x32xbf16>, vector<32x16xbf16>, vector<24x16xf32> -> vector<24x16xf32>
    %24 = arith.addf %18, %23 : vector<24x16xf32>
    %c0_30 = arith.constant 0 : index
    %c0_31 = arith.constant 0 : index
    %25 = vector.load %arg5[%c0_30, %c0_31] : memref<24x16xf32, #tpu.memory_space<vmem>>, vector<24x16xf32>
    tpu.vector_store %arg5[%c0_30, %c0_31], %24 {strides = array<i32>} : memref<24x16xf32, #tpu.memory_space<vmem>>, vector<24x16xf32>,
    %c0_32 = arith.constant 0 : index
    %c0_33 = arith.constant 0 : index
    %26 = vector.load %arg5[%c0_32, %c0_33] : memref<24x16xf32, #tpu.memory_space<vmem>>, vector<24x16xf32>
    %c0_34 = arith.constant 0 : index
    %c6 = arith.constant 6 : index
    %c0_35 = arith.constant 0 : index
    %27 = vector.load %arg1[%c0_34, %c6, %c0_35] : memref<1x44x32xbf16, #tpu.memory_space<vmem>>, vector<1x24x32xbf16>
    %28 = vector.shape_cast %27 : vector<1x24x32xbf16> to vector<24x32xbf16>
    %c3 = arith.constant 3 : index
    %c0_36 = arith.constant 0 : index
    %c0_37 = arith.constant 0 : index
    %29 = vector.load %arg2[%c3, %c0_36, %c0_37] : memref<9x32x16xbf16, #tpu.memory_space<vmem>>, vector<1x32x16xbf16>
    %30 = vector.shape_cast %29 : vector<1x32x16xbf16> to vector<32x16xbf16>
    %cst_38 = arith.constant dense<0.000000e+00> : vector<24x16xf32>
    %31 = tpu.matmul %28, %30, %cst_38 {dimension_numbers = #tpu.dot_dimension_numbers<[1], [0], [0], [1], [0, 0, 1, 1], [], []>} : vector<24x32xbf16>, vector<32x16xbf16>, vector<24x16xf32> -> vector<24x16xf32>
    %32 = arith.addf %26, %31 : vector<24x16xf32>
    %c0_39 = arith.constant 0 : index
    %c0_40 = arith.constant 0 : index
    %33 = vector.load %arg5[%c0_39, %c0_40] : memref<24x16xf32, #tpu.memory_space<vmem>>, vector<24x16xf32>
    tpu.vector_store %arg5[%c0_39, %c0_40], %32 {strides = array<i32>} : memref<24x16xf32, #tpu.memory_space<vmem>>, vector<24x16xf32>,
    %c0_41 = arith.constant 0 : index
    %c0_42 = arith.constant 0 : index
    %34 = vector.load %arg5[%c0_41, %c0_42] : memref<24x16xf32, #tpu.memory_space<vmem>>, vector<24x16xf32>
    %c0_43 = arith.constant 0 : index
    %c7 = arith.constant 7 : index
    %c0_44 = arith.constant 0 : index
    %35 = vector.load %arg1[%c0_43, %c7, %c0_44] : memref<1x44x32xbf16, #tpu.memory_space<vmem>>, vector<1x24x32xbf16>
    %36 = vector.shape_cast %35 : vector<1x24x32xbf16> to vector<24x32xbf16>
    %c4 = arith.constant 4 : index
    %c0_45 = arith.constant 0 : index
    %c0_46 = arith.constant 0 : index
    %37 = vector.load %arg2[%c4, %c0_45, %c0_46] : memref<9x32x16xbf16, #tpu.memory_space<vmem>>, vector<1x32x16xbf16>
    %38 = vector.shape_cast %37 : vector<1x32x16xbf16> to vector<32x16xbf16>
    %cst_47 = arith.constant dense<0.000000e+00> : vector<24x16xf32>
    %39 = tpu.matmul %36, %38, %cst_47 {dimension_numbers = #tpu.dot_dimension_numbers<[1], [0], [0], [1], [0, 0, 1, 1], [], []>} : vector<24x32xbf16>, vector<32x16xbf16>, vector<24x16xf32> -> vector<24x16xf32>
    %40 = arith.addf %34, %39 : vector<24x16xf32>
    %c0_48 = arith.constant 0 : index
    %c0_49 = arith.constant 0 : index
    %41 = vector.load %arg5[%c0_48, %c0_49] : memref<24x16xf32, #tpu.memory_space<vmem>>, vector<24x16xf32>
    tpu.vector_store %arg5[%c0_48, %c0_49], %40 {strides = array<i32>} : memref<24x16xf32, #tpu.memory_space<vmem>>, vector<24x16xf32>,
    %c0_50 = arith.constant 0 : index
    %c0_51 = arith.constant 0 : index
    %42 = vector.load %arg5[%c0_50, %c0_51] : memref<24x16xf32, #tpu.memory_space<vmem>>, vector<24x16xf32>
    %c0_52 = arith.constant 0 : index
    %c8 = arith.constant 8 : index
    %c0_53 = arith.constant 0 : index
    %43 = vector.load %arg1[%c0_52, %c8, %c0_53] : memref<1x44x32xbf16, #tpu.memory_space<vmem>>, vector<1x24x32xbf16>
    %44 = vector.shape_cast %43 : vector<1x24x32xbf16> to vector<24x32xbf16>
    %c5 = arith.constant 5 : index
    %c0_54 = arith.constant 0 : index
    %c0_55 = arith.constant 0 : index
    %45 = vector.load %arg2[%c5, %c0_54, %c0_55] : memref<9x32x16xbf16, #tpu.memory_space<vmem>>, vector<1x32x16xbf16>
    %46 = vector.shape_cast %45 : vector<1x32x16xbf16> to vector<32x16xbf16>
    %cst_56 = arith.constant dense<0.000000e+00> : vector<24x16xf32>
    %47 = tpu.matmul %44, %46, %cst_56 {dimension_numbers = #tpu.dot_dimension_numbers<[1], [0], [0], [1], [0, 0, 1, 1], [], []>} : vector<24x32xbf16>, vector<32x16xbf16>, vector<24x16xf32> -> vector<24x16xf32>
    %48 = arith.addf %42, %47 : vector<24x16xf32>
    %c0_57 = arith.constant 0 : index
    %c0_58 = arith.constant 0 : index
    %49 = vector.load %arg5[%c0_57, %c0_58] : memref<24x16xf32, #tpu.memory_space<vmem>>, vector<24x16xf32>
    tpu.vector_store %arg5[%c0_57, %c0_58], %48 {strides = array<i32>} : memref<24x16xf32, #tpu.memory_space<vmem>>, vector<24x16xf32>,
    %c0_59 = arith.constant 0 : index
    %c0_60 = arith.constant 0 : index
    %50 = vector.load %arg5[%c0_59, %c0_60] : memref<24x16xf32, #tpu.memory_space<vmem>>, vector<24x16xf32>
    %c0_61 = arith.constant 0 : index
    %c12 = arith.constant 12 : index
    %c0_62 = arith.constant 0 : index
    %51 = vector.load %arg1[%c0_61, %c12, %c0_62] : memref<1x44x32xbf16, #tpu.memory_space<vmem>>, vector<1x24x32xbf16>
    %52 = vector.shape_cast %51 : vector<1x24x32xbf16> to vector<24x32xbf16>
    %c6_63 = arith.constant 6 : index
    %c0_64 = arith.constant 0 : index
    %c0_65 = arith.constant 0 : index
    %53 = vector.load %arg2[%c6_63, %c0_64, %c0_65] : memref<9x32x16xbf16, #tpu.memory_space<vmem>>, vector<1x32x16xbf16>
    %54 = vector.shape_cast %53 : vector<1x32x16xbf16> to vector<32x16xbf16>
    %cst_66 = arith.constant dense<0.000000e+00> : vector<24x16xf32>
    %55 = tpu.matmul %52, %54, %cst_66 {dimension_numbers = #tpu.dot_dimension_numbers<[1], [0], [0], [1], [0, 0, 1, 1], [], []>} : vector<24x32xbf16>, vector<32x16xbf16>, vector<24x16xf32> -> vector<24x16xf32>
    %56 = arith.addf %50, %55 : vector<24x16xf32>
    %c0_67 = arith.constant 0 : index
    %c0_68 = arith.constant 0 : index
    %57 = vector.load %arg5[%c0_67, %c0_68] : memref<24x16xf32, #tpu.memory_space<vmem>>, vector<24x16xf32>
    tpu.vector_store %arg5[%c0_67, %c0_68], %56 {strides = array<i32>} : memref<24x16xf32, #tpu.memory_space<vmem>>, vector<24x16xf32>,
    %c0_69 = arith.constant 0 : index
    %c0_70 = arith.constant 0 : index
    %58 = vector.load %arg5[%c0_69, %c0_70] : memref<24x16xf32, #tpu.memory_space<vmem>>, vector<24x16xf32>
    %c0_71 = arith.constant 0 : index
    %c13 = arith.constant 13 : index
    %c0_72 = arith.constant 0 : index
    %59 = vector.load %arg1[%c0_71, %c13, %c0_72] : memref<1x44x32xbf16, #tpu.memory_space<vmem>>, vector<1x24x32xbf16>
    %60 = vector.shape_cast %59 : vector<1x24x32xbf16> to vector<24x32xbf16>
    %c7_73 = arith.constant 7 : index
    %c0_74 = arith.constant 0 : index
    %c0_75 = arith.constant 0 : index
    %61 = vector.load %arg2[%c7_73, %c0_74, %c0_75] : memref<9x32x16xbf16, #tpu.memory_space<vmem>>, vector<1x32x16xbf16>
    %62 = vector.shape_cast %61 : vector<1x32x16xbf16> to vector<32x16xbf16>
    %cst_76 = arith.constant dense<0.000000e+00> : vector<24x16xf32>
    %63 = tpu.matmul %60, %62, %cst_76 {dimension_numbers = #tpu.dot_dimension_numbers<[1], [0], [0], [1], [0, 0, 1, 1], [], []>} : vector<24x32xbf16>, vector<32x16xbf16>, vector<24x16xf32> -> vector<24x16xf32>
    %64 = arith.addf %58, %63 : vector<24x16xf32>
    %c0_77 = arith.constant 0 : index
    %c0_78 = arith.constant 0 : index
    %65 = vector.load %arg5[%c0_77, %c0_78] : memref<24x16xf32, #tpu.memory_space<vmem>>, vector<24x16xf32>
    tpu.vector_store %arg5[%c0_77, %c0_78], %64 {strides = array<i32>} : memref<24x16xf32, #tpu.memory_space<vmem>>, vector<24x16xf32>,
    %c0_79 = arith.constant 0 : index
    %c0_80 = arith.constant 0 : index
    %66 = vector.load %arg5[%c0_79, %c0_80] : memref<24x16xf32, #tpu.memory_space<vmem>>, vector<24x16xf32>
    %c0_81 = arith.constant 0 : index
    %c14 = arith.constant 14 : index
    %c0_82 = arith.constant 0 : index
    %67 = vector.load %arg1[%c0_81, %c14, %c0_82] : memref<1x44x32xbf16, #tpu.memory_space<vmem>>, vector<1x24x32xbf16>
    %68 = vector.shape_cast %67 : vector<1x24x32xbf16> to vector<24x32xbf16>
    %c8_83 = arith.constant 8 : index
    %c0_84 = arith.constant 0 : index
    %c0_85 = arith.constant 0 : index
    %69 = vector.load %arg2[%c8_83, %c0_84, %c0_85] : memref<9x32x16xbf16, #tpu.memory_space<vmem>>, vector<1x32x16xbf16>
    %70 = vector.shape_cast %69 : vector<1x32x16xbf16> to vector<32x16xbf16>
    %cst_86 = arith.constant dense<0.000000e+00> : vector<24x16xf32>
    %71 = tpu.matmul %68, %70, %cst_86 {dimension_numbers = #tpu.dot_dimension_numbers<[1], [0], [0], [1], [0, 0, 1, 1], [], []>} : vector<24x32xbf16>, vector<32x16xbf16>, vector<24x16xf32> -> vector<24x16xf32>
    %72 = arith.addf %66, %71 : vector<24x16xf32>
    %c0_87 = arith.constant 0 : index
    %c0_88 = arith.constant 0 : index
    %73 = vector.load %arg5[%c0_87, %c0_88] : memref<24x16xf32, #tpu.memory_space<vmem>>, vector<24x16xf32>
    tpu.vector_store %arg5[%c0_87, %c0_88], %72 {strides = array<i32>} : memref<24x16xf32, #tpu.memory_space<vmem>>, vector<24x16xf32>,
    %c0_89 = arith.constant 0 : index
    %c0_90 = arith.constant 0 : index
    %74 = vector.load %arg5[%c0_89, %c0_90] : memref<24x16xf32, #tpu.memory_space<vmem>>, vector<24x16xf32>
    %c0_91 = arith.constant 0 : index
    %c0_92 = arith.constant 0 : index
    %75 = vector.load %arg3[%c0_91, %c0_92] : memref<1x16xf32, #tpu.memory_space<vmem>>, vector<1x16xf32>
    %76 = vector.broadcast %75 : vector<1x16xf32> to vector<24x16xf32>
    %77 = arith.addf %74, %76 : vector<24x16xf32>
    %cst_93 = arith.constant 2.000000e-01 : f32
    %78 = vector.broadcast %cst_93 : f32 to vector<24x16xf32>
    %79 = arith.mulf %78, %77 : vector<24x16xf32>
    %80 = arith.maximumf %77, %79 : vector<24x16xf32>
    %81 = arith.truncf %80 : vector<24x16xf32> to vector<24x16xbf16>
    %c0_94 = arith.constant 0 : index
    %c0_95 = arith.constant 0 : index
    %c0_96 = arith.constant 0 : index
    %82 = vector.load %arg4[%c0_94, %c0_95, %c0_96] : memref<1x24x16xbf16, #tpu.memory_space<vmem>>, vector<1x24x16xbf16>
    %83 = vector.shape_cast %82 : vector<1x24x16xbf16> to vector<24x16xbf16>
    %84 = vector.shape_cast %81 : vector<24x16xbf16> to vector<1x24x16xbf16>
    tpu.vector_store %arg4[%c0_94, %c0_95, %c0_96], %84 {strides = array<i32>} : memref<1x24x16xbf16, #tpu.memory_space<vmem>>, vector<1x24x16xbf16>,
    return
  }
  func.func @transform_0(%arg0: i32) -> (i32, i32, i32) {
    %c0_i32 = arith.constant 0 : i32
    %c0_i32_0 = arith.constant 0 : i32
    %c0_i32_1 = arith.constant 0 : i32
    return %arg0, %c0_i32, %c0_i32_0 : i32, i32, i32
  }
  func.func @transform_1(%arg0: i32) -> (i32, i32, i32) {
    %c0_i32 = arith.constant 0 : i32
    %c0_i32_0 = arith.constant 0 : i32
    %c0_i32_1 = arith.constant 0 : i32
    %c0_i32_2 = arith.constant 0 : i32
    return %c0_i32, %c0_i32_0, %c0_i32_1 : i32, i32, i32
  }
  func.func @transform_2(%arg0: i32) -> (i32, i32) {
    %c0_i32 = arith.constant 0 : i32
    %c0_i32_0 = arith.constant 0 : i32
    %c0_i32_1 = arith.constant 0 : i32
    return %c0_i32, %c0_i32_0 : i32, i32
  }
  func.func @transform_3(%arg0: i32) -> (i32, i32, i32) {
    %c0_i32 = arith.constant 0 : i32
    %c0_i32_0 = arith.constant 0 : i32
    %c0_i32_1 = arith.constant 0 : i32
    return %arg0, %c0_i32, %c0_i32_0 : i32, i32, i32
  }
}

module attributes {stable_mosaic.version = 11 : i64} {
  func.func @_conv_lrelu_linear_kernel(%arg0: i32, %arg1: memref<1x24x64xbf16, #tpu.memory_space<vmem>>, %arg2: memref<9x64x32xbf16, #tpu.memory_space<vmem>>, %arg3: memref<1x32xf32, #tpu.memory_space<vmem>>, %arg4: memref<8x32xf32, #tpu.memory_space<vmem>>, %arg5: memref<1x1x128xf32, #tpu.memory_space<vmem>>, %arg6: memref<8x32xf32, #tpu.memory_space<vmem>>) attributes {dimension_semantics = [#tpu.dimension_semantics<parallel>], iteration_bounds = array<i64: 2>, scalar_prefetch = 0 : i64, scratch_operands = 1 : i64, tpu.core_type = #tpu.core_type<tc>, window_params = [{transform_indices = @transform_0, window_bounds = array<i64: 1, 24, 64>}, {pipeline_mode = #tpu.pipeline_mode<synchronous>, transform_indices = @transform_1, window_bounds = array<i64: 9, 64, 32>}, {pipeline_mode = #tpu.pipeline_mode<synchronous>, transform_indices = @transform_2, window_bounds = array<i64: 1, 32>}, {pipeline_mode = #tpu.pipeline_mode<synchronous>, transform_indices = @transform_3, window_bounds = array<i64: 8, 32>}, {transform_indices = @transform_4, window_bounds = array<i64: 1, 1, 128>}]} {
    %cst = arith.constant 0.000000e+00 : f32
    %0 = vector.broadcast %cst : f32 to vector<8x32xf32>
    %c0 = arith.constant 0 : index
    %c0_0 = arith.constant 0 : index
    %1 = vector.load %arg6[%c0, %c0_0] : memref<8x32xf32, #tpu.memory_space<vmem>>, vector<8x32xf32>
    tpu.vector_store %arg6[%c0, %c0_0], %0 {strides = array<i32>} : memref<8x32xf32, #tpu.memory_space<vmem>>, vector<8x32xf32>,
    %c0_1 = arith.constant 0 : index
    %c0_2 = arith.constant 0 : index
    %2 = vector.load %arg6[%c0_1, %c0_2] : memref<8x32xf32, #tpu.memory_space<vmem>>, vector<8x32xf32>
    %c0_3 = arith.constant 0 : index
    %c0_4 = arith.constant 0 : index
    %c0_5 = arith.constant 0 : index
    %3 = vector.load %arg1[%c0_3, %c0_4, %c0_5] : memref<1x24x64xbf16, #tpu.memory_space<vmem>>, vector<1x8x64xbf16>
    %4 = vector.shape_cast %3 : vector<1x8x64xbf16> to vector<8x64xbf16>
    %c0_6 = arith.constant 0 : index
    %c0_7 = arith.constant 0 : index
    %c0_8 = arith.constant 0 : index
    %5 = vector.load %arg2[%c0_6, %c0_7, %c0_8] : memref<9x64x32xbf16, #tpu.memory_space<vmem>>, vector<1x64x32xbf16>
    %6 = vector.shape_cast %5 : vector<1x64x32xbf16> to vector<64x32xbf16>
    %cst_9 = arith.constant dense<0.000000e+00> : vector<8x32xf32>
    %7 = tpu.matmul %4, %6, %cst_9 {dimension_numbers = #tpu.dot_dimension_numbers<[1], [0], [0], [1], [0, 0, 1, 1], [], []>} : vector<8x64xbf16>, vector<64x32xbf16>, vector<8x32xf32> -> vector<8x32xf32>
    %8 = arith.addf %2, %7 : vector<8x32xf32>
    %c0_10 = arith.constant 0 : index
    %c0_11 = arith.constant 0 : index
    %9 = vector.load %arg6[%c0_10, %c0_11] : memref<8x32xf32, #tpu.memory_space<vmem>>, vector<8x32xf32>
    tpu.vector_store %arg6[%c0_10, %c0_11], %8 {strides = array<i32>} : memref<8x32xf32, #tpu.memory_space<vmem>>, vector<8x32xf32>,
    %c0_12 = arith.constant 0 : index
    %c0_13 = arith.constant 0 : index
    %10 = vector.load %arg6[%c0_12, %c0_13] : memref<8x32xf32, #tpu.memory_space<vmem>>, vector<8x32xf32>
    %c0_14 = arith.constant 0 : index
    %c1 = arith.constant 1 : index
    %c0_15 = arith.constant 0 : index
    %11 = vector.load %arg1[%c0_14, %c1, %c0_15] : memref<1x24x64xbf16, #tpu.memory_space<vmem>>, vector<1x8x64xbf16>
    %12 = vector.shape_cast %11 : vector<1x8x64xbf16> to vector<8x64xbf16>
    %c1_16 = arith.constant 1 : index
    %c0_17 = arith.constant 0 : index
    %c0_18 = arith.constant 0 : index
    %13 = vector.load %arg2[%c1_16, %c0_17, %c0_18] : memref<9x64x32xbf16, #tpu.memory_space<vmem>>, vector<1x64x32xbf16>
    %14 = vector.shape_cast %13 : vector<1x64x32xbf16> to vector<64x32xbf16>
    %cst_19 = arith.constant dense<0.000000e+00> : vector<8x32xf32>
    %15 = tpu.matmul %12, %14, %cst_19 {dimension_numbers = #tpu.dot_dimension_numbers<[1], [0], [0], [1], [0, 0, 1, 1], [], []>} : vector<8x64xbf16>, vector<64x32xbf16>, vector<8x32xf32> -> vector<8x32xf32>
    %16 = arith.addf %10, %15 : vector<8x32xf32>
    %c0_20 = arith.constant 0 : index
    %c0_21 = arith.constant 0 : index
    %17 = vector.load %arg6[%c0_20, %c0_21] : memref<8x32xf32, #tpu.memory_space<vmem>>, vector<8x32xf32>
    tpu.vector_store %arg6[%c0_20, %c0_21], %16 {strides = array<i32>} : memref<8x32xf32, #tpu.memory_space<vmem>>, vector<8x32xf32>,
    %c0_22 = arith.constant 0 : index
    %c0_23 = arith.constant 0 : index
    %18 = vector.load %arg6[%c0_22, %c0_23] : memref<8x32xf32, #tpu.memory_space<vmem>>, vector<8x32xf32>
    %c0_24 = arith.constant 0 : index
    %c2 = arith.constant 2 : index
    %c0_25 = arith.constant 0 : index
    %19 = vector.load %arg1[%c0_24, %c2, %c0_25] : memref<1x24x64xbf16, #tpu.memory_space<vmem>>, vector<1x8x64xbf16>
    %20 = vector.shape_cast %19 : vector<1x8x64xbf16> to vector<8x64xbf16>
    %c2_26 = arith.constant 2 : index
    %c0_27 = arith.constant 0 : index
    %c0_28 = arith.constant 0 : index
    %21 = vector.load %arg2[%c2_26, %c0_27, %c0_28] : memref<9x64x32xbf16, #tpu.memory_space<vmem>>, vector<1x64x32xbf16>
    %22 = vector.shape_cast %21 : vector<1x64x32xbf16> to vector<64x32xbf16>
    %cst_29 = arith.constant dense<0.000000e+00> : vector<8x32xf32>
    %23 = tpu.matmul %20, %22, %cst_29 {dimension_numbers = #tpu.dot_dimension_numbers<[1], [0], [0], [1], [0, 0, 1, 1], [], []>} : vector<8x64xbf16>, vector<64x32xbf16>, vector<8x32xf32> -> vector<8x32xf32>
    %24 = arith.addf %18, %23 : vector<8x32xf32>
    %c0_30 = arith.constant 0 : index
    %c0_31 = arith.constant 0 : index
    %25 = vector.load %arg6[%c0_30, %c0_31] : memref<8x32xf32, #tpu.memory_space<vmem>>, vector<8x32xf32>
    tpu.vector_store %arg6[%c0_30, %c0_31], %24 {strides = array<i32>} : memref<8x32xf32, #tpu.memory_space<vmem>>, vector<8x32xf32>,
    %c0_32 = arith.constant 0 : index
    %c0_33 = arith.constant 0 : index
    %26 = vector.load %arg6[%c0_32, %c0_33] : memref<8x32xf32, #tpu.memory_space<vmem>>, vector<8x32xf32>
    %c0_34 = arith.constant 0 : index
    %c4 = arith.constant 4 : index
    %c0_35 = arith.constant 0 : index
    %27 = vector.load %arg1[%c0_34, %c4, %c0_35] : memref<1x24x64xbf16, #tpu.memory_space<vmem>>, vector<1x8x64xbf16>
    %28 = vector.shape_cast %27 : vector<1x8x64xbf16> to vector<8x64xbf16>
    %c3 = arith.constant 3 : index
    %c0_36 = arith.constant 0 : index
    %c0_37 = arith.constant 0 : index
    %29 = vector.load %arg2[%c3, %c0_36, %c0_37] : memref<9x64x32xbf16, #tpu.memory_space<vmem>>, vector<1x64x32xbf16>
    %30 = vector.shape_cast %29 : vector<1x64x32xbf16> to vector<64x32xbf16>
    %cst_38 = arith.constant dense<0.000000e+00> : vector<8x32xf32>
    %31 = tpu.matmul %28, %30, %cst_38 {dimension_numbers = #tpu.dot_dimension_numbers<[1], [0], [0], [1], [0, 0, 1, 1], [], []>} : vector<8x64xbf16>, vector<64x32xbf16>, vector<8x32xf32> -> vector<8x32xf32>
    %32 = arith.addf %26, %31 : vector<8x32xf32>
    %c0_39 = arith.constant 0 : index
    %c0_40 = arith.constant 0 : index
    %33 = vector.load %arg6[%c0_39, %c0_40] : memref<8x32xf32, #tpu.memory_space<vmem>>, vector<8x32xf32>
    tpu.vector_store %arg6[%c0_39, %c0_40], %32 {strides = array<i32>} : memref<8x32xf32, #tpu.memory_space<vmem>>, vector<8x32xf32>,
    %c0_41 = arith.constant 0 : index
    %c0_42 = arith.constant 0 : index
    %34 = vector.load %arg6[%c0_41, %c0_42] : memref<8x32xf32, #tpu.memory_space<vmem>>, vector<8x32xf32>
    %c0_43 = arith.constant 0 : index
    %c5 = arith.constant 5 : index
    %c0_44 = arith.constant 0 : index
    %35 = vector.load %arg1[%c0_43, %c5, %c0_44] : memref<1x24x64xbf16, #tpu.memory_space<vmem>>, vector<1x8x64xbf16>
    %36 = vector.shape_cast %35 : vector<1x8x64xbf16> to vector<8x64xbf16>
    %c4_45 = arith.constant 4 : index
    %c0_46 = arith.constant 0 : index
    %c0_47 = arith.constant 0 : index
    %37 = vector.load %arg2[%c4_45, %c0_46, %c0_47] : memref<9x64x32xbf16, #tpu.memory_space<vmem>>, vector<1x64x32xbf16>
    %38 = vector.shape_cast %37 : vector<1x64x32xbf16> to vector<64x32xbf16>
    %cst_48 = arith.constant dense<0.000000e+00> : vector<8x32xf32>
    %39 = tpu.matmul %36, %38, %cst_48 {dimension_numbers = #tpu.dot_dimension_numbers<[1], [0], [0], [1], [0, 0, 1, 1], [], []>} : vector<8x64xbf16>, vector<64x32xbf16>, vector<8x32xf32> -> vector<8x32xf32>
    %40 = arith.addf %34, %39 : vector<8x32xf32>
    %c0_49 = arith.constant 0 : index
    %c0_50 = arith.constant 0 : index
    %41 = vector.load %arg6[%c0_49, %c0_50] : memref<8x32xf32, #tpu.memory_space<vmem>>, vector<8x32xf32>
    tpu.vector_store %arg6[%c0_49, %c0_50], %40 {strides = array<i32>} : memref<8x32xf32, #tpu.memory_space<vmem>>, vector<8x32xf32>,
    %c0_51 = arith.constant 0 : index
    %c0_52 = arith.constant 0 : index
    %42 = vector.load %arg6[%c0_51, %c0_52] : memref<8x32xf32, #tpu.memory_space<vmem>>, vector<8x32xf32>
    %c0_53 = arith.constant 0 : index
    %c6 = arith.constant 6 : index
    %c0_54 = arith.constant 0 : index
    %43 = vector.load %arg1[%c0_53, %c6, %c0_54] : memref<1x24x64xbf16, #tpu.memory_space<vmem>>, vector<1x8x64xbf16>
    %44 = vector.shape_cast %43 : vector<1x8x64xbf16> to vector<8x64xbf16>
    %c5_55 = arith.constant 5 : index
    %c0_56 = arith.constant 0 : index
    %c0_57 = arith.constant 0 : index
    %45 = vector.load %arg2[%c5_55, %c0_56, %c0_57] : memref<9x64x32xbf16, #tpu.memory_space<vmem>>, vector<1x64x32xbf16>
    %46 = vector.shape_cast %45 : vector<1x64x32xbf16> to vector<64x32xbf16>
    %cst_58 = arith.constant dense<0.000000e+00> : vector<8x32xf32>
    %47 = tpu.matmul %44, %46, %cst_58 {dimension_numbers = #tpu.dot_dimension_numbers<[1], [0], [0], [1], [0, 0, 1, 1], [], []>} : vector<8x64xbf16>, vector<64x32xbf16>, vector<8x32xf32> -> vector<8x32xf32>
    %48 = arith.addf %42, %47 : vector<8x32xf32>
    %c0_59 = arith.constant 0 : index
    %c0_60 = arith.constant 0 : index
    %49 = vector.load %arg6[%c0_59, %c0_60] : memref<8x32xf32, #tpu.memory_space<vmem>>, vector<8x32xf32>
    tpu.vector_store %arg6[%c0_59, %c0_60], %48 {strides = array<i32>} : memref<8x32xf32, #tpu.memory_space<vmem>>, vector<8x32xf32>,
    %c0_61 = arith.constant 0 : index
    %c0_62 = arith.constant 0 : index
    %50 = vector.load %arg6[%c0_61, %c0_62] : memref<8x32xf32, #tpu.memory_space<vmem>>, vector<8x32xf32>
    %c0_63 = arith.constant 0 : index
    %c8 = arith.constant 8 : index
    %c0_64 = arith.constant 0 : index
    %51 = vector.load %arg1[%c0_63, %c8, %c0_64] : memref<1x24x64xbf16, #tpu.memory_space<vmem>>, vector<1x8x64xbf16>
    %52 = vector.shape_cast %51 : vector<1x8x64xbf16> to vector<8x64xbf16>
    %c6_65 = arith.constant 6 : index
    %c0_66 = arith.constant 0 : index
    %c0_67 = arith.constant 0 : index
    %53 = vector.load %arg2[%c6_65, %c0_66, %c0_67] : memref<9x64x32xbf16, #tpu.memory_space<vmem>>, vector<1x64x32xbf16>
    %54 = vector.shape_cast %53 : vector<1x64x32xbf16> to vector<64x32xbf16>
    %cst_68 = arith.constant dense<0.000000e+00> : vector<8x32xf32>
    %55 = tpu.matmul %52, %54, %cst_68 {dimension_numbers = #tpu.dot_dimension_numbers<[1], [0], [0], [1], [0, 0, 1, 1], [], []>} : vector<8x64xbf16>, vector<64x32xbf16>, vector<8x32xf32> -> vector<8x32xf32>
    %56 = arith.addf %50, %55 : vector<8x32xf32>
    %c0_69 = arith.constant 0 : index
    %c0_70 = arith.constant 0 : index
    %57 = vector.load %arg6[%c0_69, %c0_70] : memref<8x32xf32, #tpu.memory_space<vmem>>, vector<8x32xf32>
    tpu.vector_store %arg6[%c0_69, %c0_70], %56 {strides = array<i32>} : memref<8x32xf32, #tpu.memory_space<vmem>>, vector<8x32xf32>,
    %c0_71 = arith.constant 0 : index
    %c0_72 = arith.constant 0 : index
    %58 = vector.load %arg6[%c0_71, %c0_72] : memref<8x32xf32, #tpu.memory_space<vmem>>, vector<8x32xf32>
    %c0_73 = arith.constant 0 : index
    %c9 = arith.constant 9 : index
    %c0_74 = arith.constant 0 : index
    %59 = vector.load %arg1[%c0_73, %c9, %c0_74] : memref<1x24x64xbf16, #tpu.memory_space<vmem>>, vector<1x8x64xbf16>
    %60 = vector.shape_cast %59 : vector<1x8x64xbf16> to vector<8x64xbf16>
    %c7 = arith.constant 7 : index
    %c0_75 = arith.constant 0 : index
    %c0_76 = arith.constant 0 : index
    %61 = vector.load %arg2[%c7, %c0_75, %c0_76] : memref<9x64x32xbf16, #tpu.memory_space<vmem>>, vector<1x64x32xbf16>
    %62 = vector.shape_cast %61 : vector<1x64x32xbf16> to vector<64x32xbf16>
    %cst_77 = arith.constant dense<0.000000e+00> : vector<8x32xf32>
    %63 = tpu.matmul %60, %62, %cst_77 {dimension_numbers = #tpu.dot_dimension_numbers<[1], [0], [0], [1], [0, 0, 1, 1], [], []>} : vector<8x64xbf16>, vector<64x32xbf16>, vector<8x32xf32> -> vector<8x32xf32>
    %64 = arith.addf %58, %63 : vector<8x32xf32>
    %c0_78 = arith.constant 0 : index
    %c0_79 = arith.constant 0 : index
    %65 = vector.load %arg6[%c0_78, %c0_79] : memref<8x32xf32, #tpu.memory_space<vmem>>, vector<8x32xf32>
    tpu.vector_store %arg6[%c0_78, %c0_79], %64 {strides = array<i32>} : memref<8x32xf32, #tpu.memory_space<vmem>>, vector<8x32xf32>,
    %c0_80 = arith.constant 0 : index
    %c0_81 = arith.constant 0 : index
    %66 = vector.load %arg6[%c0_80, %c0_81] : memref<8x32xf32, #tpu.memory_space<vmem>>, vector<8x32xf32>
    %c0_82 = arith.constant 0 : index
    %c10 = arith.constant 10 : index
    %c0_83 = arith.constant 0 : index
    %67 = vector.load %arg1[%c0_82, %c10, %c0_83] : memref<1x24x64xbf16, #tpu.memory_space<vmem>>, vector<1x8x64xbf16>
    %68 = vector.shape_cast %67 : vector<1x8x64xbf16> to vector<8x64xbf16>
    %c8_84 = arith.constant 8 : index
    %c0_85 = arith.constant 0 : index
    %c0_86 = arith.constant 0 : index
    %69 = vector.load %arg2[%c8_84, %c0_85, %c0_86] : memref<9x64x32xbf16, #tpu.memory_space<vmem>>, vector<1x64x32xbf16>
    %70 = vector.shape_cast %69 : vector<1x64x32xbf16> to vector<64x32xbf16>
    %cst_87 = arith.constant dense<0.000000e+00> : vector<8x32xf32>
    %71 = tpu.matmul %68, %70, %cst_87 {dimension_numbers = #tpu.dot_dimension_numbers<[1], [0], [0], [1], [0, 0, 1, 1], [], []>} : vector<8x64xbf16>, vector<64x32xbf16>, vector<8x32xf32> -> vector<8x32xf32>
    %72 = arith.addf %66, %71 : vector<8x32xf32>
    %c0_88 = arith.constant 0 : index
    %c0_89 = arith.constant 0 : index
    %73 = vector.load %arg6[%c0_88, %c0_89] : memref<8x32xf32, #tpu.memory_space<vmem>>, vector<8x32xf32>
    tpu.vector_store %arg6[%c0_88, %c0_89], %72 {strides = array<i32>} : memref<8x32xf32, #tpu.memory_space<vmem>>, vector<8x32xf32>,
    %c0_90 = arith.constant 0 : index
    %c0_91 = arith.constant 0 : index
    %74 = vector.load %arg6[%c0_90, %c0_91] : memref<8x32xf32, #tpu.memory_space<vmem>>, vector<8x32xf32>
    %c0_92 = arith.constant 0 : index
    %c0_93 = arith.constant 0 : index
    %75 = vector.load %arg3[%c0_92, %c0_93] : memref<1x32xf32, #tpu.memory_space<vmem>>, vector<1x32xf32>
    %76 = vector.broadcast %75 : vector<1x32xf32> to vector<8x32xf32>
    %77 = arith.addf %74, %76 : vector<8x32xf32>
    %cst_94 = arith.constant 2.000000e-01 : f32
    %78 = vector.broadcast %cst_94 : f32 to vector<8x32xf32>
    %79 = arith.mulf %78, %77 : vector<8x32xf32>
    %80 = arith.maximumf %77, %79 : vector<8x32xf32>
    %c0_95 = arith.constant 0 : index
    %c0_96 = arith.constant 0 : index
    %81 = vector.load %arg4[%c0_95, %c0_96] : memref<8x32xf32, #tpu.memory_space<vmem>>, vector<8x32xf32>
    %82 = arith.mulf %80, %81 : vector<8x32xf32>
    %83 = vector.shape_cast %82 : vector<8x32xf32> to vector<1x8x32xf32>
    %cst_97 = arith.constant dense<0.000000e+00> : vector<1xf32>
    %84 = vector.multi_reduction <add>, %83, %cst_97 [1, 2] : vector<1x8x32xf32> to vector<1xf32>
    %85 = vector.shape_cast %84 : vector<1xf32> to vector<1x1x1xf32>
    %86 = vector.extract %85[0, 0, 0] : f32 from vector<1x1x1xf32>
    %87 = vector.broadcast %86 : f32 to vector<1x1x128xf32>
    %c0_98 = arith.constant 0 : index
    %c0_99 = arith.constant 0 : index
    %c0_100 = arith.constant 0 : index
    %88 = vector.load %arg5[%c0_98, %c0_99, %c0_100] : memref<1x1x128xf32, #tpu.memory_space<vmem>>, vector<1x1x128xf32>
    tpu.vector_store %arg5[%c0_98, %c0_99, %c0_100], %87 {strides = array<i32>} : memref<1x1x128xf32, #tpu.memory_space<vmem>>, vector<1x1x128xf32>,
    return
  }
  func.func @transform_0(%arg0: i32) -> (i32, i32, i32) {
    %c0_i32 = arith.constant 0 : i32
    %c0_i32_0 = arith.constant 0 : i32
    %c0_i32_1 = arith.constant 0 : i32
    return %arg0, %c0_i32, %c0_i32_0 : i32, i32, i32
  }
  func.func @transform_1(%arg0: i32) -> (i32, i32, i32) {
    %c0_i32 = arith.constant 0 : i32
    %c0_i32_0 = arith.constant 0 : i32
    %c0_i32_1 = arith.constant 0 : i32
    %c0_i32_2 = arith.constant 0 : i32
    return %c0_i32, %c0_i32_0, %c0_i32_1 : i32, i32, i32
  }
  func.func @transform_2(%arg0: i32) -> (i32, i32) {
    %c0_i32 = arith.constant 0 : i32
    %c0_i32_0 = arith.constant 0 : i32
    %c0_i32_1 = arith.constant 0 : i32
    return %c0_i32, %c0_i32_0 : i32, i32
  }
  func.func @transform_3(%arg0: i32) -> (i32, i32) {
    %c0_i32 = arith.constant 0 : i32
    %c0_i32_0 = arith.constant 0 : i32
    %c0_i32_1 = arith.constant 0 : i32
    return %c0_i32, %c0_i32_0 : i32, i32
  }
  func.func @transform_4(%arg0: i32) -> (i32, i32, i32) {
    %c0_i32 = arith.constant 0 : i32
    %c0_i32_0 = arith.constant 0 : i32
    %c0_i32_1 = arith.constant 0 : i32
    return %arg0, %c0_i32, %c0_i32_0 : i32, i32, i32
  }
}

</mosaic_0001>

<llo_original>
// kernel: discriminator_forward.3
$region0: #{discriminator_forward.3}
  #allocation0 [shape = 'u32[]', space=smem, size = 0x4, offset = 0x4, fixed_abs, tag = 'smem constant byte address 0x4 - core index']
  #allocation1 [shape = 'u32[72,128]{1,0:T(1,128)}', space=vmem, size = 0x9000, scoped, tag = 'internal scratch']
  #allocation2 [shape = 'f32[80,8]{1,0:T(8,128)}', space=vmem, size = 0xa000, scoped, tag = 'scratch operand']
  %s0 = inlined_call_operand.vmem [shape: bf16[2,108,12], index: 0, kind: input, shape index: {}]
  %s1 = inlined_call_operand.vmem [shape: bf16[9,12,8], index: 1, kind: input, shape index: {}]
  %s2 = inlined_call_operand.vmem [shape: f32[1,8], index: 2, kind: input, shape index: {}]
  %s3 = inlined_call_operand.vmem [shape: bf16[2,80,8], index: 3, kind: output, shape index: {}]
  %s4 = sld [smem:[#allocation0]]
  $region45: #{discriminator_forward.3} parent=0
    _
  %s6 = ssub.s32 1, %s4
  %s7 = scalar_select 0, %s6, %s4
  loop: start=0, step=1, limit=4
  $region2: #{discriminator_forward.3} parent=0 // loop_pre_header
    _
  $region3: #{discriminator_forward.3} parent=0 // loop_header
    %s9 = sphi 0, %s13
    %p10 = scmp.ge.s32.totalorder %s9, 4
    %s19 = sphi 0, %s21
    %s22 = sphi 0, %s19
    %s23 = sphi 0, %s22
    %s39 = sphi 0, %s23
    %s43 = sphi 0, %s43
    %s45 = sphi 0, %s43
    %s46 = sphi 0, %s45
    %s60 = sphi 0, %s46
    %s64 = sphi 0, %s64
    %s66 = sphi 0, %s64
    %s67 = sphi 0, %s66
    %s81 = sphi 0, %s67
    %s87 = sphi 0, %s89
    %s90 = sphi 0, %s87
    %s91 = sphi 0, %s90
    %s107 = sphi 0, %s91
  $region4: #{discriminator_forward.3} parent=0 // loop_header_branch
    %12 = sbr.rel (%p10) target = $region8
  $region5: #{discriminator_forward.3} parent=0 // loop_body
    %s14 = ssub.s32 %s9, 1
    %s15 = ssub.s32 %s9, 2
    %s16 = sadd.s32 %s9, 1
    %s17 = ssub.s32 %s9, %s16
    %p18 = scmp.eq.s32.totalorder %s17, 0
    %s20 = sadd.s32 %s19, 1
    %s21 = scalar_select %p18, %s19, %s20
    %p24 = pneg %p18
    %p25 = scmp.eq.s32.totalorder %s9, 1
    %p26 = por %p24, %p25
    %p27 = scmp.ne.s32.totalorder %s19, %s22
    %p28 = scmp.eq.s32.totalorder %s9, 0
    %p29 = por %p27, %p28
    %p30 = scmp.ne.s32.totalorder %s19, %s22
    %p31 = scmp.eq.s32.totalorder %s14, 1
    %p32 = por %p30, %p31
    %p33 = scmp.ne.s32.totalorder %s22, %s23
    %p34 = scmp.eq.s32.totalorder %s14, 0
    %p35 = por %p33, %p34
    %p36 = scmp.ne.s32.totalorder %s22, %s23
    %p37 = scmp.eq.s32.totalorder %s15, 1
    %p38 = por %p36, %p37
    %p40 = scmp.ne.s32.totalorder %s23, %s39
    %p41 = scmp.eq.s32.totalorder %s15, 0
    %p42 = por %p40, %p41
    %s44 = sadd.s32 %s43, 1
    %p47 = scmp.eq.s32.totalorder %s9, 1
    %p48 = scmp.ne.s32.totalorder %s43, %s45
    %p49 = scmp.eq.s32.totalorder %s9, 0
    %p50 = por %p48, %p49
    %p51 = scmp.ne.s32.totalorder %s43, %s45
    %p52 = scmp.eq.s32.totalorder %s14, 1
    %p53 = por %p51, %p52
    %p54 = scmp.ne.s32.totalorder %s45, %s46
    %p55 = scmp.eq.s32.totalorder %s14, 0
    %p56 = por %p54, %p55
    %p57 = scmp.ne.s32.totalorder %s45, %s46
    %p58 = scmp.eq.s32.totalorder %s15, 1
    %p59 = por %p57, %p58
    %p61 = scmp.ne.s32.totalorder %s46, %s60
    %p62 = scmp.eq.s32.totalorder %s15, 0
    %p63 = por %p61, %p62
    %s65 = sadd.s32 %s64, 1
    %p68 = scmp.eq.s32.totalorder %s9, 1
    %p69 = scmp.ne.s32.totalorder %s64, %s66
    %p70 = scmp.eq.s32.totalorder %s9, 0
    %p71 = por %p69, %p70
    %p72 = scmp.ne.s32.totalorder %s64, %s66
    %p73 = scmp.eq.s32.totalorder %s14, 1
    %p74 = por %p72, %p73
    %p75 = scmp.ne.s32.totalorder %s66, %s67
    %p76 = scmp.eq.s32.totalorder %s14, 0
    %p77 = por %p75, %p76
    %p78 = scmp.ne.s32.totalorder %s66, %s67
    %p79 = scmp.eq.s32.totalorder %s15, 1
    %p80 = por %p78, %p79
    %p82 = scmp.ne.s32.totalorder %s67, %s81
    %p83 = scmp.eq.s32.totalorder %s15, 0
    %p84 = por %p82, %p83
    %s85 = ssub.s32 %s9, %s16
    %p86 = scmp.eq.s32.totalorder %s85, 0
    %s88 = sadd.s32 %s87, 1
    %s89 = scalar_select %p86, %s87, %s88
    %p92 = pneg %p86
    %p93 = scmp.eq.s32.totalorder %s9, 1
    %p94 = por %p92, %p93
    %p95 = scmp.ne.s32.totalorder %s87, %s90
    %p96 = scmp.eq.s32.totalorder %s9, 0
    %p97 = por %p95, %p96
    %p98 = scmp.ne.s32.totalorder %s87, %s90
    %p99 = scmp.eq.s32.totalorder %s14, 1
    %p100 = por %p98, %p99
    %p101 = scmp.ne.s32.totalorder %s90, %s91
    %p102 = scmp.eq.s32.totalorder %s14, 0
    %p103 = por %p101, %p102
    %p104 = scmp.ne.s32.totalorder %s90, %s91
    %p105 = scmp.eq.s32.totalorder %s15, 1
    %p106 = por %p104, %p105
    %p108 = scmp.ne.s32.totalorder %s91, %s107
    %p109 = scmp.eq.s32.totalorder %s15, 0
    %p110 = por %p108, %p109
    %p111 = scmp.le.s32.totalorder 1, %s9
    %p112 = scmp.lt.s32.totalorder %s9, 3
    %p113 = pnand %p111, %p112
    %p114 = pneg %p113
    // Predicated region
    $region9: #{discriminator_forward.3} parent=5 // pred_check
      _
    $region10: #{discriminator_forward.3} parent=5 // pred_check_branch
      %116 = sbr.rel (%p113) target = $region12
    $region11: #{discriminator_forward.3} parent=5 // pred_region
      %s117 = ssub.s32 %s9, 1
      // Predicated region
      $region13: #{discriminator_forward.3} parent=11 // pred_check
        %p118 = pneg %p56
      $region14: #{discriminator_forward.3} parent=11 // pred_check_branch
        %120 = sbr.rel (%p118) target = $region16
      $region15: #{discriminator_forward.3} parent=11 // pred_region
        _
      $region16: #{discriminator_forward.3} parent=11 // pred_fallthru
        _
      // Predicated region
      $region17: #{discriminator_forward.3} parent=11 // pred_check
        %p121 = pneg %p77
      $region18: #{discriminator_forward.3} parent=11 // pred_check_branch
        %123 = sbr.rel (%p121) target = $region20
      $region19: #{discriminator_forward.3} parent=11 // pred_region
        _
      $region20: #{discriminator_forward.3} parent=11 // pred_fallthru
        _
    $region12: #{discriminator_forward.3} parent=5 // pred_fallthru
      _
    %p124 = scmp.lt.s32.totalorder %s9, 2
    // Predicated region
    $region21: #{discriminator_forward.3} parent=5 // pred_check
      %p125 = pneg %p124
    $region22: #{discriminator_forward.3} parent=5 // pred_check_branch
      %127 = sbr.rel (%p125) target = $region24
    $region23: #{discriminator_forward.3} parent=5 // pred_region
      // Predicated region
      $region25: #{discriminator_forward.3} parent=23 // pred_check
        %p128 = pneg %p29
      $region26: #{discriminator_forward.3} parent=23 // pred_check_branch
        %130 = sbr.rel (%p128) target = $region28
      $region27: #{discriminator_forward.3} parent=23 // pred_region
        %p131 = scmp.lt.s32.totalorder %s9, 1
        %s132 = scalar_select %p131, %s9, 1
        %s133 = smul.addr %s132, 14
        %s134 = smul.addr %s133, 4
        %s135 = scalar_lea.vmem %s0, %s134
      $region28: #{discriminator_forward.3} parent=23 // pred_fallthru
        _
    $region24: #{discriminator_forward.3} parent=5 // pred_fallthru
      _
    %p136 = scmp.le.s32.totalorder 1, %s9
    %p137 = scmp.lt.s32.totalorder %s9, 3
    %p138 = pnand %p136, %p137
    %p139 = pneg %p138
    // Predicated region
    $region29: #{discriminator_forward.3} parent=5 // pred_check
      _
    $region30: #{discriminator_forward.3} parent=5 // pred_check_branch
      %141 = sbr.rel (%p138) target = $region32
    $region31: #{discriminator_forward.3} parent=5 // pred_region
      %s142 = ssub.s32 %s9, 1
      %p143 = scmp.lt.s32.totalorder %s14, 1
      %s144 = scalar_select %p143, %s14, 1
      %s145 = smul.addr %s144, 14
      %s146 = smul.addr %s145, 4
      %s147 = scalar_lea.vmem %s0, %s146
      %p148 = pneg %p35
      %p149 = pneg %p32
      %p150 = pneg %p56
      %p151 = pneg %p53
      %p152 = pneg %p77
      %p153 = pneg %p74
      %p154 = pneg %p103
      %p155 = pneg %p100
      %p156 = scmp.lt.s32.totalorder %s14, 1
      %s157 = scalar_select %p156, %s14, 1
      %s158 = smul.addr %s157, 10
      %s159 = smul.addr %s158, 4
      %s160 = scalar_lea.vmem %s3, %s159
      %p161 = scmp.lt.s32.totalorder %s14, 1
      %s162 = scalar_select %p161, %s14, 1
      %s163 = smul.addr %s162, 14
      %s164 = smul.addr %s163, 4
      %s165 = scalar_lea.vmem %s0, %s164
      %p166 = scmp.lt.s32.totalorder %s14, 1
      %s167 = scalar_select %p166, %s14, 1
      %s168 = smul.addr %s167, 10
      %s169 = smul.addr %s168, 4
      %s170 = scalar_lea.vmem %s3, %s169
      %vm172 = vcmask 64512
      %173 = vst.msk [vmem:[#allocation2] sm:$0xff] %vm172, 0.0
      %174 = vst.msk [vmem:[#allocation2 + $0x8] sm:$0xff] %vm172, 0.0
      %175 = vst.msk [vmem:[#allocation2 + $0x10] sm:$0xff] %vm172, 0.0
      %176 = vst.msk [vmem:[#allocation2 + $0x18] sm:$0xff] %vm172, 0.0
      %177 = vst.msk [vmem:[#allocation2 + $0x20] sm:$0xff] %vm172, 0.0
      %178 = vst.msk [vmem:[#allocation2 + $0x28] sm:$0xff] %vm172, 0.0
      %179 = vst.msk [vmem:[#allocation2 + $0x30] sm:$0xff] %vm172, 0.0
      %180 = vst.msk [vmem:[#allocation2 + $0x38] sm:$0xff] %vm172, 0.0
      %181 = vst.msk [vmem:[#allocation2 + $0x40] sm:$0xff] %vm172, 0.0
      %182 = vst.msk [vmem:[#allocation2 + $0x48] sm:$0xff] %vm172, 0.0
      %v183 = vld [vmem:[#allocation2] sm:$0xff]
      %v184 = vld [vmem:[#allocation2 + $0x8] sm:$0xff]
      %v185 = vld [vmem:[#allocation2 + $0x10] sm:$0xff]
      %v186 = vld [vmem:[#allocation2 + $0x18] sm:$0xff]
      %v187 = vld [vmem:[#allocation2 + $0x20] sm:$0xff]
      %v188 = vld [vmem:[#allocation2 + $0x28] sm:$0xff]
      %v189 = vld [vmem:[#allocation2 + $0x30] sm:$0xff]
      %v190 = vld [vmem:[#allocation2 + $0x38] sm:$0xff]
      %v191 = vld [vmem:[#allocation2 + $0x40] sm:$0xff]
      %v192 = vld [vmem:[#allocation2 + $0x48] sm:$0xff]
      %v193 = vld [vmem:[%s165] sm:$0xf]
      %v194 = vld [vmem:[%s165 + $0x4] sm:$0xf]
      %v195 = vld [vmem:[%s165 + $0x8] sm:$0xf]
      %v196 = vld [vmem:[%s165 + $0xc] sm:$0xf]
      %v197 = vld [vmem:[%s165 + $0x10] sm:$0xf]
      %v198 = vld [vmem:[%s165 + $0x14] sm:$0xf]
      %v199 = vld [vmem:[%s165 + $0x18] sm:$0xf]
      %v200 = vld [vmem:[%s165 + $0x1c] sm:$0xf]
      %v201 = vld [vmem:[%s165 + $0x20] sm:$0xf]
      %v202 = vld [vmem:[%s165 + $0x24] sm:$0xf]
      %v203 = vld [vmem:[%s1] sm:$0xf]
      %v204 = vld [vmem:[%s1 + $0x4] sm:$0x3]
      %v215 = vunpack.c.l.b16 %v193
      %v216 = vunpack.c.l.b16 %v194
      %v217 = vunpack.c.l.b16 %v195
      %v218 = vunpack.c.l.b16 %v196
      %v219 = vunpack.c.l.b16 %v197
      %v220 = vunpack.c.l.b16 %v198
      %v221 = vunpack.c.l.b16 %v199
      %v222 = vunpack.c.l.b16 %v200
      %v223 = vunpack.c.l.b16 %v201
      %v224 = vunpack.c.l.b16 %v202
      %v225 = vpack.c.b16 %v216, %v215
      %v226 = vpack.c.b16 %v218, %v217
      %v227 = vpack.c.b16 %v220, %v219
      %v228 = vpack.c.b16 %v222, %v221
      %v229 = vpack.c.b16 %v224, %v223
      %v232 = vunpack.c.l.b16 %v203
      %v233 = vunpack.c.l.b16 %v204
      %v234 = vpack.c.b16 %v233, %v232
      %vm235 = vcmask 97280
      %v237 = vsel %vm235, %v225, 0
      %v240 = vsel %vm235, %v226, 0
      %v243 = vsel %vm235, %v227, 0
      %v246 = vsel %vm235, %v228, 0
      %v249 = vsel %vm235, %v229, 0
      %vm251 = vcmask 1045504
      %v253 = vsel %vm251, %v234, 0
      %255 = vmatpush.bf16.msra.mxu0 0
      %256 = vmatpush.bf16.msra.mxu0 0
      %257 = vmatpush.bf16.msra.mxu0 0
      %258 = vmatpush.bf16.msra.mxu0 0
      %259 = vmatpush.bf16.msra.mxu0 0
      %260 = vmatpush.bf16.msra.mxu0 0
      %261 = vmatpush.bf16.msra.mxu0 0
      %262 = vmatpush.bf16.msra.mxu0 %v253
      %263 = vmatmul.bf16.gmra.mxu0 %v237
      %v264 = vpop.f32.mrf.mxu0
      %v265 = vadd.f32 0.0, %v264
      %v266 = vpop.f32.mrf.mxu0
      %v267 = vadd.f32 0.0, %v266
      %268 = vmatmul.bf16.gmra.mxu0 %v240
      %v269 = vpop.f32.mrf.mxu0
      %v270 = vadd.f32 0.0, %v269
      %v271 = vpop.f32.mrf.mxu0
      %v272 = vadd.f32 0.0, %v271
      %273 = vmatmul.bf16.gmra.mxu0 %v243
      %v274 = vpop.f32.mrf.mxu0
      %v275 = vadd.f32 0.0, %v274
      %v276 = vpop.f32.mrf.mxu0
      %v277 = vadd.f32 0.0, %v276
      %278 = vmatmul.bf16.gmra.mxu0 %v246
      %v279 = vpop.f32.mrf.mxu0
      %v280 = vadd.f32 0.0, %v279
      %v281 = vpop.f32.mrf.mxu0
      %v282 = vadd.f32 0.0, %v281
      %283 = vmatmul.bf16.gmra.mxu0 %v249
      %v284 = vpop.f32.mrf.mxu0
      %v285 = vadd.f32 0.0, %v284
      %v286 = vpop.f32.mrf.mxu0
      %v287 = vadd.f32 0.0, %v286
      %288 = vdwg.mxu0
      %v289 = vadd.f32 %v183, %v265
      %v290 = vadd.f32 %v184, %v267
      %v291 = vadd.f32 %v185, %v270
      %v292 = vadd.f32 %v186, %v272
      %v293 = vadd.f32 %v187, %v275
      %v294 = vadd.f32 %v188, %v277
      %v295 = vadd.f32 %v189, %v280
      %v296 = vadd.f32 %v190, %v282
      %v297 = vadd.f32 %v191, %v285
      %v298 = vadd.f32 %v192, %v287
      %299 = vst.msk [vmem:[#allocation2] sm:$0xff] %vm172, %v289
      %300 = vst.msk [vmem:[#allocation2 + $0x8] sm:$0xff] %vm172, %v290
      %301 = vst.msk [vmem:[#allocation2 + $0x10] sm:$0xff] %vm172, %v291
      %302 = vst.msk [vmem:[#allocation2 + $0x18] sm:$0xff] %vm172, %v292
      %303 = vst.msk [vmem:[#allocation2 + $0x20] sm:$0xff] %vm172, %v293
      %304 = vst.msk [vmem:[#allocation2 + $0x28] sm:$0xff] %vm172, %v294
      %305 = vst.msk [vmem:[#allocation2 + $0x30] sm:$0xff] %vm172, %v295
      %306 = vst.msk [vmem:[#allocation2 + $0x38] sm:$0xff] %vm172, %v296
      %307 = vst.msk [vmem:[#allocation2 + $0x40] sm:$0xff] %vm172, %v297
      %308 = vst.msk [vmem:[#allocation2 + $0x48] sm:$0xff] %vm172, %v298
      %v309 = vld [vmem:[#allocation2] sm:$0xff]
      %v310 = vld [vmem:[#allocation2 + $0x8] sm:$0xff]
      %v311 = vld [vmem:[#allocation2 + $0x10] sm:$0xff]
      %v312 = vld [vmem:[#allocation2 + $0x18] sm:$0xff]
      %v313 = vld [vmem:[#allocation2 + $0x20] sm:$0xff]
      %v314 = vld [vmem:[#allocation2 + $0x28] sm:$0xff]
      %v315 = vld [vmem:[#allocation2 + $0x30] sm:$0xff]
      %v316 = vld [vmem:[#allocation2 + $0x38] sm:$0xff]
      %v317 = vld [vmem:[#allocation2 + $0x40] sm:$0xff]
      %v318 = vld [vmem:[#allocation2 + $0x48] sm:$0xff]
      %v319 = vld [vmem:[%s165] sm:$0xf]
      %v320 = vld [vmem:[%s165 + $0x4] sm:$0xf]
      %v321 = vld [vmem:[%s165 + $0x8] sm:$0xf]
      %v322 = vld [vmem:[%s165 + $0xc] sm:$0xf]
      %v323 = vld [vmem:[%s165 + $0x10] sm:$0xf]
      %v324 = vld [vmem:[%s165 + $0x14] sm:$0xf]
      %v325 = vld [vmem:[%s165 + $0x18] sm:$0xf]
      %v326 = vld [vmem:[%s165 + $0x1c] sm:$0xf]
      %v327 = vld [vmem:[%s165 + $0x20] sm:$0xf]
      %v328 = vld [vmem:[%s165 + $0x24] sm:$0xf]
      %v329 = vld [vmem:[%s165 + $0x28] sm:$0x1]
      %s330 = scalar_lea.vmem %s1, 8
      %v331 = vld [vmem:[%s330] sm:$0xf]
      %v332 = vld [vmem:[%s330 + $0x4] sm:$0x3]
      %v344 = vunpack.c.l.b16 %v319
      %v345 = vunpack.c.l.b16 %v320
      %v346 = vunpack.c.l.b16 %v321
      %v347 = vunpack.c.l.b16 %v322
      %v348 = vunpack.c.l.b16 %v323
      %v349 = vunpack.c.l.b16 %v324
      %v350 = vunpack.c.l.b16 %v325
      %v351 = vunpack.c.l.b16 %v326
      %v352 = vunpack.c.l.b16 %v327
      %v353 = vunpack.c.l.b16 %v328
      %v354 = vunpack.c.l.b16 %v329
      %v355 = vpack.c.b16 %v345, %v344
      %v356 = vpack.c.b16 %v347, %v346
      %v357 = vpack.c.b16 %v349, %v348
      %v358 = vpack.c.b16 %v351, %v350
      %v359 = vpack.c.b16 %v353, %v352
      %v360 = vpack.c.b16 %v354, %v354
      %vm361 = vsmask.f32 7424
      %v363 = vshrl.u32 %v355, 16
      %v365 = vshll.u32 %v355, 16
      %v367 = vrot.slane %v365, 1
      %v368 = vor.u32 %v363, %v367
      %v370 = vshll.u32 %v356, 16
      %v372 = vrot.slane %v370, 1
      %v373 = vsel %vm361, %v368, %v372
      %v374 = vshrl.u32 %v356, 16
      %v376 = vor.u32 %v374, %v372
      %v378 = vshll.u32 %v357, 16
      %v380 = vrot.slane %v378, 1
      %v381 = vsel %vm361, %v376, %v380
      %v382 = vshrl.u32 %v357, 16
      %v384 = vor.u32 %v382, %v380
      %v386 = vshll.u32 %v358, 16
      %v388 = vrot.slane %v386, 1
      %v389 = vsel %vm361, %v384, %v388
      %v390 = vshrl.u32 %v358, 16
      %v392 = vor.u32 %v390, %v388
      %v394 = vshll.u32 %v359, 16
      %v396 = vrot.slane %v394, 1
      %v397 = vsel %vm361, %v392, %v396
      %v398 = vshrl.u32 %v359, 16
      %v400 = vor.u32 %v398, %v396
      %v402 = vshll.u32 %v360, 16
      %v404 = vrot.slane %v402, 1
      %v405 = vsel %vm361, %v400, %v404
      %v408 = vunpack.c.l.b16 %v331
      %v409 = vunpack.c.l.b16 %v332
      %v410 = vpack.c.b16 %v409, %v408
      %v412 = vsel %vm235, %v373, 0
      %v415 = vsel %vm235, %v381, 0
      %v418 = vsel %vm235, %v389, 0
      %v421 = vsel %vm235, %v397, 0
      %v424 = vsel %vm235, %v405, 0
      %v427 = vsel %vm251, %v410, 0
      %429 = vmatpush.bf16.msra.mxu0 0
      %430 = vmatpush.bf16.msra.mxu0 0
      %431 = vmatpush.bf16.msra.mxu0 0
      %432 = vmatpush.bf16.msra.mxu0 0
      %433 = vmatpush.bf16.msra.mxu0 0
      %434 = vmatpush.bf16.msra.mxu0 0
      %435 = vmatpush.bf16.msra.mxu0 0
      %436 = vmatpush.bf16.msra.mxu0 %v427
      %437 = vmatmul.bf16.gmra.mxu0 %v412
      %v438 = vpop.f32.mrf.mxu0
      %v439 = vadd.f32 0.0, %v438
      %v440 = vpop.f32.mrf.mxu0
      %v441 = vadd.f32 0.0, %v440
      %442 = vmatmul.bf16.gmra.mxu0 %v415
      %v443 = vpop.f32.mrf.mxu0
      %v444 = vadd.f32 0.0, %v443
      %v445 = vpop.f32.mrf.mxu0
      %v446 = vadd.f32 0.0, %v445
      %447 = vmatmul.bf16.gmra.mxu0 %v418
      %v448 = vpop.f32.mrf.mxu0
      %v449 = vadd.f32 0.0, %v448
      %v450 = vpop.f32.mrf.mxu0
      %v451 = vadd.f32 0.0, %v450
      %452 = vmatmul.bf16.gmra.mxu0 %v421
      %v453 = vpop.f32.mrf.mxu0
      %v454 = vadd.f32 0.0, %v453
      %v455 = vpop.f32.mrf.mxu0
      %v456 = vadd.f32 0.0, %v455
      %457 = vmatmul.bf16.gmra.mxu0 %v424
      %v458 = vpop.f32.mrf.mxu0
      %v459 = vadd.f32 0.0, %v458
      %v460 = vpop.f32.mrf.mxu0
      %v461 = vadd.f32 0.0, %v460
      %462 = vdwg.mxu0
      %v463 = vadd.f32 %v309, %v439
      %v464 = vadd.f32 %v310, %v441
      %v465 = vadd.f32 %v311, %v444
      %v466 = vadd.f32 %v312, %v446
      %v467 = vadd.f32 %v313, %v449
      %v468 = vadd.f32 %v314, %v451
      %v469 = vadd.f32 %v315, %v454
      %v470 = vadd.f32 %v316, %v456
      %v471 = vadd.f32 %v317, %v459
      %v472 = vadd.f32 %v318, %v461
      %473 = vst.msk [vmem:[#allocation2] sm:$0xff] %vm172, %v463
      %474 = vst.msk [vmem:[#allocation2 + $0x8] sm:$0xff] %vm172, %v464
      %475 = vst.msk [vmem:[#allocation2 + $0x10] sm:$0xff] %vm172, %v465
      %476 = vst.msk [vmem:[#allocation2 + $0x18] sm:$0xff] %vm172, %v466
      %477 = vst.msk [vmem:[#allocation2 + $0x20] sm:$0xff] %vm172, %v467
      %478 = vst.msk [vmem:[#allocation2 + $0x28] sm:$0xff] %vm172, %v468
      %479 = vst.msk [vmem:[#allocation2 + $0x30] sm:$0xff] %vm172, %v469
      %480 = vst.msk [vmem:[#allocation2 + $0x38] sm:$0xff] %vm172, %v470
      %481 = vst.msk [vmem:[#allocation2 + $0x40] sm:$0xff] %vm172, %v471
      %482 = vst.msk [vmem:[#allocation2 + $0x48] sm:$0xff] %vm172, %v472
      %v483 = vld [vmem:[#allocation2] sm:$0xff]
      %v484 = vld [vmem:[#allocation2 + $0x8] sm:$0xff]
      %v485 = vld [vmem:[#allocation2 + $0x10] sm:$0xff]
      %v486 = vld [vmem:[#allocation2 + $0x18] sm:$0xff]
      %v487 = vld [vmem:[#allocation2 + $0x20] sm:$0xff]
      %v488 = vld [vmem:[#allocation2 + $0x28] sm:$0xff]
      %v489 = vld [vmem:[#allocation2 + $0x30] sm:$0xff]
      %v490 = vld [vmem:[#allocation2 + $0x38] sm:$0xff]
      %v491 = vld [vmem:[#allocation2 + $0x40] sm:$0xff]
      %v492 = vld [vmem:[#allocation2 + $0x48] sm:$0xff]
      %v493 = vld [vmem:[%s165] sm:$0xe]
      %v494 = vld [vmem:[%s165 + $0x4] sm:$0xf]
      %v495 = vld [vmem:[%s165 + $0x8] sm:$0xf]
      %v496 = vld [vmem:[%s165 + $0xc] sm:$0xf]
      %v497 = vld [vmem:[%s165 + $0x10] sm:$0xf]
      %v498 = vld [vmem:[%s165 + $0x14] sm:$0xf]
      %v499 = vld [vmem:[%s165 + $0x18] sm:$0xf]
      %v500 = vld [vmem:[%s165 + $0x1c] sm:$0xf]
      %v501 = vld [vmem:[%s165 + $0x20] sm:$0xf]
      %v502 = vld [vmem:[%s165 + $0x24] sm:$0xf]
      %v503 = vld [vmem:[%s165 + $0x28] sm:$0x1]
      %s504 = scalar_lea.vmem %s1, 16
      %v505 = vld [vmem:[%s504] sm:$0xf]
      %v506 = vld [vmem:[%s504 + $0x4] sm:$0x3]
      %v518 = vunpack.c.l.b16 %v493
      %v519 = vunpack.c.l.b16 %v494
      %v520 = vunpack.c.l.b16 %v495
      %v521 = vunpack.c.l.b16 %v496
      %v522 = vunpack.c.l.b16 %v497
      %v523 = vunpack.c.l.b16 %v498
      %v524 = vunpack.c.l.b16 %v499
      %v525 = vunpack.c.l.b16 %v500
      %v526 = vunpack.c.l.b16 %v501
      %v527 = vunpack.c.l.b16 %v502
      %v528 = vunpack.c.l.b16 %v503
      %v529 = vpack.c.b16 %v519, %v518
      %v530 = vpack.c.b16 %v521, %v520
      %v531 = vpack.c.b16 %v523, %v522
      %v532 = vpack.c.b16 %v525, %v524
      %v533 = vpack.c.b16 %v527, %v526
      %v534 = vpack.c.b16 %v528, %v528
      %vm535 = vcmask 1046528
      %v536 = vrot.slane %v529, 1
      %v537 = vrot.slane %v530, 1
      %v538 = vsel %vm535, %v536, %v537
      %v539 = vrot.slane %v531, 1
      %v540 = vsel %vm535, %v537, %v539
      %v541 = vrot.slane %v532, 1
      %v542 = vsel %vm535, %v539, %v541
      %v543 = vrot.slane %v533, 1
      %v544 = vsel %vm535, %v541, %v543
      %v545 = vrot.slane %v534, 1
      %v546 = vsel %vm535, %v543, %v545
      %v549 = vunpack.c.l.b16 %v505
      %v550 = vunpack.c.l.b16 %v506
      %v551 = vpack.c.b16 %v550, %v549
      %v553 = vsel %vm235, %v538, 0
      %v556 = vsel %vm235, %v540, 0
      %v559 = vsel %vm235, %v542, 0
      %v562 = vsel %vm235, %v544, 0
      %v565 = vsel %vm235, %v546, 0
      %v568 = vsel %vm251, %v551, 0
      %570 = vmatpush.bf16.msra.mxu0 0
      %571 = vmatpush.bf16.msra.mxu0 0
      %572 = vmatpush.bf16.msra.mxu0 0
      %573 = vmatpush.bf16.msra.mxu0 0
      %574 = vmatpush.bf16.msra.mxu0 0
      %575 = vmatpush.bf16.msra.mxu0 0
      %576 = vmatpush.bf16.msra.mxu0 0
      %577 = vmatpush.bf16.msra.mxu0 %v568
      %578 = vmatmul.bf16.gmra.mxu0 %v553
      %v579 = vpop.f32.mrf.mxu0
      %v580 = vadd.f32 0.0, %v579
      %v581 = vpop.f32.mrf.mxu0
      %v582 = vadd.f32 0.0, %v581
      %583 = vmatmul.bf16.gmra.mxu0 %v556
      %v584 = vpop.f32.mrf.mxu0
      %v585 = vadd.f32 0.0, %v584
      %v586 = vpop.f32.mrf.mxu0
      %v587 = vadd.f32 0.0, %v586
      %588 = vmatmul.bf16.gmra.mxu0 %v559
      %v589 = vpop.f32.mrf.mxu0
      %v590 = vadd.f32 0.0, %v589
      %v591 = vpop.f32.mrf.mxu0
      %v592 = vadd.f32 0.0, %v591
      %593 = vmatmul.bf16.gmra.mxu0 %v562
      %v594 = vpop.f32.mrf.mxu0
      %v595 = vadd.f32 0.0, %v594
      %v596 = vpop.f32.mrf.mxu0
      %v597 = vadd.f32 0.0, %v596
      %598 = vmatmul.bf16.gmra.mxu0 %v565
      %v599 = vpop.f32.mrf.mxu0
      %v600 = vadd.f32 0.0, %v599
      %v601 = vpop.f32.mrf.mxu0
      %v602 = vadd.f32 0.0, %v601
      %603 = vdwg.mxu0
      %v604 = vadd.f32 %v483, %v580
      %v605 = vadd.f32 %v484, %v582
      %v606 = vadd.f32 %v485, %v585
      %v607 = vadd.f32 %v486, %v587
      %v608 = vadd.f32 %v487, %v590
      %v609 = vadd.f32 %v488, %v592
      %v610 = vadd.f32 %v489, %v595
      %v611 = vadd.f32 %v490, %v597
      %v612 = vadd.f32 %v491, %v600
      %v613 = vadd.f32 %v492, %v602
      %614 = vst.msk [vmem:[#allocation2] sm:$0xff] %vm172, %v604
      %615 = vst.msk [vmem:[#allocation2 + $0x8] sm:$0xff] %vm172, %v605
      %616 = vst.msk [vmem:[#allocation2 + $0x10] sm:$0xff] %vm172, %v606
      %617 = vst.msk [vmem:[#allocation2 + $0x18] sm:$0xff] %vm172, %v607
      %618 = vst.msk [vmem:[#allocation2 + $0x20] sm:$0xff] %vm172, %v608
      %619 = vst.msk [vmem:[#allocation2 + $0x28] sm:$0xff] %vm172, %v609
      %620 = vst.msk [vmem:[#allocation2 + $0x30] sm:$0xff] %vm172, %v610
      %621 = vst.msk [vmem:[#allocation2 + $0x38] sm:$0xff] %vm172, %v611
      %622 = vst.msk [vmem:[#allocation2 + $0x40] sm:$0xff] %vm172, %v612
      %623 = vst.msk [vmem:[#allocation2 + $0x48] sm:$0xff] %vm172, %v613
      %v624 = vld [vmem:[#allocation2] sm:$0xff]
      %v625 = vld [vmem:[#allocation2 + $0x8] sm:$0xff]
      %v626 = vld [vmem:[#allocation2 + $0x10] sm:$0xff]
      %v627 = vld [vmem:[#allocation2 + $0x18] sm:$0xff]
      %v628 = vld [vmem:[#allocation2 + $0x20] sm:$0xff]
      %v629 = vld [vmem:[#allocation2 + $0x28] sm:$0xff]
      %v630 = vld [vmem:[#allocation2 + $0x30] sm:$0xff]
      %v631 = vld [vmem:[#allocation2 + $0x38] sm:$0xff]
      %v632 = vld [vmem:[#allocation2 + $0x40] sm:$0xff]
      %v633 = vld [vmem:[#allocation2 + $0x48] sm:$0xff]
      %v634 = vld [vmem:[%s165 + $0x4] sm:$0xe]
      %v635 = vld [vmem:[%s165 + $0x8] sm:$0xf]
      %v636 = vld [vmem:[%s165 + $0xc] sm:$0xf]
      %v637 = vld [vmem:[%s165 + $0x10] sm:$0xf]
      %v638 = vld [vmem:[%s165 + $0x14] sm:$0xf]
      %v639 = vld [vmem:[%s165 + $0x18] sm:$0xf]
      %v640 = vld [vmem:[%s165 + $0x1c] sm:$0xf]
      %v641 = vld [vmem:[%s165 + $0x20] sm:$0xf]
      %v642 = vld [vmem:[%s165 + $0x24] sm:$0xf]
      %v643 = vld [vmem:[%s165 + $0x28] sm:$0xf]
      %v644 = vld [vmem:[%s165 + $0x2c] sm:$0x1]
      %s645 = scalar_lea.vmem %s1, 24
      %v646 = vld [vmem:[%s645] sm:$0xf]
      %v647 = vld [vmem:[%s645 + $0x4] sm:$0x3]
      %v659 = vunpack.c.l.b16 %v634
      %v660 = vunpack.c.l.b16 %v635
      %v661 = vunpack.c.l.b16 %v636
      %v662 = vunpack.c.l.b16 %v637
      %v663 = vunpack.c.l.b16 %v638
      %v664 = vunpack.c.l.b16 %v639
      %v665 = vunpack.c.l.b16 %v640
      %v666 = vunpack.c.l.b16 %v641
      %v667 = vunpack.c.l.b16 %v642
      %v668 = vunpack.c.l.b16 %v643
      %v669 = vunpack.c.l.b16 %v644
      %v670 = vpack.c.b16 %v660, %v659
      %v671 = vpack.c.b16 %v662, %v661
      %v672 = vpack.c.b16 %v664, %v663
      %v673 = vpack.c.b16 %v666, %v665
      %v674 = vpack.c.b16 %v668, %v667
      %v675 = vpack.c.b16 %v669, %v669
      %v676 = vrot.slane %v670, 1
      %v677 = vrot.slane %v671, 1
      %v678 = vsel %vm535, %v676, %v677
      %v679 = vrot.slane %v672, 1
      %v680 = vsel %vm535, %v677, %v679
      %v681 = vrot.slane %v673, 1
      %v682 = vsel %vm535, %v679, %v681
      %v683 = vrot.slane %v674, 1
      %v684 = vsel %vm535, %v681, %v683
      %v685 = vrot.slane %v675, 1
      %v686 = vsel %vm535, %v683, %v685
      %v689 = vunpack.c.l.b16 %v646
      %v690 = vunpack.c.l.b16 %v647
      %v691 = vpack.c.b16 %v690, %v689
      %v693 = vsel %vm235, %v678, 0
      %v696 = vsel %vm235, %v680, 0
      %v699 = vsel %vm235, %v682, 0
      %v702 = vsel %vm235, %v684, 0
      %v705 = vsel %vm235, %v686, 0
      %v708 = vsel %vm251, %v691, 0
      %710 = vmatpush.bf16.msra.mxu0 0
      %711 = vmatpush.bf16.msra.mxu0 0
      %712 = vmatpush.bf16.msra.mxu0 0
      %713 = vmatpush.bf16.msra.mxu0 0
      %714 = vmatpush.bf16.msra.mxu0 0
      %715 = vmatpush.bf16.msra.mxu0 0
      %716 = vmatpush.bf16.msra.mxu0 0
      %717 = vmatpush.bf16.msra.mxu0 %v708
      %718 = vmatmul.bf16.gmra.mxu0 %v693
      %v719 = vpop.f32.mrf.mxu0
      %v720 = vadd.f32 0.0, %v719
      %v721 = vpop.f32.mrf.mxu0
      %v722 = vadd.f32 0.0, %v721
      %723 = vmatmul.bf16.gmra.mxu0 %v696
      %v724 = vpop.f32.mrf.mxu0
      %v725 = vadd.f32 0.0, %v724
      %v726 = vpop.f32.mrf.mxu0
      %v727 = vadd.f32 0.0, %v726
      %728 = vmatmul.bf16.gmra.mxu0 %v699
      %v729 = vpop.f32.mrf.mxu0
      %v730 = vadd.f32 0.0, %v729
      %v731 = vpop.f32.mrf.mxu0
      %v732 = vadd.f32 0.0, %v731
      %733 = vmatmul.bf16.gmra.mxu0 %v702
      %v734 = vpop.f32.mrf.mxu0
      %v735 = vadd.f32 0.0, %v734
      %v736 = vpop.f32.mrf.mxu0
      %v737 = vadd.f32 0.0, %v736
      %738 = vmatmul.bf16.gmra.mxu0 %v705
      %v739 = vpop.f32.mrf.mxu0
      %v740 = vadd.f32 0.0, %v739
      %v741 = vpop.f32.mrf.mxu0
      %v742 = vadd.f32 0.0, %v741
      %743 = vdwg.mxu0
      %v744 = vadd.f32 %v624, %v720
      %v745 = vadd.f32 %v625, %v722
      %v746 = vadd.f32 %v626, %v725
      %v747 = vadd.f32 %v627, %v727
      %v748 = vadd.f32 %v628, %v730
      %v749 = vadd.f32 %v629, %v732
      %v750 = vadd.f32 %v630, %v735
      %v751 = vadd.f32 %v631, %v737
      %v752 = vadd.f32 %v632, %v740
      %v753 = vadd.f32 %v633, %v742
      %754 = vst.msk [vmem:[#allocation2] sm:$0xff] %vm172, %v744
      %755 = vst.msk [vmem:[#allocation2 + $0x8] sm:$0xff] %vm172, %v745
      %756 = vst.msk [vmem:[#allocation2 + $0x10] sm:$0xff] %vm172, %v746
      %757 = vst.msk [vmem:[#allocation2 + $0x18] sm:$0xff] %vm172, %v747
      %758 = vst.msk [vmem:[#allocation2 + $0x20] sm:$0xff] %vm172, %v748
      %759 = vst.msk [vmem:[#allocation2 + $0x28] sm:$0xff] %vm172, %v749
      %760 = vst.msk [vmem:[#allocation2 + $0x30] sm:$0xff] %vm172, %v750
      %761 = vst.msk [vmem:[#allocation2 + $0x38] sm:$0xff] %vm172, %v751
      %762 = vst.msk [vmem:[#allocation2 + $0x40] sm:$0xff] %vm172, %v752
      %763 = vst.msk [vmem:[#allocation2 + $0x48] sm:$0xff] %vm172, %v753
      %v764 = vld [vmem:[#allocation2] sm:$0xff]
      %v765 = vld [vmem:[#allocation2 + $0x8] sm:$0xff]
      %v766 = vld [vmem:[#allocation2 + $0x10] sm:$0xff]
      %v767 = vld [vmem:[#allocation2 + $0x18] sm:$0xff]
      %v768 = vld [vmem:[#allocation2 + $0x20] sm:$0xff]
      %v769 = vld [vmem:[#allocation2 + $0x28] sm:$0xff]
      %v770 = vld [vmem:[#allocation2 + $0x30] sm:$0xff]
      %v771 = vld [vmem:[#allocation2 + $0x38] sm:$0xff]
      %v772 = vld [vmem:[#allocation2 + $0x40] sm:$0xff]
      %v773 = vld [vmem:[#allocation2 + $0x48] sm:$0xff]
      %v774 = vld [vmem:[%s165 + $0x4] sm:$0xe]
      %v775 = vld [vmem:[%s165 + $0x8] sm:$0xf]
      %v776 = vld [vmem:[%s165 + $0xc] sm:$0xf]
      %v777 = vld [vmem:[%s165 + $0x10] sm:$0xf]
      %v778 = vld [vmem:[%s165 + $0x14] sm:$0xf]
      %v779 = vld [vmem:[%s165 + $0x18] sm:$0xf]
      %v780 = vld [vmem:[%s165 + $0x1c] sm:$0xf]
      %v781 = vld [vmem:[%s165 + $0x20] sm:$0xf]
      %v782 = vld [vmem:[%s165 + $0x24] sm:$0xf]
      %v783 = vld [vmem:[%s165 + $0x28] sm:$0xf]
      %v784 = vld [vmem:[%s165 + $0x2c] sm:$0x3]
      %s785 = scalar_lea.vmem %s1, 32
      %v786 = vld [vmem:[%s785] sm:$0xf]
      %v787 = vld [vmem:[%s785 + $0x4] sm:$0x3]
      %v799 = vunpack.c.l.b16 %v774
      %v800 = vunpack.c.l.b16 %v775
      %v801 = vunpack.c.l.b16 %v776
      %v802 = vunpack.c.l.b16 %v777
      %v803 = vunpack.c.l.b16 %v778
      %v804 = vunpack.c.l.b16 %v779
      %v805 = vunpack.c.l.b16 %v780
      %v806 = vunpack.c.l.b16 %v781
      %v807 = vunpack.c.l.b16 %v782
      %v808 = vunpack.c.l.b16 %v783
      %v809 = vunpack.c.l.b16 %v784
      %v810 = vpack.c.b16 %v800, %v799
      %v811 = vpack.c.b16 %v802, %v801
      %v812 = vpack.c.b16 %v804, %v803
      %v813 = vpack.c.b16 %v806, %v805
      %v814 = vpack.c.b16 %v808, %v807
      %v815 = vpack.c.b16 %v809, %v809
      %vm816 = vsmask.f32 6400
      %v818 = vshrl.u32 %v810, 16
      %v820 = vrot.slane %v818, 1
      %v821 = vshll.u32 %v810, 16
      %v823 = vrot.slane %v821, 2
      %v824 = vor.u32 %v820, %v823
      %v826 = vshrl.u32 %v811, 16
      %v828 = vrot.slane %v826, 1
      %v829 = vshll.u32 %v811, 16
      %v831 = vrot.slane %v829, 2
      %v832 = vor.u32 %v828, %v831
      %v833 = vsel %vm816, %v824, %v832
      %v835 = vshrl.u32 %v812, 16
      %v837 = vrot.slane %v835, 1
      %v838 = vshll.u32 %v812, 16
      %v840 = vrot.slane %v838, 2
      %v841 = vor.u32 %v837, %v840
      %v842 = vsel %vm816, %v832, %v841
      %v844 = vshrl.u32 %v813, 16
      %v846 = vrot.slane %v844, 1
      %v847 = vshll.u32 %v813, 16
      %v849 = vrot.slane %v847, 2
      %v850 = vor.u32 %v846, %v849
      %v851 = vsel %vm816, %v841, %v850
      %v853 = vshrl.u32 %v814, 16
      %v855 = vrot.slane %v853, 1
      %v856 = vshll.u32 %v814, 16
      %v858 = vrot.slane %v856, 2
      %v859 = vor.u32 %v855, %v858
      %v860 = vsel %vm816, %v850, %v859
      %v862 = vshrl.u32 %v815, 16
      %v864 = vrot.slane %v862, 1
      %v865 = vshll.u32 %v815, 16
      %v867 = vrot.slane %v865, 2
      %v868 = vor.u32 %v864, %v867
      %v869 = vsel %vm816, %v859, %v868
      %v872 = vunpack.c.l.b16 %v786
      %v873 = vunpack.c.l.b16 %v787
      %v874 = vpack.c.b16 %v873, %v872
      %v876 = vsel %vm235, %v833, 0
      %v879 = vsel %vm235, %v842, 0
      %v882 = vsel %vm235, %v851, 0
      %v885 = vsel %vm235, %v860, 0
      %v888 = vsel %vm235, %v869, 0
      %v891 = vsel %vm251, %v874, 0
      %893 = vmatpush.bf16.msra.mxu0 0
      %894 = vmatpush.bf16.msra.mxu0 0
      %895 = vmatpush.bf16.msra.mxu0 0
      %896 = vmatpush.bf16.msra.mxu0 0
      %897 = vmatpush.bf16.msra.mxu0 0
      %898 = vmatpush.bf16.msra.mxu0 0
      %899 = vmatpush.bf16.msra.mxu0 0
      %900 = vmatpush.bf16.msra.mxu0 %v891
      %901 = vmatmul.bf16.gmra.mxu0 %v876
      %v902 = vpop.f32.mrf.mxu0
      %v903 = vadd.f32 0.0, %v902
      %v904 = vpop.f32.mrf.mxu0
      %v905 = vadd.f32 0.0, %v904
      %906 = vmatmul.bf16.gmra.mxu0 %v879
      %v907 = vpop.f32.mrf.mxu0
      %v908 = vadd.f32 0.0, %v907
      %v909 = vpop.f32.mrf.mxu0
      %v910 = vadd.f32 0.0, %v909
      %911 = vmatmul.bf16.gmra.mxu0 %v882
      %v912 = vpop.f32.mrf.mxu0
      %v913 = vadd.f32 0.0, %v912
      %v914 = vpop.f32.mrf.mxu0
      %v915 = vadd.f32 0.0, %v914
      %916 = vmatmul.bf16.gmra.mxu0 %v885
      %v917 = vpop.f32.mrf.mxu0
      %v918 = vadd.f32 0.0, %v917
      %v919 = vpop.f32.mrf.mxu0
      %v920 = vadd.f32 0.0, %v919
      %921 = vmatmul.bf16.gmra.mxu0 %v888
      %v922 = vpop.f32.mrf.mxu0
      %v923 = vadd.f32 0.0, %v922
      %v924 = vpop.f32.mrf.mxu0
      %v925 = vadd.f32 0.0, %v924
      %926 = vdwg.mxu0
      %v927 = vadd.f32 %v764, %v903
      %v928 = vadd.f32 %v765, %v905
      %v929 = vadd.f32 %v766, %v908
      %v930 = vadd.f32 %v767, %v910
      %v931 = vadd.f32 %v768, %v913
      %v932 = vadd.f32 %v769, %v915
      %v933 = vadd.f32 %v770, %v918
      %v934 = vadd.f32 %v771, %v920
      %v935 = vadd.f32 %v772, %v923
      %v936 = vadd.f32 %v773, %v925
      %937 = vst.msk [vmem:[#allocation2] sm:$0xff] %vm172, %v927
      %938 = vst.msk [vmem:[#allocation2 + $0x8] sm:$0xff] %vm172, %v928
      %939 = vst.msk [vmem:[#allocation2 + $0x10] sm:$0xff] %vm172, %v929
      %940 = vst.msk [vmem:[#allocation2 + $0x18] sm:$0xff] %vm172, %v930
      %941 = vst.msk [vmem:[#allocation2 + $0x20] sm:$0xff] %vm172, %v931
      %942 = vst.msk [vmem:[#allocation2 + $0x28] sm:$0xff] %vm172, %v932
      %943 = vst.msk [vmem:[#allocation2 + $0x30] sm:$0xff] %vm172, %v933
      %944 = vst.msk [vmem:[#allocation2 + $0x38] sm:$0xff] %vm172, %v934
      %945 = vst.msk [vmem:[#allocation2 + $0x40] sm:$0xff] %vm172, %v935
      %946 = vst.msk [vmem:[#allocation2 + $0x48] sm:$0xff] %vm172, %v936
      %v947 = vld [vmem:[#allocation2] sm:$0xff]
      %v948 = vld [vmem:[#allocation2 + $0x8] sm:$0xff]
      %v949 = vld [vmem:[#allocation2 + $0x10] sm:$0xff]
      %v950 = vld [vmem:[#allocation2 + $0x18] sm:$0xff]
      %v951 = vld [vmem:[#allocation2 + $0x20] sm:$0xff]
      %v952 = vld [vmem:[#allocation2 + $0x28] sm:$0xff]
      %v953 = vld [vmem:[#allocation2 + $0x30] sm:$0xff]
      %v954 = vld [vmem:[#allocation2 + $0x38] sm:$0xff]
      %v955 = vld [vmem:[#allocation2 + $0x40] sm:$0xff]
      %v956 = vld [vmem:[#allocation2 + $0x48] sm:$0xff]
      %v957 = vld [vmem:[%s165 + $0x4] sm:$0xc]
      %v958 = vld [vmem:[%s165 + $0x8] sm:$0xf]
      %v959 = vld [vmem:[%s165 + $0xc] sm:$0xf]
      %v960 = vld [vmem:[%s165 + $0x10] sm:$0xf]
      %v961 = vld [vmem:[%s165 + $0x14] sm:$0xf]
      %v962 = vld [vmem:[%s165 + $0x18] sm:$0xf]
      %v963 = vld [vmem:[%s165 + $0x1c] sm:$0xf]
      %v964 = vld [vmem:[%s165 + $0x20] sm:$0xf]
      %v965 = vld [vmem:[%s165 + $0x24] sm:$0xf]
      %v966 = vld [vmem:[%s165 + $0x28] sm:$0xf]
      %v967 = vld [vmem:[%s165 + $0x2c] sm:$0x3]
      %s968 = scalar_lea.vmem %s1, 40
      %v969 = vld [vmem:[%s968] sm:$0xf]
      %v970 = vld [vmem:[%s968 + $0x4] sm:$0x3]
      %v982 = vunpack.c.l.b16 %v957
      %v983 = vunpack.c.l.b16 %v958
      %v984 = vunpack.c.l.b16 %v959
      %v985 = vunpack.c.l.b16 %v960
      %v986 = vunpack.c.l.b16 %v961
      %v987 = vunpack.c.l.b16 %v962
      %v988 = vunpack.c.l.b16 %v963
      %v989 = vunpack.c.l.b16 %v964
      %v990 = vunpack.c.l.b16 %v965
      %v991 = vunpack.c.l.b16 %v966
      %v992 = vunpack.c.l.b16 %v967
      %v993 = vpack.c.b16 %v983, %v982
      %v994 = vpack.c.b16 %v985, %v984
      %v995 = vpack.c.b16 %v987, %v986
      %v996 = vpack.c.b16 %v989, %v988
      %v997 = vpack.c.b16 %v991, %v990
      %v998 = vpack.c.b16 %v992, %v992
      %vm999 = vcmask 1045504
      %v1000 = vrot.slane %v993, 2
      %v1001 = vrot.slane %v994, 2
      %v1002 = vsel %vm999, %v1000, %v1001
      %v1003 = vrot.slane %v995, 2
      %v1004 = vsel %vm999, %v1001, %v1003
      %v1005 = vrot.slane %v996, 2
      %v1006 = vsel %vm999, %v1003, %v1005
      %v1007 = vrot.slane %v997, 2
      %v1008 = vsel %vm999, %v1005, %v1007
      %v1009 = vrot.slane %v998, 2
      %v1010 = vsel %vm999, %v1007, %v1009
      %v1013 = vunpack.c.l.b16 %v969
      %v1014 = vunpack.c.l.b16 %v970
      %v1015 = vpack.c.b16 %v1014, %v1013
      %v1017 = vsel %vm235, %v1002, 0
      %v1020 = vsel %vm235, %v1004, 0
      %v1023 = vsel %vm235, %v1006, 0
      %v1026 = vsel %vm235, %v1008, 0
      %v1029 = vsel %vm235, %v1010, 0
      %v1032 = vsel %vm251, %v1015, 0
      %1034 = vmatpush.bf16.msra.mxu0 0
      %1035 = vmatpush.bf16.msra.mxu0 0
      %1036 = vmatpush.bf16.msra.mxu0 0
      %1037 = vmatpush.bf16.msra.mxu0 0
      %1038 = vmatpush.bf16.msra.mxu0 0
      %1039 = vmatpush.bf16.msra.mxu0 0
      %1040 = vmatpush.bf16.msra.mxu0 0
      %1041 = vmatpush.bf16.msra.mxu0 %v1032
      %1042 = vmatmul.bf16.gmra.mxu0 %v1017
      %v1043 = vpop.f32.mrf.mxu0
      %v1044 = vadd.f32 0.0, %v1043
      %v1045 = vpop.f32.mrf.mxu0
      %v1046 = vadd.f32 0.0, %v1045
      %1047 = vmatmul.bf16.gmra.mxu0 %v1020
      %v1048 = vpop.f32.mrf.mxu0
      %v1049 = vadd.f32 0.0, %v1048
      %v1050 = vpop.f32.mrf.mxu0
      %v1051 = vadd.f32 0.0, %v1050
      %1052 = vmatmul.bf16.gmra.mxu0 %v1023
      %v1053 = vpop.f32.mrf.mxu0
      %v1054 = vadd.f32 0.0, %v1053
      %v1055 = vpop.f32.mrf.mxu0
      %v1056 = vadd.f32 0.0, %v1055
      %1057 = vmatmul.bf16.gmra.mxu0 %v1026
      %v1058 = vpop.f32.mrf.mxu0
      %v1059 = vadd.f32 0.0, %v1058
      %v1060 = vpop.f32.mrf.mxu0
      %v1061 = vadd.f32 0.0, %v1060
      %1062 = vmatmul.bf16.gmra.mxu0 %v1029
      %v1063 = vpop.f32.mrf.mxu0
      %v1064 = vadd.f32 0.0, %v1063
      %v1065 = vpop.f32.mrf.mxu0
      %v1066 = vadd.f32 0.0, %v1065
      %1067 = vdwg.mxu0
      %v1068 = vadd.f32 %v947, %v1044
      %v1069 = vadd.f32 %v948, %v1046
      %v1070 = vadd.f32 %v949, %v1049
      %v1071 = vadd.f32 %v950, %v1051
      %v1072 = vadd.f32 %v951, %v1054
      %v1073 = vadd.f32 %v952, %v1056
      %v1074 = vadd.f32 %v953, %v1059
      %v1075 = vadd.f32 %v954, %v1061
      %v1076 = vadd.f32 %v955, %v1064
      %v1077 = vadd.f32 %v956, %v1066
      %1078 = vst.msk [vmem:[#allocation2] sm:$0xff] %vm172, %v1068
      %1079 = vst.msk [vmem:[#allocation2 + $0x8] sm:$0xff] %vm172, %v1069
      %1080 = vst.msk [vmem:[#allocation2 + $0x10] sm:$0xff] %vm172, %v1070
      %1081 = vst.msk [vmem:[#allocation2 + $0x18] sm:$0xff] %vm172, %v1071
      %1082 = vst.msk [vmem:[#allocation2 + $0x20] sm:$0xff] %vm172, %v1072
      %1083 = vst.msk [vmem:[#allocation2 + $0x28] sm:$0xff] %vm172, %v1073
      %1084 = vst.msk [vmem:[#allocation2 + $0x30] sm:$0xff] %vm172, %v1074
      %1085 = vst.msk [vmem:[#allocation2 + $0x38] sm:$0xff] %vm172, %v1075
      %1086 = vst.msk [vmem:[#allocation2 + $0x40] sm:$0xff] %vm172, %v1076
      %1087 = vst.msk [vmem:[#allocation2 + $0x48] sm:$0xff] %vm172, %v1077
      %v1088 = vld [vmem:[#allocation2] sm:$0xff]
      %v1089 = vld [vmem:[#allocation2 + $0x8] sm:$0xff]
      %v1090 = vld [vmem:[#allocation2 + $0x10] sm:$0xff]
      %v1091 = vld [vmem:[#allocation2 + $0x18] sm:$0xff]
      %v1092 = vld [vmem:[#allocation2 + $0x20] sm:$0xff]
      %v1093 = vld [vmem:[#allocation2 + $0x28] sm:$0xff]
      %v1094 = vld [vmem:[#allocation2 + $0x30] sm:$0xff]
      %v1095 = vld [vmem:[#allocation2 + $0x38] sm:$0xff]
      %v1096 = vld [vmem:[#allocation2 + $0x40] sm:$0xff]
      %v1097 = vld [vmem:[#allocation2 + $0x48] sm:$0xff]
      %v1098 = vld [vmem:[%s165 + $0x8] sm:$0xc]
      %v1099 = vld [vmem:[%s165 + $0xc] sm:$0xf]
      %v1100 = vld [vmem:[%s165 + $0x10] sm:$0xf]
      %v1101 = vld [vmem:[%s165 + $0x14] sm:$0xf]
      %v1102 = vld [vmem:[%s165 + $0x18] sm:$0xf]
      %v1103 = vld [vmem:[%s165 + $0x1c] sm:$0xf]
      %v1104 = vld [vmem:[%s165 + $0x20] sm:$0xf]
      %v1105 = vld [vmem:[%s165 + $0x24] sm:$0xf]
      %v1106 = vld [vmem:[%s165 + $0x28] sm:$0xf]
      %v1107 = vld [vmem:[%s165 + $0x2c] sm:$0xf]
      %v1108 = vld [vmem:[%s165 + $0x30] sm:$0x3]
      %s1109 = scalar_lea.vmem %s1, 48
      %v1110 = vld [vmem:[%s1109] sm:$0xf]
      %v1111 = vld [vmem:[%s1109 + $0x4] sm:$0x3]
      %v1123 = vunpack.c.l.b16 %v1098
      %v1124 = vunpack.c.l.b16 %v1099
      %v1125 = vunpack.c.l.b16 %v1100
      %v1126 = vunpack.c.l.b16 %v1101
      %v1127 = vunpack.c.l.b16 %v1102
      %v1128 = vunpack.c.l.b16 %v1103
      %v1129 = vunpack.c.l.b16 %v1104
      %v1130 = vunpack.c.l.b16 %v1105
      %v1131 = vunpack.c.l.b16 %v1106
      %v1132 = vunpack.c.l.b16 %v1107
      %v1133 = vunpack.c.l.b16 %v1108
      %v1134 = vpack.c.b16 %v1124, %v1123
      %v1135 = vpack.c.b16 %v1126, %v1125
      %v1136 = vpack.c.b16 %v1128, %v1127
      %v1137 = vpack.c.b16 %v1130, %v1129
      %v1138 = vpack.c.b16 %v1132, %v1131
      %v1139 = vpack.c.b16 %v1133, %v1133
      %v1140 = vrot.slane %v1134, 2
      %v1141 = vrot.slane %v1135, 2
      %v1142 = vsel %vm999, %v1140, %v1141
      %v1143 = vrot.slane %v1136, 2
      %v1144 = vsel %vm999, %v1141, %v1143
      %v1145 = vrot.slane %v1137, 2
      %v1146 = vsel %vm999, %v1143, %v1145
      %v1147 = vrot.slane %v1138, 2
      %v1148 = vsel %vm999, %v1145, %v1147
      %v1149 = vrot.slane %v1139, 2
      %v1150 = vsel %vm999, %v1147, %v1149
      %v1153 = vunpack.c.l.b16 %v1110
      %v1154 = vunpack.c.l.b16 %v1111
      %v1155 = vpack.c.b16 %v1154, %v1153
      %v1157 = vsel %vm235, %v1142, 0
      %v1160 = vsel %vm235, %v1144, 0
      %v1163 = vsel %vm235, %v1146, 0
      %v1166 = vsel %vm235, %v1148, 0
      %v1169 = vsel %vm235, %v1150, 0
      %v1172 = vsel %vm251, %v1155, 0
      %1174 = vmatpush.bf16.msra.mxu0 0
      %1175 = vmatpush.bf16.msra.mxu0 0
      %1176 = vmatpush.bf16.msra.mxu0 0
      %1177 = vmatpush.bf16.msra.mxu0 0
      %1178 = vmatpush.bf16.msra.mxu0 0
      %1179 = vmatpush.bf16.msra.mxu0 0
      %1180 = vmatpush.bf16.msra.mxu0 0
      %1181 = vmatpush.bf16.msra.mxu0 %v1172
      %1182 = vmatmul.bf16.gmra.mxu0 %v1157
      %v1183 = vpop.f32.mrf.mxu0
      %v1184 = vadd.f32 0.0, %v1183
      %v1185 = vpop.f32.mrf.mxu0
      %v1186 = vadd.f32 0.0, %v1185
      %1187 = vmatmul.bf16.gmra.mxu0 %v1160
      %v1188 = vpop.f32.mrf.mxu0
      %v1189 = vadd.f32 0.0, %v1188
      %v1190 = vpop.f32.mrf.mxu0
      %v1191 = vadd.f32 0.0, %v1190
      %1192 = vmatmul.bf16.gmra.mxu0 %v1163
      %v1193 = vpop.f32.mrf.mxu0
      %v1194 = vadd.f32 0.0, %v1193
      %v1195 = vpop.f32.mrf.mxu0
      %v1196 = vadd.f32 0.0, %v1195
      %1197 = vmatmul.bf16.gmra.mxu0 %v1166
      %v1198 = vpop.f32.mrf.mxu0
      %v1199 = vadd.f32 0.0, %v1198
      %v1200 = vpop.f32.mrf.mxu0
      %v1201 = vadd.f32 0.0, %v1200
      %1202 = vmatmul.bf16.gmra.mxu0 %v1169
      %v1203 = vpop.f32.mrf.mxu0
      %v1204 = vadd.f32 0.0, %v1203
      %v1205 = vpop.f32.mrf.mxu0
      %v1206 = vadd.f32 0.0, %v1205
      %1207 = vdwg.mxu0
      %v1208 = vadd.f32 %v1088, %v1184
      %v1209 = vadd.f32 %v1089, %v1186
      %v1210 = vadd.f32 %v1090, %v1189
      %v1211 = vadd.f32 %v1091, %v1191
      %v1212 = vadd.f32 %v1092, %v1194
      %v1213 = vadd.f32 %v1093, %v1196
      %v1214 = vadd.f32 %v1094, %v1199
      %v1215 = vadd.f32 %v1095, %v1201
      %v1216 = vadd.f32 %v1096, %v1204
      %v1217 = vadd.f32 %v1097, %v1206
      %1218 = vst.msk [vmem:[#allocation2] sm:$0xff] %vm172, %v1208
      %1219 = vst.msk [vmem:[#allocation2 + $0x8] sm:$0xff] %vm172, %v1209
      %1220 = vst.msk [vmem:[#allocation2 + $0x10] sm:$0xff] %vm172, %v1210
      %1221 = vst.msk [vmem:[#allocation2 + $0x18] sm:$0xff] %vm172, %v1211
      %1222 = vst.msk [vmem:[#allocation2 + $0x20] sm:$0xff] %vm172, %v1212
      %1223 = vst.msk [vmem:[#allocation2 + $0x28] sm:$0xff] %vm172, %v1213
      %1224 = vst.msk [vmem:[#allocation2 + $0x30] sm:$0xff] %vm172, %v1214
      %1225 = vst.msk [vmem:[#allocation2 + $0x38] sm:$0xff] %vm172, %v1215
      %1226 = vst.msk [vmem:[#allocation2 + $0x40] sm:$0xff] %vm172, %v1216
      %1227 = vst.msk [vmem:[#allocation2 + $0x48] sm:$0xff] %vm172, %v1217
      %v1228 = vld [vmem:[#allocation2] sm:$0xff]
      %v1229 = vld [vmem:[#allocation2 + $0x8] sm:$0xff]
      %v1230 = vld [vmem:[#allocation2 + $0x10] sm:$0xff]
      %v1231 = vld [vmem:[#allocation2 + $0x18] sm:$0xff]
      %v1232 = vld [vmem:[#allocation2 + $0x20] sm:$0xff]
      %v1233 = vld [vmem:[#allocation2 + $0x28] sm:$0xff]
      %v1234 = vld [vmem:[#allocation2 + $0x30] sm:$0xff]
      %v1235 = vld [vmem:[#allocation2 + $0x38] sm:$0xff]
      %v1236 = vld [vmem:[#allocation2 + $0x40] sm:$0xff]
      %v1237 = vld [vmem:[#allocation2 + $0x48] sm:$0xff]
      %v1238 = vld [vmem:[%s165 + $0x8] sm:$0xc]
      %v1239 = vld [vmem:[%s165 + $0xc] sm:$0xf]
      %v1240 = vld [vmem:[%s165 + $0x10] sm:$0xf]
      %v1241 = vld [vmem:[%s165 + $0x14] sm:$0xf]
      %v1242 = vld [vmem:[%s165 + $0x18] sm:$0xf]
      %v1243 = vld [vmem:[%s165 + $0x1c] sm:$0xf]
      %v1244 = vld [vmem:[%s165 + $0x20] sm:$0xf]
      %v1245 = vld [vmem:[%s165 + $0x24] sm:$0xf]
      %v1246 = vld [vmem:[%s165 + $0x28] sm:$0xf]
      %v1247 = vld [vmem:[%s165 + $0x2c] sm:$0xf]
      %v1248 = vld [vmem:[%s165 + $0x30] sm:$0x7]
      %s1249 = scalar_lea.vmem %s1, 56
      %v1250 = vld [vmem:[%s1249] sm:$0xf]
      %v1251 = vld [vmem:[%s1249 + $0x4] sm:$0x3]
      %v1263 = vunpack.c.l.b16 %v1238
      %v1264 = vunpack.c.l.b16 %v1239
      %v1265 = vunpack.c.l.b16 %v1240
      %v1266 = vunpack.c.l.b16 %v1241
      %v1267 = vunpack.c.l.b16 %v1242
      %v1268 = vunpack.c.l.b16 %v1243
      %v1269 = vunpack.c.l.b16 %v1244
      %v1270 = vunpack.c.l.b16 %v1245
      %v1271 = vunpack.c.l.b16 %v1246
      %v1272 = vunpack.c.l.b16 %v1247
      %v1273 = vunpack.c.l.b16 %v1248
      %v1274 = vpack.c.b16 %v1264, %v1263
      %v1275 = vpack.c.b16 %v1266, %v1265
      %v1276 = vpack.c.b16 %v1268, %v1267
      %v1277 = vpack.c.b16 %v1270, %v1269
      %v1278 = vpack.c.b16 %v1272, %v1271
      %v1279 = vpack.c.b16 %v1273, %v1273
      %vm1280 = vsmask.f32 5376
      %v1282 = vshrl.u32 %v1274, 16
      %v1284 = vrot.slane %v1282, 2
      %v1285 = vshll.u32 %v1274, 16
      %v1287 = vrot.slane %v1285, 3
      %v1288 = vor.u32 %v1284, %v1287
      %v1290 = vshrl.u32 %v1275, 16
      %v1292 = vrot.slane %v1290, 2
      %v1293 = vshll.u32 %v1275, 16
      %v1295 = vrot.slane %v1293, 3
      %v1296 = vor.u32 %v1292, %v1295
      %v1297 = vsel %vm1280, %v1288, %v1296
      %v1299 = vshrl.u32 %v1276, 16
      %v1301 = vrot.slane %v1299, 2
      %v1302 = vshll.u32 %v1276, 16
      %v1304 = vrot.slane %v1302, 3
      %v1305 = vor.u32 %v1301, %v1304
      %v1306 = vsel %vm1280, %v1296, %v1305
      %v1308 = vshrl.u32 %v1277, 16
      %v1310 = vrot.slane %v1308, 2
      %v1311 = vshll.u32 %v1277, 16
      %v1313 = vrot.slane %v1311, 3
      %v1314 = vor.u32 %v1310, %v1313
      %v1315 = vsel %vm1280, %v1305, %v1314
      %v1317 = vshrl.u32 %v1278, 16
      %v1319 = vrot.slane %v1317, 2
      %v1320 = vshll.u32 %v1278, 16
      %v1322 = vrot.slane %v1320, 3
      %v1323 = vor.u32 %v1319, %v1322
      %v1324 = vsel %vm1280, %v1314, %v1323
      %v1326 = vshrl.u32 %v1279, 16
      %v1328 = vrot.slane %v1326, 2
      %v1329 = vshll.u32 %v1279, 16
      %v1331 = vrot.slane %v1329, 3
      %v1332 = vor.u32 %v1328, %v1331
      %v1333 = vsel %vm1280, %v1323, %v1332
      %v1336 = vunpack.c.l.b16 %v1250
      %v1337 = vunpack.c.l.b16 %v1251
      %v1338 = vpack.c.b16 %v1337, %v1336
      %v1340 = vsel %vm235, %v1297, 0
      %v1343 = vsel %vm235, %v1306, 0
      %v1346 = vsel %vm235, %v1315, 0
      %v1349 = vsel %vm235, %v1324, 0
      %v1352 = vsel %vm235, %v1333, 0
      %v1355 = vsel %vm251, %v1338, 0
      %1357 = vmatpush.bf16.msra.mxu0 0
      %1358 = vmatpush.bf16.msra.mxu0 0
      %1359 = vmatpush.bf16.msra.mxu0 0
      %1360 = vmatpush.bf16.msra.mxu0 0
      %1361 = vmatpush.bf16.msra.mxu0 0
      %1362 = vmatpush.bf16.msra.mxu0 0
      %1363 = vmatpush.bf16.msra.mxu0 0
      %1364 = vmatpush.bf16.msra.mxu0 %v1355
      %1365 = vmatmul.bf16.gmra.mxu0 %v1340
      %v1366 = vpop.f32.mrf.mxu0
      %v1367 = vadd.f32 0.0, %v1366
      %v1368 = vpop.f32.mrf.mxu0
      %v1369 = vadd.f32 0.0, %v1368
      %1370 = vmatmul.bf16.gmra.mxu0 %v1343
      %v1371 = vpop.f32.mrf.mxu0
      %v1372 = vadd.f32 0.0, %v1371
      %v1373 = vpop.f32.mrf.mxu0
      %v1374 = vadd.f32 0.0, %v1373
      %1375 = vmatmul.bf16.gmra.mxu0 %v1346
      %v1376 = vpop.f32.mrf.mxu0
      %v1377 = vadd.f32 0.0, %v1376
      %v1378 = vpop.f32.mrf.mxu0
      %v1379 = vadd.f32 0.0, %v1378
      %1380 = vmatmul.bf16.gmra.mxu0 %v1349
      %v1381 = vpop.f32.mrf.mxu0
      %v1382 = vadd.f32 0.0, %v1381
      %v1383 = vpop.f32.mrf.mxu0
      %v1384 = vadd.f32 0.0, %v1383
      %1385 = vmatmul.bf16.gmra.mxu0 %v1352
      %v1386 = vpop.f32.mrf.mxu0
      %v1387 = vadd.f32 0.0, %v1386
      %v1388 = vpop.f32.mrf.mxu0
      %v1389 = vadd.f32 0.0, %v1388
      %1390 = vdwg.mxu0
      %v1391 = vadd.f32 %v1228, %v1367
      %v1392 = vadd.f32 %v1229, %v1369
      %v1393 = vadd.f32 %v1230, %v1372
      %v1394 = vadd.f32 %v1231, %v1374
      %v1395 = vadd.f32 %v1232, %v1377
      %v1396 = vadd.f32 %v1233, %v1379
      %v1397 = vadd.f32 %v1234, %v1382
      %v1398 = vadd.f32 %v1235, %v1384
      %v1399 = vadd.f32 %v1236, %v1387
      %v1400 = vadd.f32 %v1237, %v1389
      %1401 = vst.msk [vmem:[#allocation2] sm:$0xff] %vm172, %v1391
      %1402 = vst.msk [vmem:[#allocation2 + $0x8] sm:$0xff] %vm172, %v1392
      %1403 = vst.msk [vmem:[#allocation2 + $0x10] sm:$0xff] %vm172, %v1393
      %1404 = vst.msk [vmem:[#allocation2 + $0x18] sm:$0xff] %vm172, %v1394
      %1405 = vst.msk [vmem:[#allocation2 + $0x20] sm:$0xff] %vm172, %v1395
      %1406 = vst.msk [vmem:[#allocation2 + $0x28] sm:$0xff] %vm172, %v1396
      %1407 = vst.msk [vmem:[#allocation2 + $0x30] sm:$0xff] %vm172, %v1397
      %1408 = vst.msk [vmem:[#allocation2 + $0x38] sm:$0xff] %vm172, %v1398
      %1409 = vst.msk [vmem:[#allocation2 + $0x40] sm:$0xff] %vm172, %v1399
      %1410 = vst.msk [vmem:[#allocation2 + $0x48] sm:$0xff] %vm172, %v1400
      %v1411 = vld [vmem:[#allocation2] sm:$0xff]
      %v1412 = vld [vmem:[#allocation2 + $0x8] sm:$0xff]
      %v1413 = vld [vmem:[#allocation2 + $0x10] sm:$0xff]
      %v1414 = vld [vmem:[#allocation2 + $0x18] sm:$0xff]
      %v1415 = vld [vmem:[#allocation2 + $0x20] sm:$0xff]
      %v1416 = vld [vmem:[#allocation2 + $0x28] sm:$0xff]
      %v1417 = vld [vmem:[#allocation2 + $0x30] sm:$0xff]
      %v1418 = vld [vmem:[#allocation2 + $0x38] sm:$0xff]
      %v1419 = vld [vmem:[#allocation2 + $0x40] sm:$0xff]
      %v1420 = vld [vmem:[#allocation2 + $0x48] sm:$0xff]
      %v1421 = vld [vmem:[%s165 + $0x8] sm:$0x8]
      %v1422 = vld [vmem:[%s165 + $0xc] sm:$0xf]
      %v1423 = vld [vmem:[%s165 + $0x10] sm:$0xf]
      %v1424 = vld [vmem:[%s165 + $0x14] sm:$0xf]
      %v1425 = vld [vmem:[%s165 + $0x18] sm:$0xf]
      %v1426 = vld [vmem:[%s165 + $0x1c] sm:$0xf]
      %v1427 = vld [vmem:[%s165 + $0x20] sm:$0xf]
      %v1428 = vld [vmem:[%s165 + $0x24] sm:$0xf]
      %v1429 = vld [vmem:[%s165 + $0x28] sm:$0xf]
      %v1430 = vld [vmem:[%s165 + $0x2c] sm:$0xf]
      %v1431 = vld [vmem:[%s165 + $0x30] sm:$0x7]
      %s1432 = scalar_lea.vmem %s1, 64
      %v1433 = vld [vmem:[%s1432] sm:$0xf]
      %v1434 = vld [vmem:[%s1432 + $0x4] sm:$0x3]
      %v1446 = vunpack.c.l.b16 %v1421
      %v1447 = vunpack.c.l.b16 %v1422
      %v1448 = vunpack.c.l.b16 %v1423
      %v1449 = vunpack.c.l.b16 %v1424
      %v1450 = vunpack.c.l.b16 %v1425
      %v1451 = vunpack.c.l.b16 %v1426
      %v1452 = vunpack.c.l.b16 %v1427
      %v1453 = vunpack.c.l.b16 %v1428
      %v1454 = vunpack.c.l.b16 %v1429
      %v1455 = vunpack.c.l.b16 %v1430
      %v1456 = vunpack.c.l.b16 %v1431
      %v1457 = vpack.c.b16 %v1447, %v1446
      %v1458 = vpack.c.b16 %v1449, %v1448
      %v1459 = vpack.c.b16 %v1451, %v1450
      %v1460 = vpack.c.b16 %v1453, %v1452
      %v1461 = vpack.c.b16 %v1455, %v1454
      %v1462 = vpack.c.b16 %v1456, %v1456
      %vm1463 = vcmask 1044480
      %v1464 = vrot.slane %v1457, 3
      %v1465 = vrot.slane %v1458, 3
      %v1466 = vsel %vm1463, %v1464, %v1465
      %v1467 = vrot.slane %v1459, 3
      %v1468 = vsel %vm1463, %v1465, %v1467
      %v1469 = vrot.slane %v1460, 3
      %v1470 = vsel %vm1463, %v1467, %v1469
      %v1471 = vrot.slane %v1461, 3
      %v1472 = vsel %vm1463, %v1469, %v1471
      %v1473 = vrot.slane %v1462, 3
      %v1474 = vsel %vm1463, %v1471, %v1473
      %v1477 = vunpack.c.l.b16 %v1433
      %v1478 = vunpack.c.l.b16 %v1434
      %v1479 = vpack.c.b16 %v1478, %v1477
      %v1481 = vsel %vm235, %v1466, 0
      %v1484 = vsel %vm235, %v1468, 0
      %v1487 = vsel %vm235, %v1470, 0
      %v1490 = vsel %vm235, %v1472, 0
      %v1493 = vsel %vm235, %v1474, 0
      %v1496 = vsel %vm251, %v1479, 0
      %1498 = vmatpush.bf16.msra.mxu0 0
      %1499 = vmatpush.bf16.msra.mxu0 0
      %1500 = vmatpush.bf16.msra.mxu0 0
      %1501 = vmatpush.bf16.msra.mxu0 0
      %1502 = vmatpush.bf16.msra.mxu0 0
      %1503 = vmatpush.bf16.msra.mxu0 0
      %1504 = vmatpush.bf16.msra.mxu0 0
      %1505 = vmatpush.bf16.msra.mxu0 %v1496
      %1506 = vmatmul.bf16.gmra.mxu0 %v1481
      %v1507 = vpop.f32.mrf.mxu0
      %v1508 = vadd.f32 0.0, %v1507
      %v1509 = vpop.f32.mrf.mxu0
      %v1510 = vadd.f32 0.0, %v1509
      %1511 = vmatmul.bf16.gmra.mxu0 %v1484
      %v1512 = vpop.f32.mrf.mxu0
      %v1513 = vadd.f32 0.0, %v1512
      %v1514 = vpop.f32.mrf.mxu0
      %v1515 = vadd.f32 0.0, %v1514
      %1516 = vmatmul.bf16.gmra.mxu0 %v1487
      %v1517 = vpop.f32.mrf.mxu0
      %v1518 = vadd.f32 0.0, %v1517
      %v1519 = vpop.f32.mrf.mxu0
      %v1520 = vadd.f32 0.0, %v1519
      %1521 = vmatmul.bf16.gmra.mxu0 %v1490
      %v1522 = vpop.f32.mrf.mxu0
      %v1523 = vadd.f32 0.0, %v1522
      %v1524 = vpop.f32.mrf.mxu0
      %v1525 = vadd.f32 0.0, %v1524
      %1526 = vmatmul.bf16.gmra.mxu0 %v1493
      %v1527 = vpop.f32.mrf.mxu0
      %v1528 = vadd.f32 0.0, %v1527
      %v1529 = vpop.f32.mrf.mxu0
      %v1530 = vadd.f32 0.0, %v1529
      %1531 = vdwg.mxu0
      %v1532 = vadd.f32 %v1411, %v1508
      %v1533 = vadd.f32 %v1412, %v1510
      %v1534 = vadd.f32 %v1413, %v1513
      %v1535 = vadd.f32 %v1414, %v1515
      %v1536 = vadd.f32 %v1415, %v1518
      %v1537 = vadd.f32 %v1416, %v1520
      %v1538 = vadd.f32 %v1417, %v1523
      %v1539 = vadd.f32 %v1418, %v1525
      %v1540 = vadd.f32 %v1419, %v1528
      %v1541 = vadd.f32 %v1420, %v1530
      %1542 = vst.msk [vmem:[#allocation2] sm:$0xff] %vm172, %v1532
      %1543 = vst.msk [vmem:[#allocation2 + $0x8] sm:$0xff] %vm172, %v1533
      %1544 = vst.msk [vmem:[#allocation2 + $0x10] sm:$0xff] %vm172, %v1534
      %1545 = vst.msk [vmem:[#allocation2 + $0x18] sm:$0xff] %vm172, %v1535
      %1546 = vst.msk [vmem:[#allocation2 + $0x20] sm:$0xff] %vm172, %v1536
      %1547 = vst.msk [vmem:[#allocation2 + $0x28] sm:$0xff] %vm172, %v1537
      %1548 = vst.msk [vmem:[#allocation2 + $0x30] sm:$0xff] %vm172, %v1538
      %1549 = vst.msk [vmem:[#allocation2 + $0x38] sm:$0xff] %vm172, %v1539
      %1550 = vst.msk [vmem:[#allocation2 + $0x40] sm:$0xff] %vm172, %v1540
      %1551 = vst.msk [vmem:[#allocation2 + $0x48] sm:$0xff] %vm172, %v1541
      %v1552 = vld [vmem:[#allocation2] sm:$0xff]
      %v1553 = vld [vmem:[#allocation2 + $0x8] sm:$0xff]
      %v1554 = vld [vmem:[#allocation2 + $0x10] sm:$0xff]
      %v1555 = vld [vmem:[#allocation2 + $0x18] sm:$0xff]
      %v1556 = vld [vmem:[#allocation2 + $0x20] sm:$0xff]
      %v1557 = vld [vmem:[#allocation2 + $0x28] sm:$0xff]
      %v1558 = vld [vmem:[#allocation2 + $0x30] sm:$0xff]
      %v1559 = vld [vmem:[#allocation2 + $0x38] sm:$0xff]
      %v1560 = vld [vmem:[#allocation2 + $0x40] sm:$0xff]
      %v1561 = vld [vmem:[#allocation2 + $0x48] sm:$0xff]
      %v1562 = vld [vmem:[%s2] sm:$0x1]
      %v1564 = vperm.slane %v1562, 0
      %v1566 = vadd.f32 %v1552, %v1564
      %v1567 = vadd.f32 %v1553, %v1564
      %v1568 = vadd.f32 %v1554, %v1564
      %v1569 = vadd.f32 %v1555, %v1564
      %v1570 = vadd.f32 %v1556, %v1564
      %v1571 = vadd.f32 %v1557, %v1564
      %v1572 = vadd.f32 %v1558, %v1564
      %v1573 = vadd.f32 %v1559, %v1564
      %v1574 = vadd.f32 %v1560, %v1564
      %v1575 = vadd.f32 %v1561, %v1564
      %v1576 = vmul.f32 %v1566, 0.2
      %v1577 = vmul.f32 %v1567, 0.2
      %v1578 = vmul.f32 %v1568, 0.2
      %v1579 = vmul.f32 %v1569, 0.2
      %v1580 = vmul.f32 %v1570, 0.2
      %v1581 = vmul.f32 %v1571, 0.2
      %v1582 = vmul.f32 %v1572, 0.2
      %v1583 = vmul.f32 %v1573, 0.2
      %v1584 = vmul.f32 %v1574, 0.2
      %v1585 = vmul.f32 %v1575, 0.2
      %v1586 = vmax.f32 %v1566, %v1576
      %v1587 = vmax.f32 %v1567, %v1577
      %v1588 = vmax.f32 %v1568, %v1578
      %v1589 = vmax.f32 %v1569, %v1579
      %v1590 = vmax.f32 %v1570, %v1580
      %v1591 = vmax.f32 %v1571, %v1581
      %v1592 = vmax.f32 %v1572, %v1582
      %v1593 = vmax.f32 %v1573, %v1583
      %v1594 = vmax.f32 %v1574, %v1584
      %v1595 = vmax.f32 %v1575, %v1585
      %v1596 = vpack.c.bf16 %v1586, %v1586
      %v1597 = vpack.c.bf16 %v1587, %v1587
      %v1598 = vpack.c.bf16 %v1588, %v1588
      %v1599 = vpack.c.bf16 %v1589, %v1589
      %v1600 = vpack.c.bf16 %v1590, %v1590
      %v1601 = vpack.c.bf16 %v1591, %v1591
      %v1602 = vpack.c.bf16 %v1592, %v1592
      %v1603 = vpack.c.bf16 %v1593, %v1593
      %v1604 = vpack.c.bf16 %v1594, %v1594
      %v1605 = vpack.c.bf16 %v1595, %v1595
      %vm1606 = vcmask 60416
      %1607 = vst.msk [vmem:[%s170] sm:$0xf] %vm1606, %v1596
      %1608 = vst.msk [vmem:[%s170 + $0x4] sm:$0xf] %vm1606, %v1597
      %1609 = vst.msk [vmem:[%s170 + $0x8] sm:$0xf] %vm1606, %v1598
      %1610 = vst.msk [vmem:[%s170 + $0xc] sm:$0xf] %vm1606, %v1599
      %1611 = vst.msk [vmem:[%s170 + $0x10] sm:$0xf] %vm1606, %v1600
      %1612 = vst.msk [vmem:[%s170 + $0x14] sm:$0xf] %vm1606, %v1601
      %1613 = vst.msk [vmem:[%s170 + $0x18] sm:$0xf] %vm1606, %v1602
      %1614 = vst.msk [vmem:[%s170 + $0x1c] sm:$0xf] %vm1606, %v1603
      %1615 = vst.msk [vmem:[%s170 + $0x20] sm:$0xf] %vm1606, %v1604
      %1616 = vst.msk [vmem:[%s170 + $0x24] sm:$0xf] %vm1606, %v1605
      %p1617 = scmp.lt.s32.totalorder %s14, 1
      %s1618 = scalar_select %p1617, %s14, 1
      %s1619 = smul.addr %s1618, 10
      %s1620 = smul.addr %s1619, 4
      %s1621 = scalar_lea.vmem %s3, %s1620
      // Predicated region
      $region33: #{discriminator_forward.3} parent=31 // pred_check
        %p1622 = pneg %p100
      $region34: #{discriminator_forward.3} parent=31 // pred_check_branch
        %1624 = sbr.rel (%p1622) target = $region36
      $region35: #{discriminator_forward.3} parent=31 // pred_region
        _
      $region36: #{discriminator_forward.3} parent=31 // pred_fallthru
        _
    $region32: #{discriminator_forward.3} parent=5 // pred_fallthru
      _
    %p1625 = scmp.le.s32.totalorder 2, %s9
    // Predicated region
    $region37: #{discriminator_forward.3} parent=5 // pred_check
      %p1626 = pneg %p1625
    $region38: #{discriminator_forward.3} parent=5 // pred_check_branch
      %1628 = sbr.rel (%p1626) target = $region40
    $region39: #{discriminator_forward.3} parent=5 // pred_region
      %s1629 = ssub.s32 %s9, 2
      // Predicated region
      $region41: #{discriminator_forward.3} parent=39 // pred_check
        %p1630 = pneg %p106
      $region42: #{discriminator_forward.3} parent=39 // pred_check_branch
        %1632 = sbr.rel (%p1630) target = $region44
      $region43: #{discriminator_forward.3} parent=39 // pred_region
        %p1633 = scmp.lt.s32.totalorder %s15, 1
        %s1634 = scalar_select %p1633, %s15, 1
        %s1635 = smul.addr %s1634, 10
        %s1636 = smul.addr %s1635, 4
        %s1637 = scalar_lea.vmem %s3, %s1636
      $region44: #{discriminator_forward.3} parent=39 // pred_fallthru
        _
    $region40: #{discriminator_forward.3} parent=5 // pred_fallthru
      _
  $region6: #{discriminator_forward.3} parent=0 // loop_footer
    %s13 = sadd.s32 1, %s9
  $region7: #{discriminator_forward.3} parent=0 // loop_footer_branch
    %8 = sbr.rel target = $region3
  $region8: #{discriminator_forward.3} parent=0 // loop_exit
    _

// kernel: discriminator_forward.4
$region0: #{discriminator_forward.4}
  #allocation0 [shape = 'u32[]', space=smem, size = 0x4, offset = 0x4, fixed_abs, tag = 'smem constant byte address 0x4 - core index']
  #allocation1 [shape = 'u32[72,128]{1,0:T(1,128)}', space=vmem, size = 0x9000, scoped, tag = 'internal scratch']
  #allocation2 [shape = 'f32[24,16]{1,0:T(8,128)}', space=vmem, size = 0x3000, scoped, tag = 'scratch operand']
  %s0 = inlined_call_operand.vmem [shape: bf16[2,44,32], index: 0, kind: input, shape index: {}]
  %s1 = inlined_call_operand.vmem [shape: bf16[9,32,16], index: 1, kind: input, shape index: {}]
  %s2 = inlined_call_operand.vmem [shape: f32[1,16], index: 2, kind: input, shape index: {}]
  %s3 = inlined_call_operand.vmem [shape: bf16[2,24,16], index: 3, kind: output, shape index: {}]
  %s4 = sld [smem:[#allocation0]]
  $region45: #{discriminator_forward.4} parent=0
    _
  %s6 = ssub.s32 1, %s4
  %s7 = scalar_select 0, %s6, %s4
  loop: start=0, step=1, limit=4
  $region2: #{discriminator_forward.4} parent=0 // loop_pre_header
    _
  $region3: #{discriminator_forward.4} parent=0 // loop_header
    %s9 = sphi 0, %s13
    %p10 = scmp.ge.s32.totalorder %s9, 4
    %s19 = sphi 0, %s21
    %s22 = sphi 0, %s19
    %s23 = sphi 0, %s22
    %s39 = sphi 0, %s23
    %s43 = sphi 0, %s43
    %s45 = sphi 0, %s43
    %s46 = sphi 0, %s45
    %s60 = sphi 0, %s46
    %s64 = sphi 0, %s64
    %s66 = sphi 0, %s64
    %s67 = sphi 0, %s66
    %s81 = sphi 0, %s67
    %s87 = sphi 0, %s89
    %s90 = sphi 0, %s87
    %s91 = sphi 0, %s90
    %s107 = sphi 0, %s91
  $region4: #{discriminator_forward.4} parent=0 // loop_header_branch
    %12 = sbr.rel (%p10) target = $region8
  $region5: #{discriminator_forward.4} parent=0 // loop_body
    %s14 = ssub.s32 %s9, 1
    %s15 = ssub.s32 %s9, 2
    %s16 = sadd.s32 %s9, 1
    %s17 = ssub.s32 %s9, %s16
    %p18 = scmp.eq.s32.totalorder %s17, 0
    %s20 = sadd.s32 %s19, 1
    %s21 = scalar_select %p18, %s19, %s20
    %p24 = pneg %p18
    %p25 = scmp.eq.s32.totalorder %s9, 1
    %p26 = por %p24, %p25
    %p27 = scmp.ne.s32.totalorder %s19, %s22
    %p28 = scmp.eq.s32.totalorder %s9, 0
    %p29 = por %p27, %p28
    %p30 = scmp.ne.s32.totalorder %s19, %s22
    %p31 = scmp.eq.s32.totalorder %s14, 1
    %p32 = por %p30, %p31
    %p33 = scmp.ne.s32.totalorder %s22, %s23
    %p34 = scmp.eq.s32.totalorder %s14, 0
    %p35 = por %p33, %p34
    %p36 = scmp.ne.s32.totalorder %s22, %s23
    %p37 = scmp.eq.s32.totalorder %s15, 1
    %p38 = por %p36, %p37
    %p40 = scmp.ne.s32.totalorder %s23, %s39
    %p41 = scmp.eq.s32.totalorder %s15, 0
    %p42 = por %p40, %p41
    %s44 = sadd.s32 %s43, 1
    %p47 = scmp.eq.s32.totalorder %s9, 1
    %p48 = scmp.ne.s32.totalorder %s43, %s45
    %p49 = scmp.eq.s32.totalorder %s9, 0
    %p50 = por %p48, %p49
    %p51 = scmp.ne.s32.totalorder %s43, %s45
    %p52 = scmp.eq.s32.totalorder %s14, 1
    %p53 = por %p51, %p52
    %p54 = scmp.ne.s32.totalorder %s45, %s46
    %p55 = scmp.eq.s32.totalorder %s14, 0
    %p56 = por %p54, %p55
    %p57 = scmp.ne.s32.totalorder %s45, %s46
    %p58 = scmp.eq.s32.totalorder %s15, 1
    %p59 = por %p57, %p58
    %p61 = scmp.ne.s32.totalorder %s46, %s60
    %p62 = scmp.eq.s32.totalorder %s15, 0
    %p63 = por %p61, %p62
    %s65 = sadd.s32 %s64, 1
    %p68 = scmp.eq.s32.totalorder %s9, 1
    %p69 = scmp.ne.s32.totalorder %s64, %s66
    %p70 = scmp.eq.s32.totalorder %s9, 0
    %p71 = por %p69, %p70
    %p72 = scmp.ne.s32.totalorder %s64, %s66
    %p73 = scmp.eq.s32.totalorder %s14, 1
    %p74 = por %p72, %p73
    %p75 = scmp.ne.s32.totalorder %s66, %s67
    %p76 = scmp.eq.s32.totalorder %s14, 0
    %p77 = por %p75, %p76
    %p78 = scmp.ne.s32.totalorder %s66, %s67
    %p79 = scmp.eq.s32.totalorder %s15, 1
    %p80 = por %p78, %p79
    %p82 = scmp.ne.s32.totalorder %s67, %s81
    %p83 = scmp.eq.s32.totalorder %s15, 0
    %p84 = por %p82, %p83
    %s85 = ssub.s32 %s9, %s16
    %p86 = scmp.eq.s32.totalorder %s85, 0
    %s88 = sadd.s32 %s87, 1
    %s89 = scalar_select %p86, %s87, %s88
    %p92 = pneg %p86
    %p93 = scmp.eq.s32.totalorder %s9, 1
    %p94 = por %p92, %p93
    %p95 = scmp.ne.s32.totalorder %s87, %s90
    %p96 = scmp.eq.s32.totalorder %s9, 0
    %p97 = por %p95, %p96
    %p98 = scmp.ne.s32.totalorder %s87, %s90
    %p99 = scmp.eq.s32.totalorder %s14, 1
    %p100 = por %p98, %p99
    %p101 = scmp.ne.s32.totalorder %s90, %s91
    %p102 = scmp.eq.s32.totalorder %s14, 0
    %p103 = por %p101, %p102
    %p104 = scmp.ne.s32.totalorder %s90, %s91
    %p105 = scmp.eq.s32.totalorder %s15, 1
    %p106 = por %p104, %p105
    %p108 = scmp.ne.s32.totalorder %s91, %s107
    %p109 = scmp.eq.s32.totalorder %s15, 0
    %p110 = por %p108, %p109
    %p111 = scmp.le.s32.totalorder 1, %s9
    %p112 = scmp.lt.s32.totalorder %s9, 3
    %p113 = pnand %p111, %p112
    %p114 = pneg %p113
    // Predicated region
    $region9: #{discriminator_forward.4} parent=5 // pred_check
      _
    $region10: #{discriminator_forward.4} parent=5 // pred_check_branch
      %116 = sbr.rel (%p113) target = $region12
    $region11: #{discriminator_forward.4} parent=5 // pred_region
      %s117 = ssub.s32 %s9, 1
      // Predicated region
      $region13: #{discriminator_forward.4} parent=11 // pred_check
        %p118 = pneg %p56
      $region14: #{discriminator_forward.4} parent=11 // pred_check_branch
        %120 = sbr.rel (%p118) target = $region16
      $region15: #{discriminator_forward.4} parent=11 // pred_region
        _
      $region16: #{discriminator_forward.4} parent=11 // pred_fallthru
        _
      // Predicated region
      $region17: #{discriminator_forward.4} parent=11 // pred_check
        %p121 = pneg %p77
      $region18: #{discriminator_forward.4} parent=11 // pred_check_branch
        %123 = sbr.rel (%p121) target = $region20
      $region19: #{discriminator_forward.4} parent=11 // pred_region
        _
      $region20: #{discriminator_forward.4} parent=11 // pred_fallthru
        _
    $region12: #{discriminator_forward.4} parent=5 // pred_fallthru
      _
    %p124 = scmp.lt.s32.totalorder %s9, 2
    // Predicated region
    $region21: #{discriminator_forward.4} parent=5 // pred_check
      %p125 = pneg %p124
    $region22: #{discriminator_forward.4} parent=5 // pred_check_branch
      %127 = sbr.rel (%p125) target = $region24
    $region23: #{discriminator_forward.4} parent=5 // pred_region
      // Predicated region
      $region25: #{discriminator_forward.4} parent=23 // pred_check
        %p128 = pneg %p29
      $region26: #{discriminator_forward.4} parent=23 // pred_check_branch
        %130 = sbr.rel (%p128) target = $region28
      $region27: #{discriminator_forward.4} parent=23 // pred_region
        %p131 = scmp.lt.s32.totalorder %s9, 1
        %s132 = scalar_select %p131, %s9, 1
        %s133 = smul.addr %s132, 6
        %s134 = smul.addr %s133, 4
        %s135 = scalar_lea.vmem %s0, %s134
      $region28: #{discriminator_forward.4} parent=23 // pred_fallthru
        _
    $region24: #{discriminator_forward.4} parent=5 // pred_fallthru
      _
    %p136 = scmp.le.s32.totalorder 1, %s9
    %p137 = scmp.lt.s32.totalorder %s9, 3
    %p138 = pnand %p136, %p137
    %p139 = pneg %p138
    // Predicated region
    $region29: #{discriminator_forward.4} parent=5 // pred_check
      _
    $region30: #{discriminator_forward.4} parent=5 // pred_check_branch
      %141 = sbr.rel (%p138) target = $region32
    $region31: #{discriminator_forward.4} parent=5 // pred_region
      %s142 = ssub.s32 %s9, 1
      %p143 = scmp.lt.s32.totalorder %s14, 1
      %s144 = scalar_select %p143, %s14, 1
      %s145 = smul.addr %s144, 6
      %s146 = smul.addr %s145, 4
      %s147 = scalar_lea.vmem %s0, %s146
      %p148 = pneg %p35
      %p149 = pneg %p32
      %p150 = pneg %p56
      %p151 = pneg %p53
      %p152 = pneg %p77
      %p153 = pneg %p74
      %p154 = pneg %p103
      %p155 = pneg %p100
      %p156 = scmp.lt.s32.totalorder %s14, 1
      %s157 = scalar_select %p156, %s14, 1
      %s158 = smul.addr %s157, 3
      %s159 = smul.addr %s158, 4
      %s160 = scalar_lea.vmem %s3, %s159
      %p161 = scmp.lt.s32.totalorder %s14, 1
      %s162 = scalar_select %p161, %s14, 1
      %s163 = smul.addr %s162, 6
      %s164 = smul.addr %s163, 4
      %s165 = scalar_lea.vmem %s0, %s164
      %p166 = scmp.lt.s32.totalorder %s14, 1
      %s167 = scalar_select %p166, %s14, 1
      %s168 = smul.addr %s167, 3
      %s169 = smul.addr %s168, 4
      %s170 = scalar_lea.vmem %s3, %s169
      %vm172 = vcmask 130048
      %173 = vst.msk [vmem:[#allocation2] sm:$0xff] %vm172, 0.0
      %174 = vst.msk [vmem:[#allocation2 + $0x8] sm:$0xff] %vm172, 0.0
      %175 = vst.msk [vmem:[#allocation2 + $0x10] sm:$0xff] %vm172, 0.0
      %v176 = vld [vmem:[#allocation2] sm:$0xff]
      %v177 = vld [vmem:[#allocation2 + $0x8] sm:$0xff]
      %v178 = vld [vmem:[#allocation2 + $0x10] sm:$0xff]
      %v179 = vld [vmem:[%s165] sm:$0xf]
      %v180 = vld [vmem:[%s165 + $0x4] sm:$0xf]
      %v181 = vld [vmem:[%s165 + $0x8] sm:$0xf]
      %v182 = vld [vmem:[%s1] sm:$0xf]
      %v183 = vld [vmem:[%s1 + $0x4] sm:$0xf]
      %v184 = vld [vmem:[%s1 + $0x8] sm:$0xf]
      %v185 = vld [vmem:[%s1 + $0xc] sm:$0xf]
      %v189 = vunpack.c.l.b16 %v179
      %v190 = vunpack.c.l.b16 %v180
      %v191 = vunpack.c.l.b16 %v181
      %v192 = vpack.c.b16 %v190, %v189
      %v193 = vpack.c.b16 %v191, %v191
      %v198 = vunpack.c.l.b16 %v182
      %v199 = vunpack.c.l.b16 %v183
      %v200 = vunpack.c.l.b16 %v184
      %v201 = vunpack.c.l.b16 %v185
      %v202 = vpack.c.b16 %v199, %v198
      %v203 = vpack.c.b16 %v201, %v200
      %vm206 = vcmask 261120
      %v208 = vsel %vm206, %v192, 0
      %v211 = vsel %vm206, %v193, 0
      %213 = vmatpush.bf16.msra.mxu0 0
      %214 = vmatpush.bf16.msra.mxu0 0
      %215 = vmatpush.bf16.msra.mxu0 0
      %216 = vmatpush.bf16.msra.mxu0 0
      %217 = vmatpush.bf16.msra.mxu0 0
      %218 = vmatpush.bf16.msra.mxu0 0
      %219 = vmatpush.bf16.msra.mxu0 %v203
      %220 = vmatpush.bf16.msra.mxu0 %v202
      %221 = vmatmul.bf16.gmra.mxu0 %v208
      %v222 = vpop.f32.mrf.mxu0
      %v223 = vadd.f32 0.0, %v222
      %v224 = vpop.f32.mrf.mxu0
      %v225 = vadd.f32 0.0, %v224
      %226 = vmatmul.bf16.gmra.mxu0 %v211
      %v227 = vpop.f32.mrf.mxu0
      %v228 = vadd.f32 0.0, %v227
      %v229 = vpop.f32.mrf.mxu0
      %230 = vdwg.mxu0
      %v231 = vadd.f32 %v176, %v223
      %v232 = vadd.f32 %v177, %v225
      %v233 = vadd.f32 %v178, %v228
      %234 = vst.msk [vmem:[#allocation2] sm:$0xff] %vm172, %v231
      %235 = vst.msk [vmem:[#allocation2 + $0x8] sm:$0xff] %vm172, %v232
      %236 = vst.msk [vmem:[#allocation2 + $0x10] sm:$0xff] %vm172, %v233
      %v237 = vld [vmem:[#allocation2] sm:$0xff]
      %v238 = vld [vmem:[#allocation2 + $0x8] sm:$0xff]
      %v239 = vld [vmem:[#allocation2 + $0x10] sm:$0xff]
      %v240 = vld [vmem:[%s165] sm:$0xf]
      %v241 = vld [vmem:[%s165 + $0x4] sm:$0xf]
      %v242 = vld [vmem:[%s165 + $0x8] sm:$0xf]
      %v243 = vld [vmem:[%s165 + $0xc] sm:$0x1]
      %s244 = scalar_lea.vmem %s1, 16
      %v245 = vld [vmem:[%s244] sm:$0xf]
      %v246 = vld [vmem:[%s244 + $0x4] sm:$0xf]
      %v247 = vld [vmem:[%s244 + $0x8] sm:$0xf]
      %v248 = vld [vmem:[%s244 + $0xc] sm:$0xf]
      %v253 = vunpack.c.l.b16 %v240
      %v254 = vunpack.c.l.b16 %v241
      %v255 = vunpack.c.l.b16 %v242
      %v256 = vunpack.c.l.b16 %v243
      %v257 = vpack.c.b16 %v254, %v253
      %v258 = vpack.c.b16 %v256, %v255
      %vm259 = vsmask.f32 7424
      %v261 = vshrl.u32 %v257, 16
      %v263 = vshll.u32 %v257, 16
      %v265 = vrot.slane %v263, 1
      %v266 = vor.u32 %v261, %v265
      %v268 = vshll.u32 %v258, 16
      %v270 = vrot.slane %v268, 1
      %v271 = vsel %vm259, %v266, %v270
      %v272 = vshrl.u32 %v258, 16
      %v274 = vor.u32 %v272, %v270
      %v279 = vunpack.c.l.b16 %v245
      %v280 = vunpack.c.l.b16 %v246
      %v281 = vunpack.c.l.b16 %v247
      %v282 = vunpack.c.l.b16 %v248
      %v283 = vpack.c.b16 %v280, %v279
      %v284 = vpack.c.b16 %v282, %v281
      %v288 = vsel %vm206, %v271, 0
      %v291 = vsel %vm206, %v274, 0
      %293 = vmatpush.bf16.msra.mxu0 0
      %294 = vmatpush.bf16.msra.mxu0 0
      %295 = vmatpush.bf16.msra.mxu0 0
      %296 = vmatpush.bf16.msra.mxu0 0
      %297 = vmatpush.bf16.msra.mxu0 0
      %298 = vmatpush.bf16.msra.mxu0 0
      %299 = vmatpush.bf16.msra.mxu0 %v284
      %300 = vmatpush.bf16.msra.mxu0 %v283
      %301 = vmatmul.bf16.gmra.mxu0 %v288
      %v302 = vpop.f32.mrf.mxu0
      %v303 = vadd.f32 0.0, %v302
      %v304 = vpop.f32.mrf.mxu0
      %v305 = vadd.f32 0.0, %v304
      %306 = vmatmul.bf16.gmra.mxu0 %v291
      %v307 = vpop.f32.mrf.mxu0
      %v308 = vadd.f32 0.0, %v307
      %v309 = vpop.f32.mrf.mxu0
      %310 = vdwg.mxu0
      %v311 = vadd.f32 %v237, %v303
      %v312 = vadd.f32 %v238, %v305
      %v313 = vadd.f32 %v239, %v308
      %314 = vst.msk [vmem:[#allocation2] sm:$0xff] %vm172, %v311
      %315 = vst.msk [vmem:[#allocation2 + $0x8] sm:$0xff] %vm172, %v312
      %316 = vst.msk [vmem:[#allocation2 + $0x10] sm:$0xff] %vm172, %v313
      %v317 = vld [vmem:[#allocation2] sm:$0xff]
      %v318 = vld [vmem:[#allocation2 + $0x8] sm:$0xff]
      %v319 = vld [vmem:[#allocation2 + $0x10] sm:$0xff]
      %v320 = vld [vmem:[%s165] sm:$0xe]
      %v321 = vld [vmem:[%s165 + $0x4] sm:$0xf]
      %v322 = vld [vmem:[%s165 + $0x8] sm:$0xf]
      %v323 = vld [vmem:[%s165 + $0xc] sm:$0x1]
      %s324 = scalar_lea.vmem %s1, 32
      %v325 = vld [vmem:[%s324] sm:$0xf]
      %v326 = vld [vmem:[%s324 + $0x4] sm:$0xf]
      %v327 = vld [vmem:[%s324 + $0x8] sm:$0xf]
      %v328 = vld [vmem:[%s324 + $0xc] sm:$0xf]
      %v333 = vunpack.c.l.b16 %v320
      %v334 = vunpack.c.l.b16 %v321
      %v335 = vunpack.c.l.b16 %v322
      %v336 = vunpack.c.l.b16 %v323
      %v337 = vpack.c.b16 %v334, %v333
      %v338 = vpack.c.b16 %v336, %v335
      %vm339 = vcmask 1046528
      %v340 = vrot.slane %v337, 1
      %v341 = vrot.slane %v338, 1
      %v342 = vsel %vm339, %v340, %v341
      %v347 = vunpack.c.l.b16 %v325
      %v348 = vunpack.c.l.b16 %v326
      %v349 = vunpack.c.l.b16 %v327
      %v350 = vunpack.c.l.b16 %v328
      %v351 = vpack.c.b16 %v348, %v347
      %v352 = vpack.c.b16 %v350, %v349
      %v356 = vsel %vm206, %v342, 0
      %v359 = vsel %vm206, %v341, 0
      %361 = vmatpush.bf16.msra.mxu0 0
      %362 = vmatpush.bf16.msra.mxu0 0
      %363 = vmatpush.bf16.msra.mxu0 0
      %364 = vmatpush.bf16.msra.mxu0 0
      %365 = vmatpush.bf16.msra.mxu0 0
      %366 = vmatpush.bf16.msra.mxu0 0
      %367 = vmatpush.bf16.msra.mxu0 %v352
      %368 = vmatpush.bf16.msra.mxu0 %v351
      %369 = vmatmul.bf16.gmra.mxu0 %v356
      %v370 = vpop.f32.mrf.mxu0
      %v371 = vadd.f32 0.0, %v370
      %v372 = vpop.f32.mrf.mxu0
      %v373 = vadd.f32 0.0, %v372
      %374 = vmatmul.bf16.gmra.mxu0 %v359
      %v375 = vpop.f32.mrf.mxu0
      %v376 = vadd.f32 0.0, %v375
      %v377 = vpop.f32.mrf.mxu0
      %378 = vdwg.mxu0
      %v379 = vadd.f32 %v317, %v371
      %v380 = vadd.f32 %v318, %v373
      %v381 = vadd.f32 %v319, %v376
      %382 = vst.msk [vmem:[#allocation2] sm:$0xff] %vm172, %v379
      %383 = vst.msk [vmem:[#allocation2 + $0x8] sm:$0xff] %vm172, %v380
      %384 = vst.msk [vmem:[#allocation2 + $0x10] sm:$0xff] %vm172, %v381
      %v385 = vld [vmem:[#allocation2] sm:$0xff]
      %v386 = vld [vmem:[#allocation2 + $0x8] sm:$0xff]
      %v387 = vld [vmem:[#allocation2 + $0x10] sm:$0xff]
      %v388 = vld [vmem:[%s165] sm:$0x8]
      %v389 = vld [vmem:[%s165 + $0x4] sm:$0xf]
      %v390 = vld [vmem:[%s165 + $0x8] sm:$0xf]
      %v391 = vld [vmem:[%s165 + $0xc] sm:$0x7]
      %s392 = scalar_lea.vmem %s1, 48
      %v393 = vld [vmem:[%s392] sm:$0xf]
      %v394 = vld [vmem:[%s392 + $0x4] sm:$0xf]
      %v395 = vld [vmem:[%s392 + $0x8] sm:$0xf]
      %v396 = vld [vmem:[%s392 + $0xc] sm:$0xf]
      %v401 = vunpack.c.l.b16 %v388
      %v402 = vunpack.c.l.b16 %v389
      %v403 = vunpack.c.l.b16 %v390
      %v404 = vunpack.c.l.b16 %v391
      %v405 = vpack.c.b16 %v402, %v401
      %v406 = vpack.c.b16 %v404, %v403
      %vm407 = vcmask 1044480
      %v408 = vrot.slane %v405, 3
      %v409 = vrot.slane %v406, 3
      %v410 = vsel %vm407, %v408, %v409
      %v415 = vunpack.c.l.b16 %v393
      %v416 = vunpack.c.l.b16 %v394
      %v417 = vunpack.c.l.b16 %v395
      %v418 = vunpack.c.l.b16 %v396
      %v419 = vpack.c.b16 %v416, %v415
      %v420 = vpack.c.b16 %v418, %v417
      %v424 = vsel %vm206, %v410, 0
      %v427 = vsel %vm206, %v409, 0
      %429 = vmatpush.bf16.msra.mxu0 0
      %430 = vmatpush.bf16.msra.mxu0 0
      %431 = vmatpush.bf16.msra.mxu0 0
      %432 = vmatpush.bf16.msra.mxu0 0
      %433 = vmatpush.bf16.msra.mxu0 0
      %434 = vmatpush.bf16.msra.mxu0 0
      %435 = vmatpush.bf16.msra.mxu0 %v420
      %436 = vmatpush.bf16.msra.mxu0 %v419
      %437 = vmatmul.bf16.gmra.mxu0 %v424
      %v438 = vpop.f32.mrf.mxu0
      %v439 = vadd.f32 0.0, %v438
      %v440 = vpop.f32.mrf.mxu0
      %v441 = vadd.f32 0.0, %v440
      %442 = vmatmul.bf16.gmra.mxu0 %v427
      %v443 = vpop.f32.mrf.mxu0
      %v444 = vadd.f32 0.0, %v443
      %v445 = vpop.f32.mrf.mxu0
      %446 = vdwg.mxu0
      %v447 = vadd.f32 %v385, %v439
      %v448 = vadd.f32 %v386, %v441
      %v449 = vadd.f32 %v387, %v444
      %450 = vst.msk [vmem:[#allocation2] sm:$0xff] %vm172, %v447
      %451 = vst.msk [vmem:[#allocation2 + $0x8] sm:$0xff] %vm172, %v448
      %452 = vst.msk [vmem:[#allocation2 + $0x10] sm:$0xff] %vm172, %v449
      %v453 = vld [vmem:[#allocation2] sm:$0xff]
      %v454 = vld [vmem:[#allocation2 + $0x8] sm:$0xff]
      %v455 = vld [vmem:[#allocation2 + $0x10] sm:$0xff]
      %v456 = vld [vmem:[%s165] sm:$0x8]
      %v457 = vld [vmem:[%s165 + $0x4] sm:$0xf]
      %v458 = vld [vmem:[%s165 + $0x8] sm:$0xf]
      %v459 = vld [vmem:[%s165 + $0xc] sm:$0xf]
      %s460 = scalar_lea.vmem %s1, 64
      %v461 = vld [vmem:[%s460] sm:$0xf]
      %v462 = vld [vmem:[%s460 + $0x4] sm:$0xf]
      %v463 = vld [vmem:[%s460 + $0x8] sm:$0xf]
      %v464 = vld [vmem:[%s460 + $0xc] sm:$0xf]
      %v469 = vunpack.c.l.b16 %v456
      %v470 = vunpack.c.l.b16 %v457
      %v471 = vunpack.c.l.b16 %v458
      %v472 = vunpack.c.l.b16 %v459
      %v473 = vpack.c.b16 %v470, %v469
      %v474 = vpack.c.b16 %v472, %v471
      %vm475 = vsmask.f32 4352
      %v477 = vshrl.u32 %v473, 16
      %v479 = vrot.slane %v477, 3
      %v480 = vshll.u32 %v473, 16
      %v482 = vrot.slane %v480, 4
      %v483 = vor.u32 %v479, %v482
      %v485 = vshrl.u32 %v474, 16
      %v487 = vrot.slane %v485, 3
      %v488 = vshll.u32 %v474, 16
      %v490 = vrot.slane %v488, 4
      %v491 = vor.u32 %v487, %v490
      %v492 = vsel %vm475, %v483, %v491
      %v497 = vunpack.c.l.b16 %v461
      %v498 = vunpack.c.l.b16 %v462
      %v499 = vunpack.c.l.b16 %v463
      %v500 = vunpack.c.l.b16 %v464
      %v501 = vpack.c.b16 %v498, %v497
      %v502 = vpack.c.b16 %v500, %v499
      %v506 = vsel %vm206, %v492, 0
      %v509 = vsel %vm206, %v491, 0
      %511 = vmatpush.bf16.msra.mxu0 0
      %512 = vmatpush.bf16.msra.mxu0 0
      %513 = vmatpush.bf16.msra.mxu0 0
      %514 = vmatpush.bf16.msra.mxu0 0
      %515 = vmatpush.bf16.msra.mxu0 0
      %516 = vmatpush.bf16.msra.mxu0 0
      %517 = vmatpush.bf16.msra.mxu0 %v502
      %518 = vmatpush.bf16.msra.mxu0 %v501
      %519 = vmatmul.bf16.gmra.mxu0 %v506
      %v520 = vpop.f32.mrf.mxu0
      %v521 = vadd.f32 0.0, %v520
      %v522 = vpop.f32.mrf.mxu0
      %v523 = vadd.f32 0.0, %v522
      %524 = vmatmul.bf16.gmra.mxu0 %v509
      %v525 = vpop.f32.mrf.mxu0
      %v526 = vadd.f32 0.0, %v525
      %v527 = vpop.f32.mrf.mxu0
      %528 = vdwg.mxu0
      %v529 = vadd.f32 %v453, %v521
      %v530 = vadd.f32 %v454, %v523
      %v531 = vadd.f32 %v455, %v526
      %532 = vst.msk [vmem:[#allocation2] sm:$0xff] %vm172, %v529
      %533 = vst.msk [vmem:[#allocation2 + $0x8] sm:$0xff] %vm172, %v530
      %534 = vst.msk [vmem:[#allocation2 + $0x10] sm:$0xff] %vm172, %v531
      %v535 = vld [vmem:[#allocation2] sm:$0xff]
      %v536 = vld [vmem:[#allocation2 + $0x8] sm:$0xff]
      %v537 = vld [vmem:[#allocation2 + $0x10] sm:$0xff]
      %v538 = vld [vmem:[%s165 + $0x4] sm:$0xf]
      %v539 = vld [vmem:[%s165 + $0x8] sm:$0xf]
      %v540 = vld [vmem:[%s165 + $0xc] sm:$0xf]
      %s541 = scalar_lea.vmem %s1, 80
      %v542 = vld [vmem:[%s541] sm:$0xf]
      %v543 = vld [vmem:[%s541 + $0x4] sm:$0xf]
      %v544 = vld [vmem:[%s541 + $0x8] sm:$0xf]
      %v545 = vld [vmem:[%s541 + $0xc] sm:$0xf]
      %v549 = vunpack.c.l.b16 %v538
      %v550 = vunpack.c.l.b16 %v539
      %v551 = vunpack.c.l.b16 %v540
      %v552 = vpack.c.b16 %v550, %v549
      %v553 = vpack.c.b16 %v551, %v551
      %v558 = vunpack.c.l.b16 %v542
      %v559 = vunpack.c.l.b16 %v543
      %v560 = vunpack.c.l.b16 %v544
      %v561 = vunpack.c.l.b16 %v545
      %v562 = vpack.c.b16 %v559, %v558
      %v563 = vpack.c.b16 %v561, %v560
      %v567 = vsel %vm206, %v552, 0
      %v570 = vsel %vm206, %v553, 0
      %572 = vmatpush.bf16.msra.mxu0 0
      %573 = vmatpush.bf16.msra.mxu0 0
      %574 = vmatpush.bf16.msra.mxu0 0
      %575 = vmatpush.bf16.msra.mxu0 0
      %576 = vmatpush.bf16.msra.mxu0 0
      %577 = vmatpush.bf16.msra.mxu0 0
      %578 = vmatpush.bf16.msra.mxu0 %v563
      %579 = vmatpush.bf16.msra.mxu0 %v562
      %580 = vmatmul.bf16.gmra.mxu0 %v567
      %v581 = vpop.f32.mrf.mxu0
      %v582 = vadd.f32 0.0, %v581
      %v583 = vpop.f32.mrf.mxu0
      %v584 = vadd.f32 0.0, %v583
      %585 = vmatmul.bf16.gmra.mxu0 %v570
      %v586 = vpop.f32.mrf.mxu0
      %v587 = vadd.f32 0.0, %v586
      %v588 = vpop.f32.mrf.mxu0
      %589 = vdwg.mxu0
      %v590 = vadd.f32 %v535, %v582
      %v591 = vadd.f32 %v536, %v584
      %v592 = vadd.f32 %v537, %v587
      %593 = vst.msk [vmem:[#allocation2] sm:$0xff] %vm172, %v590
      %594 = vst.msk [vmem:[#allocation2 + $0x8] sm:$0xff] %vm172, %v591
      %595 = vst.msk [vmem:[#allocation2 + $0x10] sm:$0xff] %vm172, %v592
      %v596 = vld [vmem:[#allocation2] sm:$0xff]
      %v597 = vld [vmem:[#allocation2 + $0x8] sm:$0xff]
      %v598 = vld [vmem:[#allocation2 + $0x10] sm:$0xff]
      %v599 = vld [vmem:[%s165 + $0x4] sm:$0xc]
      %v600 = vld [vmem:[%s165 + $0x8] sm:$0xf]
      %v601 = vld [vmem:[%s165 + $0xc] sm:$0xf]
      %v602 = vld [vmem:[%s165 + $0x10] sm:$0x3]
      %s603 = scalar_lea.vmem %s1, 96
      %v604 = vld [vmem:[%s603] sm:$0xf]
      %v605 = vld [vmem:[%s603 + $0x4] sm:$0xf]
      %v606 = vld [vmem:[%s603 + $0x8] sm:$0xf]
      %v607 = vld [vmem:[%s603 + $0xc] sm:$0xf]
      %v612 = vunpack.c.l.b16 %v599
      %v613 = vunpack.c.l.b16 %v600
      %v614 = vunpack.c.l.b16 %v601
      %v615 = vunpack.c.l.b16 %v602
      %v616 = vpack.c.b16 %v613, %v612
      %v617 = vpack.c.b16 %v615, %v614
      %vm618 = vcmask 1045504
      %v619 = vrot.slane %v616, 2
      %v620 = vrot.slane %v617, 2
      %v621 = vsel %vm618, %v619, %v620
      %v626 = vunpack.c.l.b16 %v604
      %v627 = vunpack.c.l.b16 %v605
      %v628 = vunpack.c.l.b16 %v606
      %v629 = vunpack.c.l.b16 %v607
      %v630 = vpack.c.b16 %v627, %v626
      %v631 = vpack.c.b16 %v629, %v628
      %v635 = vsel %vm206, %v621, 0
      %v638 = vsel %vm206, %v620, 0
      %640 = vmatpush.bf16.msra.mxu0 0
      %641 = vmatpush.bf16.msra.mxu0 0
      %642 = vmatpush.bf16.msra.mxu0 0
      %643 = vmatpush.bf16.msra.mxu0 0
      %644 = vmatpush.bf16.msra.mxu0 0
      %645 = vmatpush.bf16.msra.mxu0 0
      %646 = vmatpush.bf16.msra.mxu0 %v631
      %647 = vmatpush.bf16.msra.mxu0 %v630
      %648 = vmatmul.bf16.gmra.mxu0 %v635
      %v649 = vpop.f32.mrf.mxu0
      %v650 = vadd.f32 0.0, %v649
      %v651 = vpop.f32.mrf.mxu0
      %v652 = vadd.f32 0.0, %v651
      %653 = vmatmul.bf16.gmra.mxu0 %v638
      %v654 = vpop.f32.mrf.mxu0
      %v655 = vadd.f32 0.0, %v654
      %v656 = vpop.f32.mrf.mxu0
      %657 = vdwg.mxu0
      %v658 = vadd.f32 %v596, %v650
      %v659 = vadd.f32 %v597, %v652
      %v660 = vadd.f32 %v598, %v655
      %661 = vst.msk [vmem:[#allocation2] sm:$0xff] %vm172, %v658
      %662 = vst.msk [vmem:[#allocation2 + $0x8] sm:$0xff] %vm172, %v659
      %663 = vst.msk [vmem:[#allocation2 + $0x10] sm:$0xff] %vm172, %v660
      %v664 = vld [vmem:[#allocation2] sm:$0xff]
      %v665 = vld [vmem:[#allocation2 + $0x8] sm:$0xff]
      %v666 = vld [vmem:[#allocation2 + $0x10] sm:$0xff]
      %v667 = vld [vmem:[%s165 + $0x4] sm:$0xc]
      %v668 = vld [vmem:[%s165 + $0x8] sm:$0xf]
      %v669 = vld [vmem:[%s165 + $0xc] sm:$0xf]
      %v670 = vld [vmem:[%s165 + $0x10] sm:$0x7]
      %s671 = scalar_lea.vmem %s1, 112
      %v672 = vld [vmem:[%s671] sm:$0xf]
      %v673 = vld [vmem:[%s671 + $0x4] sm:$0xf]
      %v674 = vld [vmem:[%s671 + $0x8] sm:$0xf]
      %v675 = vld [vmem:[%s671 + $0xc] sm:$0xf]
      %v680 = vunpack.c.l.b16 %v667
      %v681 = vunpack.c.l.b16 %v668
      %v682 = vunpack.c.l.b16 %v669
      %v683 = vunpack.c.l.b16 %v670
      %v684 = vpack.c.b16 %v681, %v680
      %v685 = vpack.c.b16 %v683, %v682
      %vm686 = vsmask.f32 5376
      %v688 = vshrl.u32 %v684, 16
      %v690 = vrot.slane %v688, 2
      %v691 = vshll.u32 %v684, 16
      %v693 = vrot.slane %v691, 3
      %v694 = vor.u32 %v690, %v693
      %v696 = vshrl.u32 %v685, 16
      %v698 = vrot.slane %v696, 2
      %v699 = vshll.u32 %v685, 16
      %v701 = vrot.slane %v699, 3
      %v702 = vor.u32 %v698, %v701
      %v703 = vsel %vm686, %v694, %v702
      %v708 = vunpack.c.l.b16 %v672
      %v709 = vunpack.c.l.b16 %v673
      %v710 = vunpack.c.l.b16 %v674
      %v711 = vunpack.c.l.b16 %v675
      %v712 = vpack.c.b16 %v709, %v708
      %v713 = vpack.c.b16 %v711, %v710
      %v717 = vsel %vm206, %v703, 0
      %v720 = vsel %vm206, %v702, 0
      %722 = vmatpush.bf16.msra.mxu0 0
      %723 = vmatpush.bf16.msra.mxu0 0
      %724 = vmatpush.bf16.msra.mxu0 0
      %725 = vmatpush.bf16.msra.mxu0 0
      %726 = vmatpush.bf16.msra.mxu0 0
      %727 = vmatpush.bf16.msra.mxu0 0
      %728 = vmatpush.bf16.msra.mxu0 %v713
      %729 = vmatpush.bf16.msra.mxu0 %v712
      %730 = vmatmul.bf16.gmra.mxu0 %v717
      %v731 = vpop.f32.mrf.mxu0
      %v732 = vadd.f32 0.0, %v731
      %v733 = vpop.f32.mrf.mxu0
      %v734 = vadd.f32 0.0, %v733
      %735 = vmatmul.bf16.gmra.mxu0 %v720
      %v736 = vpop.f32.mrf.mxu0
      %v737 = vadd.f32 0.0, %v736
      %v738 = vpop.f32.mrf.mxu0
      %739 = vdwg.mxu0
      %v740 = vadd.f32 %v664, %v732
      %v741 = vadd.f32 %v665, %v734
      %v742 = vadd.f32 %v666, %v737
      %743 = vst.msk [vmem:[#allocation2] sm:$0xff] %vm172, %v740
      %744 = vst.msk [vmem:[#allocation2 + $0x8] sm:$0xff] %vm172, %v741
      %745 = vst.msk [vmem:[#allocation2 + $0x10] sm:$0xff] %vm172, %v742
      %v746 = vld [vmem:[#allocation2] sm:$0xff]
      %v747 = vld [vmem:[#allocation2 + $0x8] sm:$0xff]
      %v748 = vld [vmem:[#allocation2 + $0x10] sm:$0xff]
      %v749 = vld [vmem:[%s165 + $0x4] sm:$0x8]
      %v750 = vld [vmem:[%s165 + $0x8] sm:$0xf]
      %v751 = vld [vmem:[%s165 + $0xc] sm:$0xf]
      %v752 = vld [vmem:[%s165 + $0x10] sm:$0x7]
      %s753 = scalar_lea.vmem %s1, 128
      %v754 = vld [vmem:[%s753] sm:$0xf]
      %v755 = vld [vmem:[%s753 + $0x4] sm:$0xf]
      %v756 = vld [vmem:[%s753 + $0x8] sm:$0xf]
      %v757 = vld [vmem:[%s753 + $0xc] sm:$0xf]
      %v762 = vunpack.c.l.b16 %v749
      %v763 = vunpack.c.l.b16 %v750
      %v764 = vunpack.c.l.b16 %v751
      %v765 = vunpack.c.l.b16 %v752
      %v766 = vpack.c.b16 %v763, %v762
      %v767 = vpack.c.b16 %v765, %v764
      %v768 = vrot.slane %v766, 3
      %v769 = vrot.slane %v767, 3
      %v770 = vsel %vm407, %v768, %v769
      %v775 = vunpack.c.l.b16 %v754
      %v776 = vunpack.c.l.b16 %v755
      %v777 = vunpack.c.l.b16 %v756
      %v778 = vunpack.c.l.b16 %v757
      %v779 = vpack.c.b16 %v776, %v775
      %v780 = vpack.c.b16 %v778, %v777
      %v784 = vsel %vm206, %v770, 0
      %v787 = vsel %vm206, %v769, 0
      %789 = vmatpush.bf16.msra.mxu0 0
      %790 = vmatpush.bf16.msra.mxu0 0
      %791 = vmatpush.bf16.msra.mxu0 0
      %792 = vmatpush.bf16.msra.mxu0 0
      %793 = vmatpush.bf16.msra.mxu0 0
      %794 = vmatpush.bf16.msra.mxu0 0
      %795 = vmatpush.bf16.msra.mxu0 %v780
      %796 = vmatpush.bf16.msra.mxu0 %v779
      %797 = vmatmul.bf16.gmra.mxu0 %v784
      %v798 = vpop.f32.mrf.mxu0
      %v799 = vadd.f32 0.0, %v798
      %v800 = vpop.f32.mrf.mxu0
      %v801 = vadd.f32 0.0, %v800
      %802 = vmatmul.bf16.gmra.mxu0 %v787
      %v803 = vpop.f32.mrf.mxu0
      %v804 = vadd.f32 0.0, %v803
      %v805 = vpop.f32.mrf.mxu0
      %806 = vdwg.mxu0
      %v807 = vadd.f32 %v746, %v799
      %v808 = vadd.f32 %v747, %v801
      %v809 = vadd.f32 %v748, %v804
      %810 = vst.msk [vmem:[#allocation2] sm:$0xff] %vm172, %v807
      %811 = vst.msk [vmem:[#allocation2 + $0x8] sm:$0xff] %vm172, %v808
      %812 = vst.msk [vmem:[#allocation2 + $0x10] sm:$0xff] %vm172, %v809
      %v813 = vld [vmem:[#allocation2] sm:$0xff]
      %v814 = vld [vmem:[#allocation2 + $0x8] sm:$0xff]
      %v815 = vld [vmem:[#allocation2 + $0x10] sm:$0xff]
      %v816 = vld [vmem:[%s2] sm:$0x1]
      %v818 = vperm.slane %v816, 0
      %v820 = vadd.f32 %v813, %v818
      %v821 = vadd.f32 %v814, %v818
      %v822 = vadd.f32 %v815, %v818
      %v823 = vmul.f32 %v820, 0.2
      %v824 = vmul.f32 %v821, 0.2
      %v825 = vmul.f32 %v822, 0.2
      %v826 = vmax.f32 %v820, %v823
      %v827 = vmax.f32 %v821, %v824
      %v828 = vmax.f32 %v822, %v825
      %v829 = vpack.c.bf16 %v826, %v826
      %v830 = vpack.c.bf16 %v827, %v827
      %v831 = vpack.c.bf16 %v828, %v828
      %vm832 = vcmask 125952
      %833 = vst.msk [vmem:[%s170] sm:$0xf] %vm832, %v829
      %834 = vst.msk [vmem:[%s170 + $0x4] sm:$0xf] %vm832, %v830
      %835 = vst.msk [vmem:[%s170 + $0x8] sm:$0xf] %vm832, %v831
      %p836 = scmp.lt.s32.totalorder %s14, 1
      %s837 = scalar_select %p836, %s14, 1
      %s838 = smul.addr %s837, 3
      %s839 = smul.addr %s838, 4
      %s840 = scalar_lea.vmem %s3, %s839
      // Predicated region
      $region33: #{discriminator_forward.4} parent=31 // pred_check
        %p841 = pneg %p100
      $region34: #{discriminator_forward.4} parent=31 // pred_check_branch
        %843 = sbr.rel (%p841) target = $region36
      $region35: #{discriminator_forward.4} parent=31 // pred_region
        _
      $region36: #{discriminator_forward.4} parent=31 // pred_fallthru
        _
    $region32: #{discriminator_forward.4} parent=5 // pred_fallthru
      _
    %p844 = scmp.le.s32.totalorder 2, %s9
    // Predicated region
    $region37: #{discriminator_forward.4} parent=5 // pred_check
      %p845 = pneg %p844
    $region38: #{discriminator_forward.4} parent=5 // pred_check_branch
      %847 = sbr.rel (%p845) target = $region40
    $region39: #{discriminator_forward.4} parent=5 // pred_region
      %s848 = ssub.s32 %s9, 2
      // Predicated region
      $region41: #{discriminator_forward.4} parent=39 // pred_check
        %p849 = pneg %p106
      $region42: #{discriminator_forward.4} parent=39 // pred_check_branch
        %851 = sbr.rel (%p849) target = $region44
      $region43: #{discriminator_forward.4} parent=39 // pred_region
        %p852 = scmp.lt.s32.totalorder %s15, 1
        %s853 = scalar_select %p852, %s15, 1
        %s854 = smul.addr %s853, 3
        %s855 = smul.addr %s854, 4
        %s856 = scalar_lea.vmem %s3, %s855
      $region44: #{discriminator_forward.4} parent=39 // pred_fallthru
        _
    $region40: #{discriminator_forward.4} parent=5 // pred_fallthru
      _
  $region6: #{discriminator_forward.4} parent=0 // loop_footer
    %s13 = sadd.s32 1, %s9
  $region7: #{discriminator_forward.4} parent=0 // loop_footer_branch
    %8 = sbr.rel target = $region3
  $region8: #{discriminator_forward.4} parent=0 // loop_exit
    _

// kernel: discriminator_forward.5
$region0: #{discriminator_forward.5}
  #allocation0 [shape = 'u32[]', space=smem, size = 0x4, offset = 0x4, fixed_abs, tag = 'smem constant byte address 0x4 - core index']
  #allocation1 [shape = 'u32[72,128]{1,0:T(1,128)}', space=vmem, size = 0x9000, scoped, tag = 'internal scratch']
  #allocation2 [shape = 'f32[8,32]{1,0:T(8,128)}', space=vmem, size = 0x1000, scoped, tag = 'scratch operand']
  %s0 = inlined_call_operand.vmem [shape: bf16[2,24,64], index: 0, kind: input, shape index: {}]
  %s1 = inlined_call_operand.vmem [shape: bf16[9,64,32], index: 1, kind: input, shape index: {}]
  %s2 = inlined_call_operand.vmem [shape: f32[1,32], index: 2, kind: input, shape index: {}]
  %s3 = inlined_call_operand.vmem [shape: f32[8,32], index: 3, kind: input, shape index: {}]
  %s4 = inlined_call_operand.vmem [shape: f32[2,1,128], index: 4, kind: output, shape index: {}]
  %s5 = sld [smem:[#allocation0]]
  $region49: #{discriminator_forward.5} parent=0
    _
  %s7 = ssub.s32 1, %s5
  %s8 = scalar_select 0, %s7, %s5
  loop: start=0, step=1, limit=4
  $region2: #{discriminator_forward.5} parent=0 // loop_pre_header
    _
  $region3: #{discriminator_forward.5} parent=0 // loop_header
    %s10 = sphi 0, %s14
    %p11 = scmp.ge.s32.totalorder %s10, 4
    %s20 = sphi 0, %s22
    %s23 = sphi 0, %s20
    %s24 = sphi 0, %s23
    %s40 = sphi 0, %s24
    %s44 = sphi 0, %s44
    %s46 = sphi 0, %s44
    %s47 = sphi 0, %s46
    %s61 = sphi 0, %s47
    %s65 = sphi 0, %s65
    %s67 = sphi 0, %s65
    %s68 = sphi 0, %s67
    %s82 = sphi 0, %s68
    %s86 = sphi 0, %s86
    %s88 = sphi 0, %s86
    %s89 = sphi 0, %s88
    %s103 = sphi 0, %s89
    %s109 = sphi 0, %s111
    %s112 = sphi 0, %s109
    %s113 = sphi 0, %s112
    %s129 = sphi 0, %s113
  $region4: #{discriminator_forward.5} parent=0 // loop_header_branch
    %13 = sbr.rel (%p11) target = $region8
  $region5: #{discriminator_forward.5} parent=0 // loop_body
    %s15 = ssub.s32 %s10, 1
    %s16 = ssub.s32 %s10, 2
    %s17 = sadd.s32 %s10, 1
    %s18 = ssub.s32 %s10, %s17
    %p19 = scmp.eq.s32.totalorder %s18, 0
    %s21 = sadd.s32 %s20, 1
    %s22 = scalar_select %p19, %s20, %s21
    %p25 = pneg %p19
    %p26 = scmp.eq.s32.totalorder %s10, 1
    %p27 = por %p25, %p26
    %p28 = scmp.ne.s32.totalorder %s20, %s23
    %p29 = scmp.eq.s32.totalorder %s10, 0
    %p30 = por %p28, %p29
    %p31 = scmp.ne.s32.totalorder %s20, %s23
    %p32 = scmp.eq.s32.totalorder %s15, 1
    %p33 = por %p31, %p32
    %p34 = scmp.ne.s32.totalorder %s23, %s24
    %p35 = scmp.eq.s32.totalorder %s15, 0
    %p36 = por %p34, %p35
    %p37 = scmp.ne.s32.totalorder %s23, %s24
    %p38 = scmp.eq.s32.totalorder %s16, 1
    %p39 = por %p37, %p38
    %p41 = scmp.ne.s32.totalorder %s24, %s40
    %p42 = scmp.eq.s32.totalorder %s16, 0
    %p43 = por %p41, %p42
    %s45 = sadd.s32 %s44, 1
    %p48 = scmp.eq.s32.totalorder %s10, 1
    %p49 = scmp.ne.s32.totalorder %s44, %s46
    %p50 = scmp.eq.s32.totalorder %s10, 0
    %p51 = por %p49, %p50
    %p52 = scmp.ne.s32.totalorder %s44, %s46
    %p53 = scmp.eq.s32.totalorder %s15, 1
    %p54 = por %p52, %p53
    %p55 = scmp.ne.s32.totalorder %s46, %s47
    %p56 = scmp.eq.s32.totalorder %s15, 0
    %p57 = por %p55, %p56
    %p58 = scmp.ne.s32.totalorder %s46, %s47
    %p59 = scmp.eq.s32.totalorder %s16, 1
    %p60 = por %p58, %p59
    %p62 = scmp.ne.s32.totalorder %s47, %s61
    %p63 = scmp.eq.s32.totalorder %s16, 0
    %p64 = por %p62, %p63
    %s66 = sadd.s32 %s65, 1
    %p69 = scmp.eq.s32.totalorder %s10, 1
    %p70 = scmp.ne.s32.totalorder %s65, %s67
    %p71 = scmp.eq.s32.totalorder %s10, 0
    %p72 = por %p70, %p71
    %p73 = scmp.ne.s32.totalorder %s65, %s67
    %p74 = scmp.eq.s32.totalorder %s15, 1
    %p75 = por %p73, %p74
    %p76 = scmp.ne.s32.totalorder %s67, %s68
    %p77 = scmp.eq.s32.totalorder %s15, 0
    %p78 = por %p76, %p77
    %p79 = scmp.ne.s32.totalorder %s67, %s68
    %p80 = scmp.eq.s32.totalorder %s16, 1
    %p81 = por %p79, %p80
    %p83 = scmp.ne.s32.totalorder %s68, %s82
    %p84 = scmp.eq.s32.totalorder %s16, 0
    %p85 = por %p83, %p84
    %s87 = sadd.s32 %s86, 1
    %p90 = scmp.eq.s32.totalorder %s10, 1
    %p91 = scmp.ne.s32.totalorder %s86, %s88
    %p92 = scmp.eq.s32.totalorder %s10, 0
    %p93 = por %p91, %p92
    %p94 = scmp.ne.s32.totalorder %s86, %s88
    %p95 = scmp.eq.s32.totalorder %s15, 1
    %p96 = por %p94, %p95
    %p97 = scmp.ne.s32.totalorder %s88, %s89
    %p98 = scmp.eq.s32.totalorder %s15, 0
    %p99 = por %p97, %p98
    %p100 = scmp.ne.s32.totalorder %s88, %s89
    %p101 = scmp.eq.s32.totalorder %s16, 1
    %p102 = por %p100, %p101
    %p104 = scmp.ne.s32.totalorder %s89, %s103
    %p105 = scmp.eq.s32.totalorder %s16, 0
    %p106 = por %p104, %p105
    %s107 = ssub.s32 %s10, %s17
    %p108 = scmp.eq.s32.totalorder %s107, 0
    %s110 = sadd.s32 %s109, 1
    %s111 = scalar_select %p108, %s109, %s110
    %p114 = pneg %p108
    %p115 = scmp.eq.s32.totalorder %s10, 1
    %p116 = por %p114, %p115
    %p117 = scmp.ne.s32.totalorder %s109, %s112
    %p118 = scmp.eq.s32.totalorder %s10, 0
    %p119 = por %p117, %p118
    %p120 = scmp.ne.s32.totalorder %s109, %s112
    %p121 = scmp.eq.s32.totalorder %s15, 1
    %p122 = por %p120, %p121
    %p123 = scmp.ne.s32.totalorder %s112, %s113
    %p124 = scmp.eq.s32.totalorder %s15, 0
    %p125 = por %p123, %p124
    %p126 = scmp.ne.s32.totalorder %s112, %s113
    %p127 = scmp.eq.s32.totalorder %s16, 1
    %p128 = por %p126, %p127
    %p130 = scmp.ne.s32.totalorder %s113, %s129
    %p131 = scmp.eq.s32.totalorder %s16, 0
    %p132 = por %p130, %p131
    %p133 = scmp.le.s32.totalorder 1, %s10
    %p134 = scmp.lt.s32.totalorder %s10, 3
    %p135 = pnand %p133, %p134
    %p136 = pneg %p135
    // Predicated region
    $region9: #{discriminator_forward.5} parent=5 // pred_check
      _
    $region10: #{discriminator_forward.5} parent=5 // pred_check_branch
      %138 = sbr.rel (%p135) target = $region12
    $region11: #{discriminator_forward.5} parent=5 // pred_region
      %s139 = ssub.s32 %s10, 1
      // Predicated region
      $region13: #{discriminator_forward.5} parent=11 // pred_check
        %p140 = pneg %p57
      $region14: #{discriminator_forward.5} parent=11 // pred_check_branch
        %142 = sbr.rel (%p140) target = $region16
      $region15: #{discriminator_forward.5} parent=11 // pred_region
        _
      $region16: #{discriminator_forward.5} parent=11 // pred_fallthru
        _
      // Predicated region
      $region17: #{discriminator_forward.5} parent=11 // pred_check
        %p143 = pneg %p78
      $region18: #{discriminator_forward.5} parent=11 // pred_check_branch
        %145 = sbr.rel (%p143) target = $region20
      $region19: #{discriminator_forward.5} parent=11 // pred_region
        _
      $region20: #{discriminator_forward.5} parent=11 // pred_fallthru
        _
      // Predicated region
      $region21: #{discriminator_forward.5} parent=11 // pred_check
        %p146 = pneg %p99
      $region22: #{discriminator_forward.5} parent=11 // pred_check_branch
        %148 = sbr.rel (%p146) target = $region24
      $region23: #{discriminator_forward.5} parent=11 // pred_region
        _
      $region24: #{discriminator_forward.5} parent=11 // pred_fallthru
        _
    $region12: #{discriminator_forward.5} parent=5 // pred_fallthru
      _
    %p149 = scmp.lt.s32.totalorder %s10, 2
    // Predicated region
    $region25: #{discriminator_forward.5} parent=5 // pred_check
      %p150 = pneg %p149
    $region26: #{discriminator_forward.5} parent=5 // pred_check_branch
      %152 = sbr.rel (%p150) target = $region28
    $region27: #{discriminator_forward.5} parent=5 // pred_region
      // Predicated region
      $region29: #{discriminator_forward.5} parent=27 // pred_check
        %p153 = pneg %p30
      $region30: #{discriminator_forward.5} parent=27 // pred_check_branch
        %155 = sbr.rel (%p153) target = $region32
      $region31: #{discriminator_forward.5} parent=27 // pred_region
        %p156 = scmp.lt.s32.totalorder %s10, 1
        %s157 = scalar_select %p156, %s10, 1
        %s158 = smul.addr %s157, 3
        %s159 = smul.addr %s158, 4
        %s160 = scalar_lea.vmem %s0, %s159
      $region32: #{discriminator_forward.5} parent=27 // pred_fallthru
        _
    $region28: #{discriminator_forward.5} parent=5 // pred_fallthru
      _
    %p161 = scmp.le.s32.totalorder 1, %s10
    %p162 = scmp.lt.s32.totalorder %s10, 3
    %p163 = pnand %p161, %p162
    %p164 = pneg %p163
    // Predicated region
    $region33: #{discriminator_forward.5} parent=5 // pred_check
      _
    $region34: #{discriminator_forward.5} parent=5 // pred_check_branch
      %166 = sbr.rel (%p163) target = $region36
    $region35: #{discriminator_forward.5} parent=5 // pred_region
      %s167 = ssub.s32 %s10, 1
      %p168 = scmp.lt.s32.totalorder %s15, 1
      %s169 = scalar_select %p168, %s15, 1
      %s170 = smul.addr %s169, 3
      %s171 = smul.addr %s170, 4
      %s172 = scalar_lea.vmem %s0, %s171
      %p173 = pneg %p36
      %p174 = pneg %p33
      %p175 = pneg %p57
      %p176 = pneg %p54
      %p177 = pneg %p78
      %p178 = pneg %p75
      %p179 = pneg %p99
      %p180 = pneg %p96
      %p181 = pneg %p125
      %p182 = pneg %p122
      %p183 = scmp.lt.s32.totalorder %s15, 1
      %s184 = scalar_select %p183, %s15, 1
      %s185 = scalar_lea.vmem %s4, %s184
      %p186 = scmp.lt.s32.totalorder %s15, 1
      %s187 = scalar_select %p186, %s15, 1
      %s188 = smul.addr %s187, 3
      %s189 = smul.addr %s188, 4
      %s190 = scalar_lea.vmem %s0, %s189
      %p191 = scmp.lt.s32.totalorder %s15, 1
      %s192 = scalar_select %p191, %s15, 1
      %s193 = scalar_lea.vmem %s4, %s192
      %vm195 = vcmask 261120
      %196 = vst.msk [vmem:[#allocation2] sm:$0xff] %vm195, 0.0
      %v197 = vld [vmem:[#allocation2] sm:$0xff]
      %v198 = vld [vmem:[%s190] sm:$0xf]
      %v199 = vld [vmem:[%s1] sm:$0xf]
      %v200 = vld [vmem:[%s1 + $0x4] sm:$0xf]
      %v201 = vld [vmem:[%s1 + $0x8] sm:$0xf]
      %v202 = vld [vmem:[%s1 + $0xc] sm:$0xf]
      %v203 = vld [vmem:[%s1 + $0x10] sm:$0xf]
      %v204 = vld [vmem:[%s1 + $0x14] sm:$0xf]
      %v205 = vld [vmem:[%s1 + $0x18] sm:$0xf]
      %v206 = vld [vmem:[%s1 + $0x1c] sm:$0xf]
      %v215 = vunpack.c.l.b16 %v199
      %v216 = vunpack.c.l.b16 %v200
      %v217 = vunpack.c.l.b16 %v201
      %v218 = vunpack.c.l.b16 %v202
      %v219 = vunpack.c.l.b16 %v203
      %v220 = vunpack.c.l.b16 %v204
      %v221 = vunpack.c.l.b16 %v205
      %v222 = vunpack.c.l.b16 %v206
      %v223 = vpack.c.b16 %v216, %v215
      %v224 = vpack.c.b16 %v218, %v217
      %v225 = vpack.c.b16 %v220, %v219
      %v226 = vpack.c.b16 %v222, %v221
      %vm231 = vcmask 523264
      %v233 = vsel %vm231, %v198, 0
      %235 = vmatpush.bf16.msra.mxu0 0
      %236 = vmatpush.bf16.msra.mxu0 0
      %237 = vmatpush.bf16.msra.mxu0 0
      %238 = vmatpush.bf16.msra.mxu0 0
      %239 = vmatpush.bf16.msra.mxu0 %v226
      %240 = vmatpush.bf16.msra.mxu0 %v225
      %241 = vmatpush.bf16.msra.mxu0 %v224
      %242 = vmatpush.bf16.msra.mxu0 %v223
      %243 = vmatmul.bf16.gmra.mxu0 %v233
      %v244 = vpop.f32.mrf.mxu0
      %v245 = vadd.f32 0.0, %v244
      %v246 = vpop.f32.mrf.mxu0
      %247 = vdwg.mxu0
      %v248 = vadd.f32 %v197, %v245
      %249 = vst.msk [vmem:[#allocation2] sm:$0xff] %vm195, %v248
      %v250 = vld [vmem:[#allocation2] sm:$0xff]
      %v251 = vld [vmem:[%s190] sm:$0xf]
      %v252 = vld [vmem:[%s190 + $0x4] sm:$0x1]
      %s253 = scalar_lea.vmem %s1, 32
      %v254 = vld [vmem:[%s253] sm:$0xf]
      %v255 = vld [vmem:[%s253 + $0x4] sm:$0xf]
      %v256 = vld [vmem:[%s253 + $0x8] sm:$0xf]
      %v257 = vld [vmem:[%s253 + $0xc] sm:$0xf]
      %v258 = vld [vmem:[%s253 + $0x10] sm:$0xf]
      %v259 = vld [vmem:[%s253 + $0x14] sm:$0xf]
      %v260 = vld [vmem:[%s253 + $0x18] sm:$0xf]
      %v261 = vld [vmem:[%s253 + $0x1c] sm:$0xf]
      %v264 = vunpack.c.l.b16 %v251
      %v265 = vunpack.c.l.b16 %v252
      %v266 = vpack.c.b16 %v265, %v264
      %v268 = vshrl.u32 %v266, 16
      %v270 = vshll.u32 %v266, 16
      %v272 = vrot.slane %v270, 1
      %v273 = vor.u32 %v268, %v272
      %v282 = vunpack.c.l.b16 %v254
      %v283 = vunpack.c.l.b16 %v255
      %v284 = vunpack.c.l.b16 %v256
      %v285 = vunpack.c.l.b16 %v257
      %v286 = vunpack.c.l.b16 %v258
      %v287 = vunpack.c.l.b16 %v259
      %v288 = vunpack.c.l.b16 %v260
      %v289 = vunpack.c.l.b16 %v261
      %v290 = vpack.c.b16 %v283, %v282
      %v291 = vpack.c.b16 %v285, %v284
      %v292 = vpack.c.b16 %v287, %v286
      %v293 = vpack.c.b16 %v289, %v288
      %v299 = vsel %vm231, %v273, 0
      %301 = vmatpush.bf16.msra.mxu0 0
      %302 = vmatpush.bf16.msra.mxu0 0
      %303 = vmatpush.bf16.msra.mxu0 0
      %304 = vmatpush.bf16.msra.mxu0 0
      %305 = vmatpush.bf16.msra.mxu0 %v293
      %306 = vmatpush.bf16.msra.mxu0 %v292
      %307 = vmatpush.bf16.msra.mxu0 %v291
      %308 = vmatpush.bf16.msra.mxu0 %v290
      %309 = vmatmul.bf16.gmra.mxu0 %v299
      %v310 = vpop.f32.mrf.mxu0
      %v311 = vadd.f32 0.0, %v310
      %v312 = vpop.f32.mrf.mxu0
      %313 = vdwg.mxu0
      %v314 = vadd.f32 %v250, %v311
      %315 = vst.msk [vmem:[#allocation2] sm:$0xff] %vm195, %v314
      %v316 = vld [vmem:[#allocation2] sm:$0xff]
      %v317 = vld [vmem:[%s190] sm:$0xe]
      %v318 = vld [vmem:[%s190 + $0x4] sm:$0x1]
      %s319 = scalar_lea.vmem %s1, 64
      %v320 = vld [vmem:[%s319] sm:$0xf]
      %v321 = vld [vmem:[%s319 + $0x4] sm:$0xf]
      %v322 = vld [vmem:[%s319 + $0x8] sm:$0xf]
      %v323 = vld [vmem:[%s319 + $0xc] sm:$0xf]
      %v324 = vld [vmem:[%s319 + $0x10] sm:$0xf]
      %v325 = vld [vmem:[%s319 + $0x14] sm:$0xf]
      %v326 = vld [vmem:[%s319 + $0x18] sm:$0xf]
      %v327 = vld [vmem:[%s319 + $0x1c] sm:$0xf]
      %v330 = vunpack.c.l.b16 %v317
      %v331 = vunpack.c.l.b16 %v318
      %v332 = vpack.c.b16 %v331, %v330
      %v333 = vrot.slane %v332, 1
      %v342 = vunpack.c.l.b16 %v320
      %v343 = vunpack.c.l.b16 %v321
      %v344 = vunpack.c.l.b16 %v322
      %v345 = vunpack.c.l.b16 %v323
      %v346 = vunpack.c.l.b16 %v324
      %v347 = vunpack.c.l.b16 %v325
      %v348 = vunpack.c.l.b16 %v326
      %v349 = vunpack.c.l.b16 %v327
      %v350 = vpack.c.b16 %v343, %v342
      %v351 = vpack.c.b16 %v345, %v344
      %v352 = vpack.c.b16 %v347, %v346
      %v353 = vpack.c.b16 %v349, %v348
      %v359 = vsel %vm231, %v333, 0
      %361 = vmatpush.bf16.msra.mxu0 0
      %362 = vmatpush.bf16.msra.mxu0 0
      %363 = vmatpush.bf16.msra.mxu0 0
      %364 = vmatpush.bf16.msra.mxu0 0
      %365 = vmatpush.bf16.msra.mxu0 %v353
      %366 = vmatpush.bf16.msra.mxu0 %v352
      %367 = vmatpush.bf16.msra.mxu0 %v351
      %368 = vmatpush.bf16.msra.mxu0 %v350
      %369 = vmatmul.bf16.gmra.mxu0 %v359
      %v370 = vpop.f32.mrf.mxu0
      %v371 = vadd.f32 0.0, %v370
      %v372 = vpop.f32.mrf.mxu0
      %373 = vdwg.mxu0
      %v374 = vadd.f32 %v316, %v371
      %375 = vst.msk [vmem:[#allocation2] sm:$0xff] %vm195, %v374
      %v376 = vld [vmem:[#allocation2] sm:$0xff]
      %v377 = vld [vmem:[%s190] sm:$0xc]
      %v378 = vld [vmem:[%s190 + $0x4] sm:$0x3]
      %s379 = scalar_lea.vmem %s1, 96
      %v380 = vld [vmem:[%s379] sm:$0xf]
      %v381 = vld [vmem:[%s379 + $0x4] sm:$0xf]
      %v382 = vld [vmem:[%s379 + $0x8] sm:$0xf]
      %v383 = vld [vmem:[%s379 + $0xc] sm:$0xf]
      %v384 = vld [vmem:[%s379 + $0x10] sm:$0xf]
      %v385 = vld [vmem:[%s379 + $0x14] sm:$0xf]
      %v386 = vld [vmem:[%s379 + $0x18] sm:$0xf]
      %v387 = vld [vmem:[%s379 + $0x1c] sm:$0xf]
      %v390 = vunpack.c.l.b16 %v377
      %v391 = vunpack.c.l.b16 %v378
      %v392 = vpack.c.b16 %v391, %v390
      %v393 = vrot.slane %v392, 2
      %v402 = vunpack.c.l.b16 %v380
      %v403 = vunpack.c.l.b16 %v381
      %v404 = vunpack.c.l.b16 %v382
      %v405 = vunpack.c.l.b16 %v383
      %v406 = vunpack.c.l.b16 %v384
      %v407 = vunpack.c.l.b16 %v385
      %v408 = vunpack.c.l.b16 %v386
      %v409 = vunpack.c.l.b16 %v387
      %v410 = vpack.c.b16 %v403, %v402
      %v411 = vpack.c.b16 %v405, %v404
      %v412 = vpack.c.b16 %v407, %v406
      %v413 = vpack.c.b16 %v409, %v408
      %v419 = vsel %vm231, %v393, 0
      %421 = vmatpush.bf16.msra.mxu0 0
      %422 = vmatpush.bf16.msra.mxu0 0
      %423 = vmatpush.bf16.msra.mxu0 0
      %424 = vmatpush.bf16.msra.mxu0 0
      %425 = vmatpush.bf16.msra.mxu0 %v413
      %426 = vmatpush.bf16.msra.mxu0 %v412
      %427 = vmatpush.bf16.msra.mxu0 %v411
      %428 = vmatpush.bf16.msra.mxu0 %v410
      %429 = vmatmul.bf16.gmra.mxu0 %v419
      %v430 = vpop.f32.mrf.mxu0
      %v431 = vadd.f32 0.0, %v430
      %v432 = vpop.f32.mrf.mxu0
      %433 = vdwg.mxu0
      %v434 = vadd.f32 %v376, %v431
      %435 = vst.msk [vmem:[#allocation2] sm:$0xff] %vm195, %v434
      %v436 = vld [vmem:[#allocation2] sm:$0xff]
      %v437 = vld [vmem:[%s190] sm:$0xc]
      %v438 = vld [vmem:[%s190 + $0x4] sm:$0x7]
      %s439 = scalar_lea.vmem %s1, 128
      %v440 = vld [vmem:[%s439] sm:$0xf]
      %v441 = vld [vmem:[%s439 + $0x4] sm:$0xf]
      %v442 = vld [vmem:[%s439 + $0x8] sm:$0xf]
      %v443 = vld [vmem:[%s439 + $0xc] sm:$0xf]
      %v444 = vld [vmem:[%s439 + $0x10] sm:$0xf]
      %v445 = vld [vmem:[%s439 + $0x14] sm:$0xf]
      %v446 = vld [vmem:[%s439 + $0x18] sm:$0xf]
      %v447 = vld [vmem:[%s439 + $0x1c] sm:$0xf]
      %v450 = vunpack.c.l.b16 %v437
      %v451 = vunpack.c.l.b16 %v438
      %v452 = vpack.c.b16 %v451, %v450
      %v454 = vshrl.u32 %v452, 16
      %v456 = vrot.slane %v454, 2
      %v457 = vshll.u32 %v452, 16
      %v459 = vrot.slane %v457, 3
      %v460 = vor.u32 %v456, %v459
      %v469 = vunpack.c.l.b16 %v440
      %v470 = vunpack.c.l.b16 %v441
      %v471 = vunpack.c.l.b16 %v442
      %v472 = vunpack.c.l.b16 %v443
      %v473 = vunpack.c.l.b16 %v444
      %v474 = vunpack.c.l.b16 %v445
      %v475 = vunpack.c.l.b16 %v446
      %v476 = vunpack.c.l.b16 %v447
      %v477 = vpack.c.b16 %v470, %v469
      %v478 = vpack.c.b16 %v472, %v471
      %v479 = vpack.c.b16 %v474, %v473
      %v480 = vpack.c.b16 %v476, %v475
      %v486 = vsel %vm231, %v460, 0
      %488 = vmatpush.bf16.msra.mxu0 0
      %489 = vmatpush.bf16.msra.mxu0 0
      %490 = vmatpush.bf16.msra.mxu0 0
      %491 = vmatpush.bf16.msra.mxu0 0
      %492 = vmatpush.bf16.msra.mxu0 %v480
      %493 = vmatpush.bf16.msra.mxu0 %v479
      %494 = vmatpush.bf16.msra.mxu0 %v478
      %495 = vmatpush.bf16.msra.mxu0 %v477
      %496 = vmatmul.bf16.gmra.mxu0 %v486
      %v497 = vpop.f32.mrf.mxu0
      %v498 = vadd.f32 0.0, %v497
      %v499 = vpop.f32.mrf.mxu0
      %500 = vdwg.mxu0
      %v501 = vadd.f32 %v436, %v498
      %502 = vst.msk [vmem:[#allocation2] sm:$0xff] %vm195, %v501
      %v503 = vld [vmem:[#allocation2] sm:$0xff]
      %v504 = vld [vmem:[%s190] sm:$0x8]
      %v505 = vld [vmem:[%s190 + $0x4] sm:$0x7]
      %s506 = scalar_lea.vmem %s1, 160
      %v507 = vld [vmem:[%s506] sm:$0xf]
      %v508 = vld [vmem:[%s506 + $0x4] sm:$0xf]
      %v509 = vld [vmem:[%s506 + $0x8] sm:$0xf]
      %v510 = vld [vmem:[%s506 + $0xc] sm:$0xf]
      %v511 = vld [vmem:[%s506 + $0x10] sm:$0xf]
      %v512 = vld [vmem:[%s506 + $0x14] sm:$0xf]
      %v513 = vld [vmem:[%s506 + $0x18] sm:$0xf]
      %v514 = vld [vmem:[%s506 + $0x1c] sm:$0xf]
      %v517 = vunpack.c.l.b16 %v504
      %v518 = vunpack.c.l.b16 %v505
      %v519 = vpack.c.b16 %v518, %v517
      %v520 = vrot.slane %v519, 3
      %v529 = vunpack.c.l.b16 %v507
      %v530 = vunpack.c.l.b16 %v508
      %v531 = vunpack.c.l.b16 %v509
      %v532 = vunpack.c.l.b16 %v510
      %v533 = vunpack.c.l.b16 %v511
      %v534 = vunpack.c.l.b16 %v512
      %v535 = vunpack.c.l.b16 %v513
      %v536 = vunpack.c.l.b16 %v514
      %v537 = vpack.c.b16 %v530, %v529
      %v538 = vpack.c.b16 %v532, %v531
      %v539 = vpack.c.b16 %v534, %v533
      %v540 = vpack.c.b16 %v536, %v535
      %v546 = vsel %vm231, %v520, 0
      %548 = vmatpush.bf16.msra.mxu0 0
      %549 = vmatpush.bf16.msra.mxu0 0
      %550 = vmatpush.bf16.msra.mxu0 0
      %551 = vmatpush.bf16.msra.mxu0 0
      %552 = vmatpush.bf16.msra.mxu0 %v540
      %553 = vmatpush.bf16.msra.mxu0 %v539
      %554 = vmatpush.bf16.msra.mxu0 %v538
      %555 = vmatpush.bf16.msra.mxu0 %v537
      %556 = vmatmul.bf16.gmra.mxu0 %v546
      %v557 = vpop.f32.mrf.mxu0
      %v558 = vadd.f32 0.0, %v557
      %v559 = vpop.f32.mrf.mxu0
      %560 = vdwg.mxu0
      %v561 = vadd.f32 %v503, %v558
      %562 = vst.msk [vmem:[#allocation2] sm:$0xff] %vm195, %v561
      %v563 = vld [vmem:[#allocation2] sm:$0xff]
      %v564 = vld [vmem:[%s190 + $0x4] sm:$0xf]
      %s565 = scalar_lea.vmem %s1, 192
      %v566 = vld [vmem:[%s565] sm:$0xf]
      %v567 = vld [vmem:[%s565 + $0x4] sm:$0xf]
      %v568 = vld [vmem:[%s565 + $0x8] sm:$0xf]
      %v569 = vld [vmem:[%s565 + $0xc] sm:$0xf]
      %v570 = vld [vmem:[%s565 + $0x10] sm:$0xf]
      %v571 = vld [vmem:[%s565 + $0x14] sm:$0xf]
      %v572 = vld [vmem:[%s565 + $0x18] sm:$0xf]
      %v573 = vld [vmem:[%s565 + $0x1c] sm:$0xf]
      %v582 = vunpack.c.l.b16 %v566
      %v583 = vunpack.c.l.b16 %v567
      %v584 = vunpack.c.l.b16 %v568
      %v585 = vunpack.c.l.b16 %v569
      %v586 = vunpack.c.l.b16 %v570
      %v587 = vunpack.c.l.b16 %v571
      %v588 = vunpack.c.l.b16 %v572
      %v589 = vunpack.c.l.b16 %v573
      %v590 = vpack.c.b16 %v583, %v582
      %v591 = vpack.c.b16 %v585, %v584
      %v592 = vpack.c.b16 %v587, %v586
      %v593 = vpack.c.b16 %v589, %v588
      %v599 = vsel %vm231, %v564, 0
      %601 = vmatpush.bf16.msra.mxu0 0
      %602 = vmatpush.bf16.msra.mxu0 0
      %603 = vmatpush.bf16.msra.mxu0 0
      %604 = vmatpush.bf16.msra.mxu0 0
      %605 = vmatpush.bf16.msra.mxu0 %v593
      %606 = vmatpush.bf16.msra.mxu0 %v592
      %607 = vmatpush.bf16.msra.mxu0 %v591
      %608 = vmatpush.bf16.msra.mxu0 %v590
      %609 = vmatmul.bf16.gmra.mxu0 %v599
      %v610 = vpop.f32.mrf.mxu0
      %v611 = vadd.f32 0.0, %v610
      %v612 = vpop.f32.mrf.mxu0
      %613 = vdwg.mxu0
      %v614 = vadd.f32 %v563, %v611
      %615 = vst.msk [vmem:[#allocation2] sm:$0xff] %vm195, %v614
      %v616 = vld [vmem:[#allocation2] sm:$0xff]
      %v617 = vld [vmem:[%s190 + $0x4] sm:$0xf]
      %v618 = vld [vmem:[%s190 + $0x8] sm:$0x1]
      %s619 = scalar_lea.vmem %s1, 224
      %v620 = vld [vmem:[%s619] sm:$0xf]
      %v621 = vld [vmem:[%s619 + $0x4] sm:$0xf]
      %v622 = vld [vmem:[%s619 + $0x8] sm:$0xf]
      %v623 = vld [vmem:[%s619 + $0xc] sm:$0xf]
      %v624 = vld [vmem:[%s619 + $0x10] sm:$0xf]
      %v625 = vld [vmem:[%s619 + $0x14] sm:$0xf]
      %v626 = vld [vmem:[%s619 + $0x18] sm:$0xf]
      %v627 = vld [vmem:[%s619 + $0x1c] sm:$0xf]
      %v630 = vunpack.c.l.b16 %v617
      %v631 = vunpack.c.l.b16 %v618
      %v632 = vpack.c.b16 %v631, %v630
      %v634 = vshrl.u32 %v632, 16
      %v636 = vshll.u32 %v632, 16
      %v638 = vrot.slane %v636, 1
      %v639 = vor.u32 %v634, %v638
      %v648 = vunpack.c.l.b16 %v620
      %v649 = vunpack.c.l.b16 %v621
      %v650 = vunpack.c.l.b16 %v622
      %v651 = vunpack.c.l.b16 %v623
      %v652 = vunpack.c.l.b16 %v624
      %v653 = vunpack.c.l.b16 %v625
      %v654 = vunpack.c.l.b16 %v626
      %v655 = vunpack.c.l.b16 %v627
      %v656 = vpack.c.b16 %v649, %v648
      %v657 = vpack.c.b16 %v651, %v650
      %v658 = vpack.c.b16 %v653, %v652
      %v659 = vpack.c.b16 %v655, %v654
      %v665 = vsel %vm231, %v639, 0
      %667 = vmatpush.bf16.msra.mxu0 0
      %668 = vmatpush.bf16.msra.mxu0 0
      %669 = vmatpush.bf16.msra.mxu0 0
      %670 = vmatpush.bf16.msra.mxu0 0
      %671 = vmatpush.bf16.msra.mxu0 %v659
      %672 = vmatpush.bf16.msra.mxu0 %v658
      %673 = vmatpush.bf16.msra.mxu0 %v657
      %674 = vmatpush.bf16.msra.mxu0 %v656
      %675 = vmatmul.bf16.gmra.mxu0 %v665
      %v676 = vpop.f32.mrf.mxu0
      %v677 = vadd.f32 0.0, %v676
      %v678 = vpop.f32.mrf.mxu0
      %679 = vdwg.mxu0
      %v680 = vadd.f32 %v616, %v677
      %681 = vst.msk [vmem:[#allocation2] sm:$0xff] %vm195, %v680
      %v682 = vld [vmem:[#allocation2] sm:$0xff]
      %v683 = vld [vmem:[%s190 + $0x4] sm:$0xe]
      %v684 = vld [vmem:[%s190 + $0x8] sm:$0x1]
      %s685 = scalar_lea.vmem %s1, 256
      %v686 = vld [vmem:[%s685] sm:$0xf]
      %v687 = vld [vmem:[%s685 + $0x4] sm:$0xf]
      %v688 = vld [vmem:[%s685 + $0x8] sm:$0xf]
      %v689 = vld [vmem:[%s685 + $0xc] sm:$0xf]
      %v690 = vld [vmem:[%s685 + $0x10] sm:$0xf]
      %v691 = vld [vmem:[%s685 + $0x14] sm:$0xf]
      %v692 = vld [vmem:[%s685 + $0x18] sm:$0xf]
      %v693 = vld [vmem:[%s685 + $0x1c] sm:$0xf]
      %v696 = vunpack.c.l.b16 %v683
      %v697 = vunpack.c.l.b16 %v684
      %v698 = vpack.c.b16 %v697, %v696
      %v699 = vrot.slane %v698, 1
      %v708 = vunpack.c.l.b16 %v686
      %v709 = vunpack.c.l.b16 %v687
      %v710 = vunpack.c.l.b16 %v688
      %v711 = vunpack.c.l.b16 %v689
      %v712 = vunpack.c.l.b16 %v690
      %v713 = vunpack.c.l.b16 %v691
      %v714 = vunpack.c.l.b16 %v692
      %v715 = vunpack.c.l.b16 %v693
      %v716 = vpack.c.b16 %v709, %v708
      %v717 = vpack.c.b16 %v711, %v710
      %v718 = vpack.c.b16 %v713, %v712
      %v719 = vpack.c.b16 %v715, %v714
      %v725 = vsel %vm231, %v699, 0
      %727 = vmatpush.bf16.msra.mxu0 0
      %728 = vmatpush.bf16.msra.mxu0 0
      %729 = vmatpush.bf16.msra.mxu0 0
      %730 = vmatpush.bf16.msra.mxu0 0
      %731 = vmatpush.bf16.msra.mxu0 %v719
      %732 = vmatpush.bf16.msra.mxu0 %v718
      %733 = vmatpush.bf16.msra.mxu0 %v717
      %734 = vmatpush.bf16.msra.mxu0 %v716
      %735 = vmatmul.bf16.gmra.mxu0 %v725
      %v736 = vpop.f32.mrf.mxu0
      %v737 = vadd.f32 0.0, %v736
      %v738 = vpop.f32.mrf.mxu0
      %739 = vdwg.mxu0
      %v740 = vadd.f32 %v682, %v737
      %741 = vst.msk [vmem:[#allocation2] sm:$0xff] %vm195, %v740
      %v742 = vld [vmem:[#allocation2] sm:$0xff]
      %v743 = vld [vmem:[%s2] sm:$0x1]
      %v745 = vperm.slane %v743, 0
      %v747 = vadd.f32 %v742, %v745
      %v748 = vmul.f32 %v747, 0.2
      %v749 = vmax.f32 %v747, %v748
      %v750 = vld [vmem:[%s3] sm:$0xff]
      %v751 = vmul.f32 %v749, %v750
      %v752 = vsel %vm195, %v751, 0.0
      %753 = vadd.xlane.f32.xlu0 %v752
      %v754 = vpop.xlane.xlu0 %753
      %v755 = vrot.slane %v754, 4
      %v756 = vadd.f32 %v754, %v755
      %v757 = vrot.slane %v756, 2
      %v758 = vadd.f32 %v756, %v757
      %v759 = vrot.slane %v758, 1
      %v760 = vadd.f32 %v758, %v759
      %s761 = vtos %v760
      %v762 = vstv %s761
      %763 = vst [vmem:[%s193] sm:$0x1] %v762
      %p764 = scmp.lt.s32.totalorder %s15, 1
      %s765 = scalar_select %p764, %s15, 1
      %s766 = scalar_lea.vmem %s4, %s765
      // Predicated region
      $region37: #{discriminator_forward.5} parent=35 // pred_check
        %p767 = pneg %p122
      $region38: #{discriminator_forward.5} parent=35 // pred_check_branch
        %769 = sbr.rel (%p767) target = $region40
      $region39: #{discriminator_forward.5} parent=35 // pred_region
        _
      $region40: #{discriminator_forward.5} parent=35 // pred_fallthru
        _
    $region36: #{discriminator_forward.5} parent=5 // pred_fallthru
      _
    %p770 = scmp.le.s32.totalorder 2, %s10
    // Predicated region
    $region41: #{discriminator_forward.5} parent=5 // pred_check
      %p771 = pneg %p770
    $region42: #{discriminator_forward.5} parent=5 // pred_check_branch
      %773 = sbr.rel (%p771) target = $region44
    $region43: #{discriminator_forward.5} parent=5 // pred_region
      %s774 = ssub.s32 %s10, 2
      // Predicated region
      $region45: #{discriminator_forward.5} parent=43 // pred_check
        %p775 = pneg %p128
      $region46: #{discriminator_forward.5} parent=43 // pred_check_branch
        %777 = sbr.rel (%p775) target = $region48
      $region47: #{discriminator_forward.5} parent=43 // pred_region
        %p778 = scmp.lt.s32.totalorder %s16, 1
        %s779 = scalar_select %p778, %s16, 1
        %s780 = scalar_lea.vmem %s4, %s779
      $region48: #{discriminator_forward.5} parent=43 // pred_fallthru
        _
    $region44: #{discriminator_forward.5} parent=5 // pred_fallthru
      _
  $region6: #{discriminator_forward.5} parent=0 // loop_footer
    %s14 = sadd.s32 1, %s10
  $region7: #{discriminator_forward.5} parent=0 // loop_footer_branch
    %9 = sbr.rel target = $region3
  $region8: #{discriminator_forward.5} parent=0 // loop_exit
    _

</llo_original>
